<compile_context>
chip_gen: v6e
topology: v6e:2x2x1
jax: 0.10.0
libtpu: 0.0.40
codegen_flags: <defaults>
</compile_context>

<pallas_src>
import functools

import jax
import jax.numpy as jnp
from jax import lax
from jax.experimental import pallas as pl
from jax.experimental.pallas import tpu as pltpu

LANE = 128
SUBLANE = 8


def _round_up(x, m):
    return ((x + m - 1) // m) * m


def _cdiv(a, b):
    return -(-a // b)


def _tpu_vmem_budget():
    """(vmem_limit_bytes, want_two_tiles) derived from the local chip.

    ~75% of physical VMEM: ~96 MiB on v5e/v6e (128 MiB), ~48 MiB on v7x (64 MiB/TC).
    Small per-core VMEM is the v7x signature (2 TensorCores/chip), so in that case we
    also want >=2 parallel batch tiles.
    """
    cap = 128 * 1024 * 1024
    try:
        info = pltpu.get_tpu_info()
        cap = int(getattr(info, "vmem_capacity_bytes", cap)) or cap
    except Exception:
        pass
    limit = max((cap * 3) // 4, 32 * 1024 * 1024)
    return limit, cap <= 80 * 1024 * 1024


_VMEM_LIMIT, _TWO_TILES = _tpu_vmem_budget()


def _pick_block(batch, per_row_bytes, fixed_bytes, vmem_limit, want_two_tiles):
    """Largest batch tile (multiple of 8, <=512) whose VMEM footprint fits."""
    rows = _round_up(max(batch, 1), SUBLANE)
    usable = max(vmem_limit - fixed_bytes, SUBLANE * per_row_bytes)
    cap = max(SUBLANE, min(512, (usable // per_row_bytes) // SUBLANE * SUBLANE))
    block = min(rows, cap)
    if want_two_tiles:
        # v7x: make sure both TensorCores get a "parallel" grid tile.
        block = min(block, _round_up(_cdiv(rows, 2), SUBLANE))
        tiles = max(2, _cdiv(rows, block))
    else:
        tiles = _cdiv(rows, block)
    return block, block * tiles


def _unroll_for(rows, steps):
    # v5e: at >=128-row tiles each step's live set already exceeds the 64-vreg file;
    # deeper unrolling only multiplies spill stores on its single vector-store slot.
    if rows >= 128:
        return 2 if steps > 2 else True
    return True if steps <= 16 else 4


# ----------------------------------------------------------------------------
# Fused kernel: char GRU (final hidden) -> word GRU -> classifier
# ----------------------------------------------------------------------------
def _char_word_cls_kernel(ce_ref, xe_ref,
                          cw_ih_ref, cw_hh_ref, cb_i_ref, cb_hn_ref,
                          ww_e_ref, ww_c_ref, ww_hh_ref, wb_i_ref, wb_hn_ref,
                          cls_w_ref, cls_b_ref,
                          logits_ref,
                          chh_scr, wgi_scr, h_scr):
    """One batch tile of the whole forward pass (eval mode).

    ce_ref    : (L, T, Bb, Dc) bf16  char embeddings, char-step major
    xe_ref    : (T, Bb, E)     bf16  word embeddings, time major
    cw_*      : char-GRU weights, gates packed compactly (r|z|n) along the last dim
    ww_*      : word-GRU weights; input weights split into emb / char-feature parts
    cls_*     : classifier weight/bias (classes padded to a multiple of 128)
    logits_ref: (T, Bb, Cp)    f32   output logits, time major
    chh_scr   : (T*Bb, Hc)     f32   char-GRU hidden state == char features
    wgi_scr   : (T, Bb, Ww)    bf16  hoisted word-GRU gate-input projections
    h_scr     : (Bb, H)        f32   word-GRU hidden state
    """
    L, T, Bb, Dc = ce_ref.shape
    E = xe_ref.shape[-1]
    Hc = cb_hn_ref.shape[-1]
    H = wb_hn_ref.shape[-1]
    TB = T * Bb
    f32 = jnp.float32
    bf16 = jnp.bfloat16

    # ---------------- char GRU over all T*Bb words (final hidden only) ------
    cw_ih = cw_ih_ref[...]          # weights loaded once, hoisted out of the loop
    cw_hh = cw_hh_ref[...]
    cb_i = cb_i_ref[...]            # b_ih with b_hr/b_hz already folded in
    cb_hn = cb_hn_ref[...]
    chh_scr[...] = jnp.zeros_like(chh_scr)

    def char_step(l, carry):
        # Bb % 8 == 0, so these leading-dim merges are sublane-aligned: no relayout.
        x_l = ce_ref[l].reshape(TB, Dc)
        h_prev = chh_scr[...]
        # The x-projection does not depend on h, so under unrolling it overlaps the
        # EUP/VPU tail of the previous step; computing it here (instead of a hoisted
        # (L, T*Bb, 3Hc) scratch) keeps the L/T-proportional VMEM footprint small.
        gi = jnp.dot(x_l, cw_ih, preferred_element_type=f32) + cb_i
        gh = jnp.dot(h_prev.astype(bf16), cw_hh, preferred_element_type=f32)
        rz = jax.nn.sigmoid(gi[:, :2 * Hc] + gh[:, :2 * Hc])
        r = rz[:, :Hc]
        z = rz[:, Hc:]
        n = jnp.tanh(gi[:, 2 * Hc:3 * Hc] + r * (gh[:, 2 * Hc:3 * Hc] + cb_hn))
        chh_scr[...] = (1.0 - z) * n + z * h_prev
        return carry

    lax.fori_loop(0, L, char_step, 0, unroll=_unroll_for(TB, L))

    # ---------------- word GRU: hoisted input projection ---------------------
    xe2d = xe_ref[...].reshape(TB, E)
    cf2d = chh_scr[...].astype(bf16)
    gi_w = (jnp.dot(xe2d, ww_e_ref[...], preferred_element_type=f32)
            + jnp.dot(cf2d, ww_c_ref[...], preferred_element_type=f32)
            + wb_i_ref[...])
    Ww = gi_w.shape[-1]
    wgi_scr[...] = gi_w.reshape(T, Bb, Ww).astype(wgi_scr.dtype)

    # ---------------- word GRU recurrence + fused per-step classifier --------
    ww_hh = ww_hh_ref[...]
    wb_hn = wb_hn_ref[...]
    cls_w = cls_w_ref[...]
    cls_b = cls_b_ref[...]
    h_scr[...] = jnp.zeros_like(h_scr)

    def word_step(t, carry):
        gi_t = wgi_scr[t].astype(f32)                          # (Bb, Ww)
        h_prev = h_scr[...]                                    # (Bb, H) f32
        gh = jnp.dot(h_prev.astype(bf16), ww_hh, preferred_element_type=f32)
        rz = jax.nn.sigmoid(gi_t[:, :2 * H] + gh[:, :2 * H])
        r = rz[:, :H]
        z = rz[:, H:]
        n = jnp.tanh(gi_t[:, 2 * H:3 * H] + r * (gh[:, 2 * H:3 * H] + wb_hn))
        h = (1.0 - z) * n + z * h_prev
        h_scr[...] = h
        # Classifier fused per step (no (T,Bb,H) hidden-sequence scratch); the
        # classifier dot is off the h-dependency chain so it overlaps under unroll.
        # dropout(p=0.1, training=False) == identity.
        logits_ref[t] = (jnp.dot(h.astype(bf16), cls_w,
                                 preferred_element_type=f32)
                         + cls_b).astype(logits_ref.dtype)
        return carry

    lax.fori_loop(0, T, word_step, 0, unroll=_unroll_for(Bb, T))


def _fused_forward(ce, xe, pp, *, block_b, c_pad, vmem_limit):
    """ce: (L, T, Bp, Dc) bf16; xe: (T, Bp, E) bf16; returns (T, Bp, Cp) f32."""
    L, T, Bp, Dc = ce.shape
    E = xe.shape[-1]
    Hc = pp["char_b_hn"].shape[-1]
    H = pp["gru_b_hn"].shape[-1]
    Ww = pp["gru_w_hh"].shape[-1]
    grid = (Bp // block_b,)

    def _wspec(a):
        return pl.BlockSpec(a.shape, lambda i: (0, 0))

    return pl.pallas_call(
        _char_word_cls_kernel,
        out_shape=jax.ShapeDtypeStruct((T, Bp, c_pad), jnp.float32),
        grid_spec=pltpu.PrefetchScalarGridSpec(
            num_scalar_prefetch=0,
            grid=grid,
            in_specs=[
                pl.BlockSpec((L, T, block_b, Dc), lambda i: (0, 0, i, 0)),
                pl.BlockSpec((T, block_b, E), lambda i: (0, i, 0)),
                _wspec(pp["char_w_ih"]), _wspec(pp["char_w_hh"]),
                _wspec(pp["char_b_i"]), _wspec(pp["char_b_hn"]),
                _wspec(pp["gru_w_ih_e"]), _wspec(pp["gru_w_ih_c"]),
                _wspec(pp["gru_w_hh"]), _wspec(pp["gru_b_i"]),
                _wspec(pp["gru_b_hn"]),
                _wspec(pp["cls_w"]), _wspec(pp["cls_b"]),
            ],
            out_specs=pl.BlockSpec((T, block_b, c_pad), lambda i: (0, i, 0)),
            scratch_shapes=[
                pltpu.VMEM((T * block_b, Hc), jnp.float32),
                pltpu.VMEM((T, block_b, Ww), jnp.bfloat16),
                pltpu.VMEM((block_b, H), jnp.float32),
            ],
        ),
        compiler_params=pltpu.CompilerParams(
            dimension_semantics=("parallel",),
            vmem_limit_bytes=vmem_limit,
        ),
    )(ce, xe,
      pp["char_w_ih"], pp["char_w_hh"], pp["char_b_i"], pp["char_b_hn"],
      pp["gru_w_ih_e"], pp["gru_w_ih_c"], pp["gru_w_hh"], pp["gru_b_i"],
      pp["gru_b_hn"], pp["cls_w"], pp["cls_b"])


# ----------------------------------------------------------------------------
# Parameters (logical, torch-like) + one-time fuse/pad for the kernel
# ----------------------------------------------------------------------------
def init_params(key, vocab_size, emb_dim, hidden_dim, n_classes,
                n_chars, char_emb_dim, char_hidden_dim):
    """Deterministic synthetic parameters (logical shapes, gate order r/z/n)."""
    ks = jax.random.split(key, 12)

    def unif(k, shape, bound):
        return jax.random.uniform(k, shape, jnp.float32, -bound, bound)

    gru_in = emb_dim + char_hidden_dim
    kw = 1.0 / jnp.sqrt(hidden_dim)
    kc = 1.0 / jnp.sqrt(char_hidden_dim)
    kl = 1.0 / jnp.sqrt(hidden_dim)

    return dict(
        emb=jax.random.normal(ks[0], (vocab_size, emb_dim), jnp.float32),
        gru_w_ih=unif(ks[1], (3, gru_in, hidden_dim), kw),
        gru_w_hh=unif(ks[2], (3, hidden_dim, hidden_dim), kw),
        gru_b_ih=unif(ks[3], (3, 1, hidden_dim), kw),
        gru_b_hh=unif(ks[4], (3, 1, hidden_dim), kw),
        cls_w=unif(ks[5], (hidden_dim, n_classes), kl),
        cls_b=unif(ks[6], (1, n_classes), kl),
        char_emb=jax.random.normal(ks[7], (n_chars, char_emb_dim), jnp.float32),
        char_w_ih=unif(ks[8], (3, char_emb_dim, char_hidden_dim), kc),
        char_w_hh=unif(ks[9], (3, char_hidden_dim, char_hidden_dim), kc),
        char_b_ih=unif(ks[10], (3, 1, char_hidden_dim), kc),
        char_b_hh=unif(ks[11], (3, 1, char_hidden_dim), kc),
    )


def prepare_params(params):
    """Fuse per-gate weights into compact (Din, round_up(3H,128)) bf16 blocks,
    fold the r/z hidden biases into the input bias, pad classes to 128 lanes."""
    def fuse_w(w):                                   # (3, Din, H) -> (Din, Wp) bf16
        _, din, h = w.shape
        wp = _round_up(3 * h, LANE)
        out = jnp.zeros((din, wp), jnp.float32)
        for g in range(3):
            out = out.at[:, g * h:(g + 1) * h].set(w[g])
        return out.astype(jnp.bfloat16)

    def fuse_b(b_ih, b_hh):                          # (3,1,H) -> (1, Wp) f32
        _, _, h = b_ih.shape
        wp = _round_up(3 * h, LANE)
        out = jnp.zeros((1, wp), jnp.float32)
        for g in range(3):
            v = b_ih[g] + (b_hh[g] if g < 2 else jnp.zeros_like(b_hh[g]))
            out = out.at[:, g * h:(g + 1) * h].set(v)
        return out

    E = params["emb"].shape[-1]
    H = params["gru_w_hh"].shape[-1]
    C = params["cls_w"].shape[-1]
    Cp = _round_up(C, LANE)
    w_ih = params["gru_w_ih"]                        # (3, E + Hc, H)

    return dict(
        emb=params["emb"].astype(jnp.bfloat16),
        char_emb=params["char_emb"].astype(jnp.bfloat16),
        char_w_ih=fuse_w(params["char_w_ih"]),
        char_w_hh=fuse_w(params["char_w_hh"]),
        char_b_i=fuse_b(params["char_b_ih"], params["char_b_hh"]),
        char_b_hn=params["char_b_hh"][2],            # (1, Hc) f32
        gru_w_ih_e=fuse_w(w_ih[:, :E, :]),
        gru_w_ih_c=fuse_w(w_ih[:, E:, :]),
        gru_w_hh=fuse_w(params["gru_w_hh"]),
        gru_b_i=fuse_b(params["gru_b_ih"], params["gru_b_hh"]),
        gru_b_hn=params["gru_b_hh"][2],              # (1, H) f32
        cls_w=jnp.zeros((H, Cp), jnp.float32)
              .at[:, :C].set(params["cls_w"]).astype(jnp.bfloat16),
        cls_b=jnp.zeros((1, Cp), jnp.float32).at[:, :C].set(params["cls_b"]),
    )


# ----------------------------------------------------------------------------
# Forward pass (eval mode)
# ----------------------------------------------------------------------------
@functools.partial(jax.jit, static_argnames=("n_classes",))
def pos_predictor_v2_chars(pparams, x, x_chars, *, n_classes):
    """x: (B, T) int32 word ids; x_chars: (T, B, L) int32 char ids.
    Returns (B, T, n_classes) float32 logits."""
    B, T = x.shape
    L = x_chars.shape[-1]

    # Embedding gathers stay in XLA (data-dependent gather); activations reach the
    # kernel in bf16 (MXU operand dtype), halving their HBM traffic.
    ce = jnp.take(pparams["char_emb"], x_chars, axis=0)           # (T, B, L, Dc)
    ce = jnp.transpose(ce, (2, 0, 1, 3))                          # (L, T, B, Dc)
    xe = jnp.transpose(jnp.take(pparams["emb"], x, axis=0), (1, 0, 2))  # (T, B, E)

    Dc = ce.shape[-1]
    E = xe.shape[-1]
    Hc = pparams["char_b_hn"].shape[-1]
    H = pparams["gru_b_hn"].shape[-1]
    Wc = pparams["char_w_hh"].shape[-1]
    Ww = pparams["gru_w_hh"].shape[-1]
    Cp = pparams["cls_w"].shape[-1]

    # Per-batch-row VMEM estimate (double-buffered I/O blocks + scratches + the
    # compiler-managed live values of the two serial loops), used to pick the
    # largest batch tile that fits the scoped VMEM limit.
    per_row = (2 * L * T * Dc * 2            # ce blocks (bf16, double-buffered)
               + 2 * T * E * 2               # xe blocks (bf16, double-buffered)
               + 2 * T * Cp * 4              # logits blocks (f32, double-buffered)
               + T * _round_up(Hc, LANE) * 4  # char-hidden scratch (lane-padded f32)
               + T * Ww * 2                  # word gate-input scratch (bf16)
               + 5 * T * Wc * 4              # char-loop live values
               + 3 * T * Ww * 4              # hoisted word projection live values
               + 10 * Ww * 4)                # word-loop live values
    fixed = (2 * ((Dc + Hc) * Wc + (E + Hc + H) * Ww + H * Cp) * 2
             + (Wc + Ww + Cp + Hc + H) * 4
             + (2 << 20))                    # headroom for compiler-internal scratch
    block_b, Bp = _pick_block(B, per_row, fixed, _VMEM_LIMIT, _TWO_TILES)

    if Bp != B:
        ce = jnp.pad(ce, ((0, 0), (0, 0), (0, Bp - B), (0, 0)))
        xe = jnp.pad(xe, ((0, 0), (0, Bp - B), (0, 0)))

    logits_tm = _fused_forward(ce, xe, pparams, block_b=block_b, c_pad=Cp,
                               vmem_limit=_VMEM_LIMIT)            # (T, Bp, Cp)
    return jnp.transpose(logits_tm, (1, 0, 2))[:B, :, :n_classes]


# ----------------------------------------------------------------------------
# Pure-JAX f32 reference (correctness check; uses the unpadded per-gate params)
# ----------------------------------------------------------------------------
def _gru_ref(x_tbd, w_ih, w_hh, b_ih, b_hh):
    _, B, _ = x_tbd.shape
    H = w_hh.shape[-1]

    def step(h, x_t):
        gi = jnp.stack([x_t @ w_ih[g] + b_ih[g] for g in range(3)])
        gh = jnp.stack([h @ w_hh[g] + b_hh[g] for g in range(3)])
        r = jax.nn.sigmoid(gi[0] + gh[0])
        z = jax.nn.sigmoid(gi[1] + gh[1])
        n = jnp.tanh(gi[2] + r * gh[2])
        h = (1.0 - z) * n + z * h
        return h, h

    _, hs = lax.scan(step, jnp.zeros((B, H), jnp.float32), x_tbd)
    return hs


def _forward_ref(params, x, x_chars):
    B, T = x.shape
    _, _, L = x_chars.shape
    ce = jnp.take(params["char_emb"], x_chars, axis=0).reshape(T * B, L, -1)
    ce = jnp.transpose(ce, (1, 0, 2))
    ch = _gru_ref(ce, params["char_w_ih"], params["char_w_hh"],
                  params["char_b_ih"], params["char_b_hh"])[-1]
    chars = jnp.transpose(ch.reshape(T, B, -1), (1, 0, 2))
    emb_x = jnp.take(params["emb"], x, axis=0)
    gi = jnp.transpose(jnp.concatenate([emb_x, chars], -1), (1, 0, 2))
    hs = _gru_ref(gi, params["gru_w_ih"], params["gru_w_hh"],
                  params["gru_b_ih"], params["gru_b_hh"])
    gru_out = jnp.transpose(hs, (1, 0, 2))
    return gru_out @ params["cls_w"] + params["cls_b"][0]


# ----------------------------------------------------------------------------
if __name__ == "__main__":
    vocab_size, emb_dim, hidden_dim, n_classes = 50, 32, 32, 10
    n_chars, char_emb_dim, char_hidden_dim = 30, 8, 16
    B, T, L = 2, 8, 6

    key = jax.random.PRNGKey(0)
    kp, kx, kc = jax.random.split(key, 3)

    params = init_params(kp, vocab_size, emb_dim, hidden_dim, n_classes,
                         n_chars, char_emb_dim, char_hidden_dim)
    pparams = prepare_params(params)

    x = jax.random.randint(kx, (B, T), 0, vocab_size, dtype=jnp.int32)
    x_chars = jax.random.randint(kc, (T, B, L), 0, n_chars, dtype=jnp.int32)

    out = pos_predictor_v2_chars(pparams, x, x_chars, n_classes=n_classes)
    out = jax.block_until_ready(out)
    assert out.shape == (B, T, n_classes), out.shape

    ref = _forward_ref(params, x, x_chars)
    # bf16 MXU operands vs. the pure-f32 reference -> allow a few e-3 of drift.
    assert jnp.allclose(out, ref, rtol=3e-2, atol=3e-2), (
        float(jnp.max(jnp.abs(out - ref))))

    print("KERNEL_OK")
</pallas_src>

<mosaic_0001>
module attributes {stable_mosaic.version = 11 : i64} {
  func.func @_char_word_cls_kernel(%arg0: i32, %arg1: memref<6x8x8x8xbf16, #tpu.memory_space<vmem>>, %arg2: memref<8x8x32xbf16, #tpu.memory_space<vmem>>, %arg3: memref<8x128xbf16, #tpu.memory_space<vmem>>, %arg4: memref<16x128xbf16, #tpu.memory_space<vmem>>, %arg5: memref<1x128xf32, #tpu.memory_space<vmem>>, %arg6: memref<1x16xf32, #tpu.memory_space<vmem>>, %arg7: memref<32x128xbf16, #tpu.memory_space<vmem>>, %arg8: memref<16x128xbf16, #tpu.memory_space<vmem>>, %arg9: memref<32x128xbf16, #tpu.memory_space<vmem>>, %arg10: memref<1x128xf32, #tpu.memory_space<vmem>>, %arg11: memref<1x32xf32, #tpu.memory_space<vmem>>, %arg12: memref<32x128xbf16, #tpu.memory_space<vmem>>, %arg13: memref<1x128xf32, #tpu.memory_space<vmem>>, %arg14: memref<8x8x128xf32, #tpu.memory_space<vmem>>, %arg15: memref<64x16xf32, #tpu.memory_space<vmem>>, %arg16: memref<8x8x128xbf16, #tpu.memory_space<vmem>>, %arg17: memref<8x32xf32, #tpu.memory_space<vmem>>) attributes {dimension_semantics = [#tpu.dimension_semantics<parallel>], iteration_bounds = array<i64: 1>, scalar_prefetch = 0 : i64, scratch_operands = 3 : i64, tpu.core_type = #tpu.core_type<tc>, window_params = [{transform_indices = @transform_0, window_bounds = array<i64: 6, 8, 8, 8>}, {transform_indices = @transform_1, window_bounds = array<i64: 8, 8, 32>}, {pipeline_mode = #tpu.pipeline_mode<synchronous>, transform_indices = @transform_2, window_bounds = array<i64: 8, 128>}, {pipeline_mode = #tpu.pipeline_mode<synchronous>, transform_indices = @transform_3, window_bounds = array<i64: 16, 128>}, {pipeline_mode = #tpu.pipeline_mode<synchronous>, transform_indices = @transform_4, window_bounds = array<i64: 1, 128>}, {pipeline_mode = #tpu.pipeline_mode<synchronous>, transform_indices = @transform_5, window_bounds = array<i64: 1, 16>}, {pipeline_mode = #tpu.pipeline_mode<synchronous>, transform_indices = @transform_6, window_bounds = array<i64: 32, 128>}, {pipeline_mode = #tpu.pipeline_mode<synchronous>, transform_indices = @transform_7, window_bounds = array<i64: 16, 128>}, {pipeline_mode = #tpu.pipeline_mode<synchronous>, transform_indices = @transform_8, window_bounds = array<i64: 32, 128>}, {pipeline_mode = #tpu.pipeline_mode<synchronous>, transform_indices = @transform_9, window_bounds = array<i64: 1, 128>}, {pipeline_mode = #tpu.pipeline_mode<synchronous>, transform_indices = @transform_10, window_bounds = array<i64: 1, 32>}, {pipeline_mode = #tpu.pipeline_mode<synchronous>, transform_indices = @transform_11, window_bounds = array<i64: 32, 128>}, {pipeline_mode = #tpu.pipeline_mode<synchronous>, transform_indices = @transform_12, window_bounds = array<i64: 1, 128>}, {transform_indices = @transform_13, window_bounds = array<i64: 8, 8, 128>}]} {
    %c0 = arith.constant 0 : index
    %c0_0 = arith.constant 0 : index
    %0 = vector.load %arg3[%c0, %c0_0] : memref<8x128xbf16, #tpu.memory_space<vmem>>, vector<8x128xbf16>
    %c0_1 = arith.constant 0 : index
    %c0_2 = arith.constant 0 : index
    %1 = vector.load %arg4[%c0_1, %c0_2] : memref<16x128xbf16, #tpu.memory_space<vmem>>, vector<16x128xbf16>
    %c0_3 = arith.constant 0 : index
    %c0_4 = arith.constant 0 : index
    %2 = vector.load %arg5[%c0_3, %c0_4] : memref<1x128xf32, #tpu.memory_space<vmem>>, vector<1x128xf32>
    %c0_5 = arith.constant 0 : index
    %c0_6 = arith.constant 0 : index
    %3 = vector.load %arg6[%c0_5, %c0_6] : memref<1x16xf32, #tpu.memory_space<vmem>>, vector<1x16xf32>
    %cst = arith.constant 0.000000e+00 : f32
    %4 = vector.broadcast %cst : f32 to vector<64x16xf32>
    %c0_7 = arith.constant 0 : index
    %c0_8 = arith.constant 0 : index
    %5 = vector.load %arg15[%c0_7, %c0_8] : memref<64x16xf32, #tpu.memory_space<vmem>>, vector<64x16xf32>
    tpu.vector_store %arg15[%c0_7, %c0_8], %4 {strides = array<i32>} : memref<64x16xf32, #tpu.memory_space<vmem>>, vector<64x16xf32>,
    %c0_i32 = arith.constant 0 : i32
    %6 = arith.index_cast %c0_i32 : i32 to index
    %c0_9 = arith.constant 0 : index
    %c0_10 = arith.constant 0 : index
    %c0_11 = arith.constant 0 : index
    %7 = vector.load %arg1[%6, %c0_9, %c0_10, %c0_11] : memref<6x8x8x8xbf16, #tpu.memory_space<vmem>>, vector<1x8x8x8xbf16>
    %8 = vector.shape_cast %7 : vector<1x8x8x8xbf16> to vector<8x8x8xbf16>
    %9 = vector.shape_cast %8 : vector<8x8x8xbf16> to vector<64x8xbf16>
    %c0_12 = arith.constant 0 : index
    %c0_13 = arith.constant 0 : index
    %10 = vector.load %arg15[%c0_12, %c0_13] : memref<64x16xf32, #tpu.memory_space<vmem>>, vector<64x16xf32>
    %cst_14 = arith.constant dense<0.000000e+00> : vector<64x128xf32>
    %11 = tpu.matmul %9, %0, %cst_14 {dimension_numbers = #tpu.dot_dimension_numbers<[1], [0], [0], [1], [0, 0, 1, 1], [], []>} : vector<64x8xbf16>, vector<8x128xbf16>, vector<64x128xf32> -> vector<64x128xf32>
    %12 = vector.broadcast %2 : vector<1x128xf32> to vector<64x128xf32>
    %13 = arith.addf %11, %12 : vector<64x128xf32>
    %14 = arith.truncf %10 : vector<64x16xf32> to vector<64x16xbf16>
    %cst_15 = arith.constant dense<0.000000e+00> : vector<64x128xf32>
    %15 = tpu.matmul %14, %1, %cst_15 {dimension_numbers = #tpu.dot_dimension_numbers<[1], [0], [0], [1], [0, 0, 1, 1], [], []>} : vector<64x16xbf16>, vector<16x128xbf16>, vector<64x128xf32> -> vector<64x128xf32>
    %16 = vector.extract_strided_slice %13 {offsets = [0, 0], sizes = [64, 32], strides = [1, 1]} : vector<64x128xf32> to vector<64x32xf32>
    %17 = vector.extract_strided_slice %15 {offsets = [0, 0], sizes = [64, 32], strides = [1, 1]} : vector<64x128xf32> to vector<64x32xf32>
    %18 = arith.addf %16, %17 : vector<64x32xf32>
    %19 = arith.negf %18 : vector<64x32xf32>
    %20 = math.exp %19 : vector<64x32xf32>
    %cst_16 = arith.constant 1.000000e+00 : f32
    %21 = vector.broadcast %cst_16 : f32 to vector<64x32xf32>
    %22 = arith.addf %21, %20 : vector<64x32xf32>
    %23 = arith.divf %21, %22 : vector<64x32xf32>
    %24 = vector.extract_strided_slice %23 {offsets = [0, 0], sizes = [64, 16], strides = [1, 1]} : vector<64x32xf32> to vector<64x16xf32>
    %25 = vector.extract_strided_slice %23 {offsets = [0, 16], sizes = [64, 16], strides = [1, 1]} : vector<64x32xf32> to vector<64x16xf32>
    %26 = vector.extract_strided_slice %13 {offsets = [0, 32], sizes = [64, 16], strides = [1, 1]} : vector<64x128xf32> to vector<64x16xf32>
    %27 = vector.extract_strided_slice %15 {offsets = [0, 32], sizes = [64, 16], strides = [1, 1]} : vector<64x128xf32> to vector<64x16xf32>
    %28 = vector.broadcast %3 : vector<1x16xf32> to vector<64x16xf32>
    %29 = arith.addf %27, %28 : vector<64x16xf32>
    %30 = arith.mulf %24, %29 : vector<64x16xf32>
    %31 = arith.addf %26, %30 : vector<64x16xf32>
    %32 = math.tanh %31 : vector<64x16xf32>
    %cst_17 = arith.constant 1.000000e+00 : f32
    %33 = vector.broadcast %cst_17 : f32 to vector<64x16xf32>
    %34 = arith.subf %33, %25 : vector<64x16xf32>
    %35 = arith.mulf %34, %32 : vector<64x16xf32>
    %36 = arith.mulf %25, %10 : vector<64x16xf32>
    %37 = arith.addf %35, %36 : vector<64x16xf32>
    %c0_18 = arith.constant 0 : index
    %c0_19 = arith.constant 0 : index
    %38 = vector.load %arg15[%c0_18, %c0_19] : memref<64x16xf32, #tpu.memory_space<vmem>>, vector<64x16xf32>
    tpu.vector_store %arg15[%c0_18, %c0_19], %37 {strides = array<i32>} : memref<64x16xf32, #tpu.memory_space<vmem>>, vector<64x16xf32>,
    %c1_i32 = arith.constant 1 : i32
    %39 = arith.index_cast %c1_i32 : i32 to index
    %c0_20 = arith.constant 0 : index
    %c0_21 = arith.constant 0 : index
    %c0_22 = arith.constant 0 : index
    %40 = vector.load %arg1[%39, %c0_20, %c0_21, %c0_22] : memref<6x8x8x8xbf16, #tpu.memory_space<vmem>>, vector<1x8x8x8xbf16>
    %41 = vector.shape_cast %40 : vector<1x8x8x8xbf16> to vector<8x8x8xbf16>
    %42 = vector.shape_cast %41 : vector<8x8x8xbf16> to vector<64x8xbf16>
    %c0_23 = arith.constant 0 : index
    %c0_24 = arith.constant 0 : index
    %43 = vector.load %arg15[%c0_23, %c0_24] : memref<64x16xf32, #tpu.memory_space<vmem>>, vector<64x16xf32>
    %cst_25 = arith.constant dense<0.000000e+00> : vector<64x128xf32>
    %44 = tpu.matmul %42, %0, %cst_25 {dimension_numbers = #tpu.dot_dimension_numbers<[1], [0], [0], [1], [0, 0, 1, 1], [], []>} : vector<64x8xbf16>, vector<8x128xbf16>, vector<64x128xf32> -> vector<64x128xf32>
    %45 = vector.broadcast %2 : vector<1x128xf32> to vector<64x128xf32>
    %46 = arith.addf %44, %45 : vector<64x128xf32>
    %47 = arith.truncf %43 : vector<64x16xf32> to vector<64x16xbf16>
    %cst_26 = arith.constant dense<0.000000e+00> : vector<64x128xf32>
    %48 = tpu.matmul %47, %1, %cst_26 {dimension_numbers = #tpu.dot_dimension_numbers<[1], [0], [0], [1], [0, 0, 1, 1], [], []>} : vector<64x16xbf16>, vector<16x128xbf16>, vector<64x128xf32> -> vector<64x128xf32>
    %49 = vector.extract_strided_slice %46 {offsets = [0, 0], sizes = [64, 32], strides = [1, 1]} : vector<64x128xf32> to vector<64x32xf32>
    %50 = vector.extract_strided_slice %48 {offsets = [0, 0], sizes = [64, 32], strides = [1, 1]} : vector<64x128xf32> to vector<64x32xf32>
    %51 = arith.addf %49, %50 : vector<64x32xf32>
    %52 = arith.negf %51 : vector<64x32xf32>
    %53 = math.exp %52 : vector<64x32xf32>
    %cst_27 = arith.constant 1.000000e+00 : f32
    %54 = vector.broadcast %cst_27 : f32 to vector<64x32xf32>
    %55 = arith.addf %54, %53 : vector<64x32xf32>
    %56 = arith.divf %54, %55 : vector<64x32xf32>
    %57 = vector.extract_strided_slice %56 {offsets = [0, 0], sizes = [64, 16], strides = [1, 1]} : vector<64x32xf32> to vector<64x16xf32>
    %58 = vector.extract_strided_slice %56 {offsets = [0, 16], sizes = [64, 16], strides = [1, 1]} : vector<64x32xf32> to vector<64x16xf32>
    %59 = vector.extract_strided_slice %46 {offsets = [0, 32], sizes = [64, 16], strides = [1, 1]} : vector<64x128xf32> to vector<64x16xf32>
    %60 = vector.extract_strided_slice %48 {offsets = [0, 32], sizes = [64, 16], strides = [1, 1]} : vector<64x128xf32> to vector<64x16xf32>
    %61 = vector.broadcast %3 : vector<1x16xf32> to vector<64x16xf32>
    %62 = arith.addf %60, %61 : vector<64x16xf32>
    %63 = arith.mulf %57, %62 : vector<64x16xf32>
    %64 = arith.addf %59, %63 : vector<64x16xf32>
    %65 = math.tanh %64 : vector<64x16xf32>
    %cst_28 = arith.constant 1.000000e+00 : f32
    %66 = vector.broadcast %cst_28 : f32 to vector<64x16xf32>
    %67 = arith.subf %66, %58 : vector<64x16xf32>
    %68 = arith.mulf %67, %65 : vector<64x16xf32>
    %69 = arith.mulf %58, %43 : vector<64x16xf32>
    %70 = arith.addf %68, %69 : vector<64x16xf32>
    %c0_29 = arith.constant 0 : index
    %c0_30 = arith.constant 0 : index
    %71 = vector.load %arg15[%c0_29, %c0_30] : memref<64x16xf32, #tpu.memory_space<vmem>>, vector<64x16xf32>
    tpu.vector_store %arg15[%c0_29, %c0_30], %70 {strides = array<i32>} : memref<64x16xf32, #tpu.memory_space<vmem>>, vector<64x16xf32>,
    %c2_i32 = arith.constant 2 : i32
    %72 = arith.index_cast %c2_i32 : i32 to index
    %c0_31 = arith.constant 0 : index
    %c0_32 = arith.constant 0 : index
    %c0_33 = arith.constant 0 : index
    %73 = vector.load %arg1[%72, %c0_31, %c0_32, %c0_33] : memref<6x8x8x8xbf16, #tpu.memory_space<vmem>>, vector<1x8x8x8xbf16>
    %74 = vector.shape_cast %73 : vector<1x8x8x8xbf16> to vector<8x8x8xbf16>
    %75 = vector.shape_cast %74 : vector<8x8x8xbf16> to vector<64x8xbf16>
    %c0_34 = arith.constant 0 : index
    %c0_35 = arith.constant 0 : index
    %76 = vector.load %arg15[%c0_34, %c0_35] : memref<64x16xf32, #tpu.memory_space<vmem>>, vector<64x16xf32>
    %cst_36 = arith.constant dense<0.000000e+00> : vector<64x128xf32>
    %77 = tpu.matmul %75, %0, %cst_36 {dimension_numbers = #tpu.dot_dimension_numbers<[1], [0], [0], [1], [0, 0, 1, 1], [], []>} : vector<64x8xbf16>, vector<8x128xbf16>, vector<64x128xf32> -> vector<64x128xf32>
    %78 = vector.broadcast %2 : vector<1x128xf32> to vector<64x128xf32>
    %79 = arith.addf %77, %78 : vector<64x128xf32>
    %80 = arith.truncf %76 : vector<64x16xf32> to vector<64x16xbf16>
    %cst_37 = arith.constant dense<0.000000e+00> : vector<64x128xf32>
    %81 = tpu.matmul %80, %1, %cst_37 {dimension_numbers = #tpu.dot_dimension_numbers<[1], [0], [0], [1], [0, 0, 1, 1], [], []>} : vector<64x16xbf16>, vector<16x128xbf16>, vector<64x128xf32> -> vector<64x128xf32>
    %82 = vector.extract_strided_slice %79 {offsets = [0, 0], sizes = [64, 32], strides = [1, 1]} : vector<64x128xf32> to vector<64x32xf32>
    %83 = vector.extract_strided_slice %81 {offsets = [0, 0], sizes = [64, 32], strides = [1, 1]} : vector<64x128xf32> to vector<64x32xf32>
    %84 = arith.addf %82, %83 : vector<64x32xf32>
    %85 = arith.negf %84 : vector<64x32xf32>
    %86 = math.exp %85 : vector<64x32xf32>
    %cst_38 = arith.constant 1.000000e+00 : f32
    %87 = vector.broadcast %cst_38 : f32 to vector<64x32xf32>
    %88 = arith.addf %87, %86 : vector<64x32xf32>
    %89 = arith.divf %87, %88 : vector<64x32xf32>
    %90 = vector.extract_strided_slice %89 {offsets = [0, 0], sizes = [64, 16], strides = [1, 1]} : vector<64x32xf32> to vector<64x16xf32>
    %91 = vector.extract_strided_slice %89 {offsets = [0, 16], sizes = [64, 16], strides = [1, 1]} : vector<64x32xf32> to vector<64x16xf32>
    %92 = vector.extract_strided_slice %79 {offsets = [0, 32], sizes = [64, 16], strides = [1, 1]} : vector<64x128xf32> to vector<64x16xf32>
    %93 = vector.extract_strided_slice %81 {offsets = [0, 32], sizes = [64, 16], strides = [1, 1]} : vector<64x128xf32> to vector<64x16xf32>
    %94 = vector.broadcast %3 : vector<1x16xf32> to vector<64x16xf32>
    %95 = arith.addf %93, %94 : vector<64x16xf32>
    %96 = arith.mulf %90, %95 : vector<64x16xf32>
    %97 = arith.addf %92, %96 : vector<64x16xf32>
    %98 = math.tanh %97 : vector<64x16xf32>
    %cst_39 = arith.constant 1.000000e+00 : f32
    %99 = vector.broadcast %cst_39 : f32 to vector<64x16xf32>
    %100 = arith.subf %99, %91 : vector<64x16xf32>
    %101 = arith.mulf %100, %98 : vector<64x16xf32>
    %102 = arith.mulf %91, %76 : vector<64x16xf32>
    %103 = arith.addf %101, %102 : vector<64x16xf32>
    %c0_40 = arith.constant 0 : index
    %c0_41 = arith.constant 0 : index
    %104 = vector.load %arg15[%c0_40, %c0_41] : memref<64x16xf32, #tpu.memory_space<vmem>>, vector<64x16xf32>
    tpu.vector_store %arg15[%c0_40, %c0_41], %103 {strides = array<i32>} : memref<64x16xf32, #tpu.memory_space<vmem>>, vector<64x16xf32>,
    %c3_i32 = arith.constant 3 : i32
    %105 = arith.index_cast %c3_i32 : i32 to index
    %c0_42 = arith.constant 0 : index
    %c0_43 = arith.constant 0 : index
    %c0_44 = arith.constant 0 : index
    %106 = vector.load %arg1[%105, %c0_42, %c0_43, %c0_44] : memref<6x8x8x8xbf16, #tpu.memory_space<vmem>>, vector<1x8x8x8xbf16>
    %107 = vector.shape_cast %106 : vector<1x8x8x8xbf16> to vector<8x8x8xbf16>
    %108 = vector.shape_cast %107 : vector<8x8x8xbf16> to vector<64x8xbf16>
    %c0_45 = arith.constant 0 : index
    %c0_46 = arith.constant 0 : index
    %109 = vector.load %arg15[%c0_45, %c0_46] : memref<64x16xf32, #tpu.memory_space<vmem>>, vector<64x16xf32>
    %cst_47 = arith.constant dense<0.000000e+00> : vector<64x128xf32>
    %110 = tpu.matmul %108, %0, %cst_47 {dimension_numbers = #tpu.dot_dimension_numbers<[1], [0], [0], [1], [0, 0, 1, 1], [], []>} : vector<64x8xbf16>, vector<8x128xbf16>, vector<64x128xf32> -> vector<64x128xf32>
    %111 = vector.broadcast %2 : vector<1x128xf32> to vector<64x128xf32>
    %112 = arith.addf %110, %111 : vector<64x128xf32>
    %113 = arith.truncf %109 : vector<64x16xf32> to vector<64x16xbf16>
    %cst_48 = arith.constant dense<0.000000e+00> : vector<64x128xf32>
    %114 = tpu.matmul %113, %1, %cst_48 {dimension_numbers = #tpu.dot_dimension_numbers<[1], [0], [0], [1], [0, 0, 1, 1], [], []>} : vector<64x16xbf16>, vector<16x128xbf16>, vector<64x128xf32> -> vector<64x128xf32>
    %115 = vector.extract_strided_slice %112 {offsets = [0, 0], sizes = [64, 32], strides = [1, 1]} : vector<64x128xf32> to vector<64x32xf32>
    %116 = vector.extract_strided_slice %114 {offsets = [0, 0], sizes = [64, 32], strides = [1, 1]} : vector<64x128xf32> to vector<64x32xf32>
    %117 = arith.addf %115, %116 : vector<64x32xf32>
    %118 = arith.negf %117 : vector<64x32xf32>
    %119 = math.exp %118 : vector<64x32xf32>
    %cst_49 = arith.constant 1.000000e+00 : f32
    %120 = vector.broadcast %cst_49 : f32 to vector<64x32xf32>
    %121 = arith.addf %120, %119 : vector<64x32xf32>
    %122 = arith.divf %120, %121 : vector<64x32xf32>
    %123 = vector.extract_strided_slice %122 {offsets = [0, 0], sizes = [64, 16], strides = [1, 1]} : vector<64x32xf32> to vector<64x16xf32>
    %124 = vector.extract_strided_slice %122 {offsets = [0, 16], sizes = [64, 16], strides = [1, 1]} : vector<64x32xf32> to vector<64x16xf32>
    %125 = vector.extract_strided_slice %112 {offsets = [0, 32], sizes = [64, 16], strides = [1, 1]} : vector<64x128xf32> to vector<64x16xf32>
    %126 = vector.extract_strided_slice %114 {offsets = [0, 32], sizes = [64, 16], strides = [1, 1]} : vector<64x128xf32> to vector<64x16xf32>
    %127 = vector.broadcast %3 : vector<1x16xf32> to vector<64x16xf32>
    %128 = arith.addf %126, %127 : vector<64x16xf32>
    %129 = arith.mulf %123, %128 : vector<64x16xf32>
    %130 = arith.addf %125, %129 : vector<64x16xf32>
    %131 = math.tanh %130 : vector<64x16xf32>
    %cst_50 = arith.constant 1.000000e+00 : f32
    %132 = vector.broadcast %cst_50 : f32 to vector<64x16xf32>
    %133 = arith.subf %132, %124 : vector<64x16xf32>
    %134 = arith.mulf %133, %131 : vector<64x16xf32>
    %135 = arith.mulf %124, %109 : vector<64x16xf32>
    %136 = arith.addf %134, %135 : vector<64x16xf32>
    %c0_51 = arith.constant 0 : index
    %c0_52 = arith.constant 0 : index
    %137 = vector.load %arg15[%c0_51, %c0_52] : memref<64x16xf32, #tpu.memory_space<vmem>>, vector<64x16xf32>
    tpu.vector_store %arg15[%c0_51, %c0_52], %136 {strides = array<i32>} : memref<64x16xf32, #tpu.memory_space<vmem>>, vector<64x16xf32>,
    %c4_i32 = arith.constant 4 : i32
    %138 = arith.index_cast %c4_i32 : i32 to index
    %c0_53 = arith.constant 0 : index
    %c0_54 = arith.constant 0 : index
    %c0_55 = arith.constant 0 : index
    %139 = vector.load %arg1[%138, %c0_53, %c0_54, %c0_55] : memref<6x8x8x8xbf16, #tpu.memory_space<vmem>>, vector<1x8x8x8xbf16>
    %140 = vector.shape_cast %139 : vector<1x8x8x8xbf16> to vector<8x8x8xbf16>
    %141 = vector.shape_cast %140 : vector<8x8x8xbf16> to vector<64x8xbf16>
    %c0_56 = arith.constant 0 : index
    %c0_57 = arith.constant 0 : index
    %142 = vector.load %arg15[%c0_56, %c0_57] : memref<64x16xf32, #tpu.memory_space<vmem>>, vector<64x16xf32>
    %cst_58 = arith.constant dense<0.000000e+00> : vector<64x128xf32>
    %143 = tpu.matmul %141, %0, %cst_58 {dimension_numbers = #tpu.dot_dimension_numbers<[1], [0], [0], [1], [0, 0, 1, 1], [], []>} : vector<64x8xbf16>, vector<8x128xbf16>, vector<64x128xf32> -> vector<64x128xf32>
    %144 = vector.broadcast %2 : vector<1x128xf32> to vector<64x128xf32>
    %145 = arith.addf %143, %144 : vector<64x128xf32>
    %146 = arith.truncf %142 : vector<64x16xf32> to vector<64x16xbf16>
    %cst_59 = arith.constant dense<0.000000e+00> : vector<64x128xf32>
    %147 = tpu.matmul %146, %1, %cst_59 {dimension_numbers = #tpu.dot_dimension_numbers<[1], [0], [0], [1], [0, 0, 1, 1], [], []>} : vector<64x16xbf16>, vector<16x128xbf16>, vector<64x128xf32> -> vector<64x128xf32>
    %148 = vector.extract_strided_slice %145 {offsets = [0, 0], sizes = [64, 32], strides = [1, 1]} : vector<64x128xf32> to vector<64x32xf32>
    %149 = vector.extract_strided_slice %147 {offsets = [0, 0], sizes = [64, 32], strides = [1, 1]} : vector<64x128xf32> to vector<64x32xf32>
    %150 = arith.addf %148, %149 : vector<64x32xf32>
    %151 = arith.negf %150 : vector<64x32xf32>
    %152 = math.exp %151 : vector<64x32xf32>
    %cst_60 = arith.constant 1.000000e+00 : f32
    %153 = vector.broadcast %cst_60 : f32 to vector<64x32xf32>
    %154 = arith.addf %153, %152 : vector<64x32xf32>
    %155 = arith.divf %153, %154 : vector<64x32xf32>
    %156 = vector.extract_strided_slice %155 {offsets = [0, 0], sizes = [64, 16], strides = [1, 1]} : vector<64x32xf32> to vector<64x16xf32>
    %157 = vector.extract_strided_slice %155 {offsets = [0, 16], sizes = [64, 16], strides = [1, 1]} : vector<64x32xf32> to vector<64x16xf32>
    %158 = vector.extract_strided_slice %145 {offsets = [0, 32], sizes = [64, 16], strides = [1, 1]} : vector<64x128xf32> to vector<64x16xf32>
    %159 = vector.extract_strided_slice %147 {offsets = [0, 32], sizes = [64, 16], strides = [1, 1]} : vector<64x128xf32> to vector<64x16xf32>
    %160 = vector.broadcast %3 : vector<1x16xf32> to vector<64x16xf32>
    %161 = arith.addf %159, %160 : vector<64x16xf32>
    %162 = arith.mulf %156, %161 : vector<64x16xf32>
    %163 = arith.addf %158, %162 : vector<64x16xf32>
    %164 = math.tanh %163 : vector<64x16xf32>
    %cst_61 = arith.constant 1.000000e+00 : f32
    %165 = vector.broadcast %cst_61 : f32 to vector<64x16xf32>
    %166 = arith.subf %165, %157 : vector<64x16xf32>
    %167 = arith.mulf %166, %164 : vector<64x16xf32>
    %168 = arith.mulf %157, %142 : vector<64x16xf32>
    %169 = arith.addf %167, %168 : vector<64x16xf32>
    %c0_62 = arith.constant 0 : index
    %c0_63 = arith.constant 0 : index
    %170 = vector.load %arg15[%c0_62, %c0_63] : memref<64x16xf32, #tpu.memory_space<vmem>>, vector<64x16xf32>
    tpu.vector_store %arg15[%c0_62, %c0_63], %169 {strides = array<i32>} : memref<64x16xf32, #tpu.memory_space<vmem>>, vector<64x16xf32>,
    %c5_i32 = arith.constant 5 : i32
    %171 = arith.index_cast %c5_i32 : i32 to index
    %c0_64 = arith.constant 0 : index
    %c0_65 = arith.constant 0 : index
    %c0_66 = arith.constant 0 : index
    %172 = vector.load %arg1[%171, %c0_64, %c0_65, %c0_66] : memref<6x8x8x8xbf16, #tpu.memory_space<vmem>>, vector<1x8x8x8xbf16>
    %173 = vector.shape_cast %172 : vector<1x8x8x8xbf16> to vector<8x8x8xbf16>
    %174 = vector.shape_cast %173 : vector<8x8x8xbf16> to vector<64x8xbf16>
    %c0_67 = arith.constant 0 : index
    %c0_68 = arith.constant 0 : index
    %175 = vector.load %arg15[%c0_67, %c0_68] : memref<64x16xf32, #tpu.memory_space<vmem>>, vector<64x16xf32>
    %cst_69 = arith.constant dense<0.000000e+00> : vector<64x128xf32>
    %176 = tpu.matmul %174, %0, %cst_69 {dimension_numbers = #tpu.dot_dimension_numbers<[1], [0], [0], [1], [0, 0, 1, 1], [], []>} : vector<64x8xbf16>, vector<8x128xbf16>, vector<64x128xf32> -> vector<64x128xf32>
    %177 = vector.broadcast %2 : vector<1x128xf32> to vector<64x128xf32>
    %178 = arith.addf %176, %177 : vector<64x128xf32>
    %179 = arith.truncf %175 : vector<64x16xf32> to vector<64x16xbf16>
    %cst_70 = arith.constant dense<0.000000e+00> : vector<64x128xf32>
    %180 = tpu.matmul %179, %1, %cst_70 {dimension_numbers = #tpu.dot_dimension_numbers<[1], [0], [0], [1], [0, 0, 1, 1], [], []>} : vector<64x16xbf16>, vector<16x128xbf16>, vector<64x128xf32> -> vector<64x128xf32>
    %181 = vector.extract_strided_slice %178 {offsets = [0, 0], sizes = [64, 32], strides = [1, 1]} : vector<64x128xf32> to vector<64x32xf32>
    %182 = vector.extract_strided_slice %180 {offsets = [0, 0], sizes = [64, 32], strides = [1, 1]} : vector<64x128xf32> to vector<64x32xf32>
    %183 = arith.addf %181, %182 : vector<64x32xf32>
    %184 = arith.negf %183 : vector<64x32xf32>
    %185 = math.exp %184 : vector<64x32xf32>
    %cst_71 = arith.constant 1.000000e+00 : f32
    %186 = vector.broadcast %cst_71 : f32 to vector<64x32xf32>
    %187 = arith.addf %186, %185 : vector<64x32xf32>
    %188 = arith.divf %186, %187 : vector<64x32xf32>
    %189 = vector.extract_strided_slice %188 {offsets = [0, 0], sizes = [64, 16], strides = [1, 1]} : vector<64x32xf32> to vector<64x16xf32>
    %190 = vector.extract_strided_slice %188 {offsets = [0, 16], sizes = [64, 16], strides = [1, 1]} : vector<64x32xf32> to vector<64x16xf32>
    %191 = vector.extract_strided_slice %178 {offsets = [0, 32], sizes = [64, 16], strides = [1, 1]} : vector<64x128xf32> to vector<64x16xf32>
    %192 = vector.extract_strided_slice %180 {offsets = [0, 32], sizes = [64, 16], strides = [1, 1]} : vector<64x128xf32> to vector<64x16xf32>
    %193 = vector.broadcast %3 : vector<1x16xf32> to vector<64x16xf32>
    %194 = arith.addf %192, %193 : vector<64x16xf32>
    %195 = arith.mulf %189, %194 : vector<64x16xf32>
    %196 = arith.addf %191, %195 : vector<64x16xf32>
    %197 = math.tanh %196 : vector<64x16xf32>
    %cst_72 = arith.constant 1.000000e+00 : f32
    %198 = vector.broadcast %cst_72 : f32 to vector<64x16xf32>
    %199 = arith.subf %198, %190 : vector<64x16xf32>
    %200 = arith.mulf %199, %197 : vector<64x16xf32>
    %201 = arith.mulf %190, %175 : vector<64x16xf32>
    %202 = arith.addf %200, %201 : vector<64x16xf32>
    %c0_73 = arith.constant 0 : index
    %c0_74 = arith.constant 0 : index
    %203 = vector.load %arg15[%c0_73, %c0_74] : memref<64x16xf32, #tpu.memory_space<vmem>>, vector<64x16xf32>
    tpu.vector_store %arg15[%c0_73, %c0_74], %202 {strides = array<i32>} : memref<64x16xf32, #tpu.memory_space<vmem>>, vector<64x16xf32>,
    %c6_i32 = arith.constant 6 : i32
    %c0_75 = arith.constant 0 : index
    %c0_76 = arith.constant 0 : index
    %c0_77 = arith.constant 0 : index
    %204 = vector.load %arg2[%c0_75, %c0_76, %c0_77] : memref<8x8x32xbf16, #tpu.memory_space<vmem>>, vector<8x8x32xbf16>
    %205 = vector.shape_cast %204 : vector<8x8x32xbf16> to vector<64x32xbf16>
    %c0_78 = arith.constant 0 : index
    %c0_79 = arith.constant 0 : index
    %206 = vector.load %arg15[%c0_78, %c0_79] : memref<64x16xf32, #tpu.memory_space<vmem>>, vector<64x16xf32>
    %207 = arith.truncf %206 : vector<64x16xf32> to vector<64x16xbf16>
    %c0_80 = arith.constant 0 : index
    %c0_81 = arith.constant 0 : index
    %208 = vector.load %arg7[%c0_80, %c0_81] : memref<32x128xbf16, #tpu.memory_space<vmem>>, vector<32x128xbf16>
    %cst_82 = arith.constant dense<0.000000e+00> : vector<64x128xf32>
    %209 = tpu.matmul %205, %208, %cst_82 {dimension_numbers = #tpu.dot_dimension_numbers<[1], [0], [0], [1], [0, 0, 1, 1], [], []>} : vector<64x32xbf16>, vector<32x128xbf16>, vector<64x128xf32> -> vector<64x128xf32>
    %c0_83 = arith.constant 0 : index
    %c0_84 = arith.constant 0 : index
    %210 = vector.load %arg8[%c0_83, %c0_84] : memref<16x128xbf16, #tpu.memory_space<vmem>>, vector<16x128xbf16>
    %cst_85 = arith.constant dense<0.000000e+00> : vector<64x128xf32>
    %211 = tpu.matmul %207, %210, %cst_85 {dimension_numbers = #tpu.dot_dimension_numbers<[1], [0], [0], [1], [0, 0, 1, 1], [], []>} : vector<64x16xbf16>, vector<16x128xbf16>, vector<64x128xf32> -> vector<64x128xf32>
    %212 = arith.addf %209, %211 : vector<64x128xf32>
    %c0_86 = arith.constant 0 : index
    %c0_87 = arith.constant 0 : index
    %213 = vector.load %arg10[%c0_86, %c0_87] : memref<1x128xf32, #tpu.memory_space<vmem>>, vector<1x128xf32>
    %214 = vector.broadcast %213 : vector<1x128xf32> to vector<64x128xf32>
    %215 = arith.addf %212, %214 : vector<64x128xf32>
    %216 = vector.shape_cast %215 : vector<64x128xf32> to vector<8x8x128xf32>
    %217 = arith.truncf %216 : vector<8x8x128xf32> to vector<8x8x128xbf16>
    %c0_88 = arith.constant 0 : index
    %c0_89 = arith.constant 0 : index
    %c0_90 = arith.constant 0 : index
    %218 = vector.load %arg16[%c0_88, %c0_89, %c0_90] : memref<8x8x128xbf16, #tpu.memory_space<vmem>>, vector<8x8x128xbf16>
    tpu.vector_store %arg16[%c0_88, %c0_89, %c0_90], %217 {strides = array<i32>} : memref<8x8x128xbf16, #tpu.memory_space<vmem>>, vector<8x8x128xbf16>,
    %c0_91 = arith.constant 0 : index
    %c0_92 = arith.constant 0 : index
    %219 = vector.load %arg9[%c0_91, %c0_92] : memref<32x128xbf16, #tpu.memory_space<vmem>>, vector<32x128xbf16>
    %c0_93 = arith.constant 0 : index
    %c0_94 = arith.constant 0 : index
    %220 = vector.load %arg11[%c0_93, %c0_94] : memref<1x32xf32, #tpu.memory_space<vmem>>, vector<1x32xf32>
    %c0_95 = arith.constant 0 : index
    %c0_96 = arith.constant 0 : index
    %221 = vector.load %arg12[%c0_95, %c0_96] : memref<32x128xbf16, #tpu.memory_space<vmem>>, vector<32x128xbf16>
    %c0_97 = arith.constant 0 : index
    %c0_98 = arith.constant 0 : index
    %222 = vector.load %arg13[%c0_97, %c0_98] : memref<1x128xf32, #tpu.memory_space<vmem>>, vector<1x128xf32>
    %cst_99 = arith.constant 0.000000e+00 : f32
    %223 = vector.broadcast %cst_99 : f32 to vector<8x32xf32>
    %c0_100 = arith.constant 0 : index
    %c0_101 = arith.constant 0 : index
    %224 = vector.load %arg17[%c0_100, %c0_101] : memref<8x32xf32, #tpu.memory_space<vmem>>, vector<8x32xf32>
    tpu.vector_store %arg17[%c0_100, %c0_101], %223 {strides = array<i32>} : memref<8x32xf32, #tpu.memory_space<vmem>>, vector<8x32xf32>,
    %c0_i32_102 = arith.constant 0 : i32
    %225 = arith.index_cast %c0_i32_102 : i32 to index
    %c0_103 = arith.constant 0 : index
    %c0_104 = arith.constant 0 : index
    %226 = vector.load %arg16[%225, %c0_103, %c0_104] : memref<8x8x128xbf16, #tpu.memory_space<vmem>>, vector<1x8x128xbf16>
    %227 = vector.shape_cast %226 : vector<1x8x128xbf16> to vector<8x128xbf16>
    %228 = arith.extf %227 : vector<8x128xbf16> to vector<8x128xf32>
    %c0_105 = arith.constant 0 : index
    %c0_106 = arith.constant 0 : index
    %229 = vector.load %arg17[%c0_105, %c0_106] : memref<8x32xf32, #tpu.memory_space<vmem>>, vector<8x32xf32>
    %230 = arith.truncf %229 : vector<8x32xf32> to vector<8x32xbf16>
    %cst_107 = arith.constant dense<0.000000e+00> : vector<8x128xf32>
    %231 = tpu.matmul %230, %219, %cst_107 {dimension_numbers = #tpu.dot_dimension_numbers<[1], [0], [0], [1], [0, 0, 1, 1], [], []>} : vector<8x32xbf16>, vector<32x128xbf16>, vector<8x128xf32> -> vector<8x128xf32>
    %232 = vector.extract_strided_slice %228 {offsets = [0, 0], sizes = [8, 64], strides = [1, 1]} : vector<8x128xf32> to vector<8x64xf32>
    %233 = vector.extract_strided_slice %231 {offsets = [0, 0], sizes = [8, 64], strides = [1, 1]} : vector<8x128xf32> to vector<8x64xf32>
    %234 = arith.addf %232, %233 : vector<8x64xf32>
    %235 = arith.negf %234 : vector<8x64xf32>
    %236 = math.exp %235 : vector<8x64xf32>
    %cst_108 = arith.constant 1.000000e+00 : f32
    %237 = vector.broadcast %cst_108 : f32 to vector<8x64xf32>
    %238 = arith.addf %237, %236 : vector<8x64xf32>
    %239 = arith.divf %237, %238 : vector<8x64xf32>
    %240 = vector.extract_strided_slice %239 {offsets = [0, 0], sizes = [8, 32], strides = [1, 1]} : vector<8x64xf32> to vector<8x32xf32>
    %241 = vector.extract_strided_slice %239 {offsets = [0, 32], sizes = [8, 32], strides = [1, 1]} : vector<8x64xf32> to vector<8x32xf32>
    %242 = vector.extract_strided_slice %228 {offsets = [0, 64], sizes = [8, 32], strides = [1, 1]} : vector<8x128xf32> to vector<8x32xf32>
    %243 = vector.extract_strided_slice %231 {offsets = [0, 64], sizes = [8, 32], strides = [1, 1]} : vector<8x128xf32> to vector<8x32xf32>
    %244 = vector.broadcast %220 : vector<1x32xf32> to vector<8x32xf32>
    %245 = arith.addf %243, %244 : vector<8x32xf32>
    %246 = arith.mulf %240, %245 : vector<8x32xf32>
    %247 = arith.addf %242, %246 : vector<8x32xf32>
    %248 = math.tanh %247 : vector<8x32xf32>
    %cst_109 = arith.constant 1.000000e+00 : f32
    %249 = vector.broadcast %cst_109 : f32 to vector<8x32xf32>
    %250 = arith.subf %249, %241 : vector<8x32xf32>
    %251 = arith.mulf %250, %248 : vector<8x32xf32>
    %252 = arith.mulf %241, %229 : vector<8x32xf32>
    %253 = arith.addf %251, %252 : vector<8x32xf32>
    %c0_110 = arith.constant 0 : index
    %c0_111 = arith.constant 0 : index
    %254 = vector.load %arg17[%c0_110, %c0_111] : memref<8x32xf32, #tpu.memory_space<vmem>>, vector<8x32xf32>
    tpu.vector_store %arg17[%c0_110, %c0_111], %253 {strides = array<i32>} : memref<8x32xf32, #tpu.memory_space<vmem>>, vector<8x32xf32>,
    %255 = arith.truncf %253 : vector<8x32xf32> to vector<8x32xbf16>
    %cst_112 = arith.constant dense<0.000000e+00> : vector<8x128xf32>
    %256 = tpu.matmul %255, %221, %cst_112 {dimension_numbers = #tpu.dot_dimension_numbers<[1], [0], [0], [1], [0, 0, 1, 1], [], []>} : vector<8x32xbf16>, vector<32x128xbf16>, vector<8x128xf32> -> vector<8x128xf32>
    %257 = vector.broadcast %222 : vector<1x128xf32> to vector<8x128xf32>
    %258 = arith.addf %256, %257 : vector<8x128xf32>
    %259 = arith.index_cast %c0_i32_102 : i32 to index
    %c0_113 = arith.constant 0 : index
    %c0_114 = arith.constant 0 : index
    %260 = vector.load %arg14[%259, %c0_113, %c0_114] : memref<8x8x128xf32, #tpu.memory_space<vmem>>, vector<1x8x128xf32>
    %261 = vector.shape_cast %260 : vector<1x8x128xf32> to vector<8x128xf32>
    %262 = vector.shape_cast %258 : vector<8x128xf32> to vector<1x8x128xf32>
    tpu.vector_store %arg14[%259, %c0_113, %c0_114], %262 {strides = array<i32>} : memref<8x8x128xf32, #tpu.memory_space<vmem>>, vector<1x8x128xf32>,
    %c1_i32_115 = arith.constant 1 : i32
    %263 = arith.index_cast %c1_i32_115 : i32 to index
    %c0_116 = arith.constant 0 : index
    %c0_117 = arith.constant 0 : index
    %264 = vector.load %arg16[%263, %c0_116, %c0_117] : memref<8x8x128xbf16, #tpu.memory_space<vmem>>, vector<1x8x128xbf16>
    %265 = vector.shape_cast %264 : vector<1x8x128xbf16> to vector<8x128xbf16>
    %266 = arith.extf %265 : vector<8x128xbf16> to vector<8x128xf32>
    %c0_118 = arith.constant 0 : index
    %c0_119 = arith.constant 0 : index
    %267 = vector.load %arg17[%c0_118, %c0_119] : memref<8x32xf32, #tpu.memory_space<vmem>>, vector<8x32xf32>
    %268 = arith.truncf %267 : vector<8x32xf32> to vector<8x32xbf16>
    %cst_120 = arith.constant dense<0.000000e+00> : vector<8x128xf32>
    %269 = tpu.matmul %268, %219, %cst_120 {dimension_numbers = #tpu.dot_dimension_numbers<[1], [0], [0], [1], [0, 0, 1, 1], [], []>} : vector<8x32xbf16>, vector<32x128xbf16>, vector<8x128xf32> -> vector<8x128xf32>
    %270 = vector.extract_strided_slice %266 {offsets = [0, 0], sizes = [8, 64], strides = [1, 1]} : vector<8x128xf32> to vector<8x64xf32>
    %271 = vector.extract_strided_slice %269 {offsets = [0, 0], sizes = [8, 64], strides = [1, 1]} : vector<8x128xf32> to vector<8x64xf32>
    %272 = arith.addf %270, %271 : vector<8x64xf32>
    %273 = arith.negf %272 : vector<8x64xf32>
    %274 = math.exp %273 : vector<8x64xf32>
    %cst_121 = arith.constant 1.000000e+00 : f32
    %275 = vector.broadcast %cst_121 : f32 to vector<8x64xf32>
    %276 = arith.addf %275, %274 : vector<8x64xf32>
    %277 = arith.divf %275, %276 : vector<8x64xf32>
    %278 = vector.extract_strided_slice %277 {offsets = [0, 0], sizes = [8, 32], strides = [1, 1]} : vector<8x64xf32> to vector<8x32xf32>
    %279 = vector.extract_strided_slice %277 {offsets = [0, 32], sizes = [8, 32], strides = [1, 1]} : vector<8x64xf32> to vector<8x32xf32>
    %280 = vector.extract_strided_slice %266 {offsets = [0, 64], sizes = [8, 32], strides = [1, 1]} : vector<8x128xf32> to vector<8x32xf32>
    %281 = vector.extract_strided_slice %269 {offsets = [0, 64], sizes = [8, 32], strides = [1, 1]} : vector<8x128xf32> to vector<8x32xf32>
    %282 = vector.broadcast %220 : vector<1x32xf32> to vector<8x32xf32>
    %283 = arith.addf %281, %282 : vector<8x32xf32>
    %284 = arith.mulf %278, %283 : vector<8x32xf32>
    %285 = arith.addf %280, %284 : vector<8x32xf32>
    %286 = math.tanh %285 : vector<8x32xf32>
    %cst_122 = arith.constant 1.000000e+00 : f32
    %287 = vector.broadcast %cst_122 : f32 to vector<8x32xf32>
    %288 = arith.subf %287, %279 : vector<8x32xf32>
    %289 = arith.mulf %288, %286 : vector<8x32xf32>
    %290 = arith.mulf %279, %267 : vector<8x32xf32>
    %291 = arith.addf %289, %290 : vector<8x32xf32>
    %c0_123 = arith.constant 0 : index
    %c0_124 = arith.constant 0 : index
    %292 = vector.load %arg17[%c0_123, %c0_124] : memref<8x32xf32, #tpu.memory_space<vmem>>, vector<8x32xf32>
    tpu.vector_store %arg17[%c0_123, %c0_124], %291 {strides = array<i32>} : memref<8x32xf32, #tpu.memory_space<vmem>>, vector<8x32xf32>,
    %293 = arith.truncf %291 : vector<8x32xf32> to vector<8x32xbf16>
    %cst_125 = arith.constant dense<0.000000e+00> : vector<8x128xf32>
    %294 = tpu.matmul %293, %221, %cst_125 {dimension_numbers = #tpu.dot_dimension_numbers<[1], [0], [0], [1], [0, 0, 1, 1], [], []>} : vector<8x32xbf16>, vector<32x128xbf16>, vector<8x128xf32> -> vector<8x128xf32>
    %295 = vector.broadcast %222 : vector<1x128xf32> to vector<8x128xf32>
    %296 = arith.addf %294, %295 : vector<8x128xf32>
    %297 = arith.index_cast %c1_i32_115 : i32 to index
    %c0_126 = arith.constant 0 : index
    %c0_127 = arith.constant 0 : index
    %298 = vector.load %arg14[%297, %c0_126, %c0_127] : memref<8x8x128xf32, #tpu.memory_space<vmem>>, vector<1x8x128xf32>
    %299 = vector.shape_cast %298 : vector<1x8x128xf32> to vector<8x128xf32>
    %300 = vector.shape_cast %296 : vector<8x128xf32> to vector<1x8x128xf32>
    tpu.vector_store %arg14[%297, %c0_126, %c0_127], %300 {strides = array<i32>} : memref<8x8x128xf32, #tpu.memory_space<vmem>>, vector<1x8x128xf32>,
    %c2_i32_128 = arith.constant 2 : i32
    %301 = arith.index_cast %c2_i32_128 : i32 to index
    %c0_129 = arith.constant 0 : index
    %c0_130 = arith.constant 0 : index
    %302 = vector.load %arg16[%301, %c0_129, %c0_130] : memref<8x8x128xbf16, #tpu.memory_space<vmem>>, vector<1x8x128xbf16>
    %303 = vector.shape_cast %302 : vector<1x8x128xbf16> to vector<8x128xbf16>
    %304 = arith.extf %303 : vector<8x128xbf16> to vector<8x128xf32>
    %c0_131 = arith.constant 0 : index
    %c0_132 = arith.constant 0 : index
    %305 = vector.load %arg17[%c0_131, %c0_132] : memref<8x32xf32, #tpu.memory_space<vmem>>, vector<8x32xf32>
    %306 = arith.truncf %305 : vector<8x32xf32> to vector<8x32xbf16>
    %cst_133 = arith.constant dense<0.000000e+00> : vector<8x128xf32>
    %307 = tpu.matmul %306, %219, %cst_133 {dimension_numbers = #tpu.dot_dimension_numbers<[1], [0], [0], [1], [0, 0, 1, 1], [], []>} : vector<8x32xbf16>, vector<32x128xbf16>, vector<8x128xf32> -> vector<8x128xf32>
    %308 = vector.extract_strided_slice %304 {offsets = [0, 0], sizes = [8, 64], strides = [1, 1]} : vector<8x128xf32> to vector<8x64xf32>
    %309 = vector.extract_strided_slice %307 {offsets = [0, 0], sizes = [8, 64], strides = [1, 1]} : vector<8x128xf32> to vector<8x64xf32>
    %310 = arith.addf %308, %309 : vector<8x64xf32>
    %311 = arith.negf %310 : vector<8x64xf32>
    %312 = math.exp %311 : vector<8x64xf32>
    %cst_134 = arith.constant 1.000000e+00 : f32
    %313 = vector.broadcast %cst_134 : f32 to vector<8x64xf32>
    %314 = arith.addf %313, %312 : vector<8x64xf32>
    %315 = arith.divf %313, %314 : vector<8x64xf32>
    %316 = vector.extract_strided_slice %315 {offsets = [0, 0], sizes = [8, 32], strides = [1, 1]} : vector<8x64xf32> to vector<8x32xf32>
    %317 = vector.extract_strided_slice %315 {offsets = [0, 32], sizes = [8, 32], strides = [1, 1]} : vector<8x64xf32> to vector<8x32xf32>
    %318 = vector.extract_strided_slice %304 {offsets = [0, 64], sizes = [8, 32], strides = [1, 1]} : vector<8x128xf32> to vector<8x32xf32>
    %319 = vector.extract_strided_slice %307 {offsets = [0, 64], sizes = [8, 32], strides = [1, 1]} : vector<8x128xf32> to vector<8x32xf32>
    %320 = vector.broadcast %220 : vector<1x32xf32> to vector<8x32xf32>
    %321 = arith.addf %319, %320 : vector<8x32xf32>
    %322 = arith.mulf %316, %321 : vector<8x32xf32>
    %323 = arith.addf %318, %322 : vector<8x32xf32>
    %324 = math.tanh %323 : vector<8x32xf32>
    %cst_135 = arith.constant 1.000000e+00 : f32
    %325 = vector.broadcast %cst_135 : f32 to vector<8x32xf32>
    %326 = arith.subf %325, %317 : vector<8x32xf32>
    %327 = arith.mulf %326, %324 : vector<8x32xf32>
    %328 = arith.mulf %317, %305 : vector<8x32xf32>
    %329 = arith.addf %327, %328 : vector<8x32xf32>
    %c0_136 = arith.constant 0 : index
    %c0_137 = arith.constant 0 : index
    %330 = vector.load %arg17[%c0_136, %c0_137] : memref<8x32xf32, #tpu.memory_space<vmem>>, vector<8x32xf32>
    tpu.vector_store %arg17[%c0_136, %c0_137], %329 {strides = array<i32>} : memref<8x32xf32, #tpu.memory_space<vmem>>, vector<8x32xf32>,
    %331 = arith.truncf %329 : vector<8x32xf32> to vector<8x32xbf16>
    %cst_138 = arith.constant dense<0.000000e+00> : vector<8x128xf32>
    %332 = tpu.matmul %331, %221, %cst_138 {dimension_numbers = #tpu.dot_dimension_numbers<[1], [0], [0], [1], [0, 0, 1, 1], [], []>} : vector<8x32xbf16>, vector<32x128xbf16>, vector<8x128xf32> -> vector<8x128xf32>
    %333 = vector.broadcast %222 : vector<1x128xf32> to vector<8x128xf32>
    %334 = arith.addf %332, %333 : vector<8x128xf32>
    %335 = arith.index_cast %c2_i32_128 : i32 to index
    %c0_139 = arith.constant 0 : index
    %c0_140 = arith.constant 0 : index
    %336 = vector.load %arg14[%335, %c0_139, %c0_140] : memref<8x8x128xf32, #tpu.memory_space<vmem>>, vector<1x8x128xf32>
    %337 = vector.shape_cast %336 : vector<1x8x128xf32> to vector<8x128xf32>
    %338 = vector.shape_cast %334 : vector<8x128xf32> to vector<1x8x128xf32>
    tpu.vector_store %arg14[%335, %c0_139, %c0_140], %338 {strides = array<i32>} : memref<8x8x128xf32, #tpu.memory_space<vmem>>, vector<1x8x128xf32>,
    %c3_i32_141 = arith.constant 3 : i32
    %339 = arith.index_cast %c3_i32_141 : i32 to index
    %c0_142 = arith.constant 0 : index
    %c0_143 = arith.constant 0 : index
    %340 = vector.load %arg16[%339, %c0_142, %c0_143] : memref<8x8x128xbf16, #tpu.memory_space<vmem>>, vector<1x8x128xbf16>
    %341 = vector.shape_cast %340 : vector<1x8x128xbf16> to vector<8x128xbf16>
    %342 = arith.extf %341 : vector<8x128xbf16> to vector<8x128xf32>
    %c0_144 = arith.constant 0 : index
    %c0_145 = arith.constant 0 : index
    %343 = vector.load %arg17[%c0_144, %c0_145] : memref<8x32xf32, #tpu.memory_space<vmem>>, vector<8x32xf32>
    %344 = arith.truncf %343 : vector<8x32xf32> to vector<8x32xbf16>
    %cst_146 = arith.constant dense<0.000000e+00> : vector<8x128xf32>
    %345 = tpu.matmul %344, %219, %cst_146 {dimension_numbers = #tpu.dot_dimension_numbers<[1], [0], [0], [1], [0, 0, 1, 1], [], []>} : vector<8x32xbf16>, vector<32x128xbf16>, vector<8x128xf32> -> vector<8x128xf32>
    %346 = vector.extract_strided_slice %342 {offsets = [0, 0], sizes = [8, 64], strides = [1, 1]} : vector<8x128xf32> to vector<8x64xf32>
    %347 = vector.extract_strided_slice %345 {offsets = [0, 0], sizes = [8, 64], strides = [1, 1]} : vector<8x128xf32> to vector<8x64xf32>
    %348 = arith.addf %346, %347 : vector<8x64xf32>
    %349 = arith.negf %348 : vector<8x64xf32>
    %350 = math.exp %349 : vector<8x64xf32>
    %cst_147 = arith.constant 1.000000e+00 : f32
    %351 = vector.broadcast %cst_147 : f32 to vector<8x64xf32>
    %352 = arith.addf %351, %350 : vector<8x64xf32>
    %353 = arith.divf %351, %352 : vector<8x64xf32>
    %354 = vector.extract_strided_slice %353 {offsets = [0, 0], sizes = [8, 32], strides = [1, 1]} : vector<8x64xf32> to vector<8x32xf32>
    %355 = vector.extract_strided_slice %353 {offsets = [0, 32], sizes = [8, 32], strides = [1, 1]} : vector<8x64xf32> to vector<8x32xf32>
    %356 = vector.extract_strided_slice %342 {offsets = [0, 64], sizes = [8, 32], strides = [1, 1]} : vector<8x128xf32> to vector<8x32xf32>
    %357 = vector.extract_strided_slice %345 {offsets = [0, 64], sizes = [8, 32], strides = [1, 1]} : vector<8x128xf32> to vector<8x32xf32>
    %358 = vector.broadcast %220 : vector<1x32xf32> to vector<8x32xf32>
    %359 = arith.addf %357, %358 : vector<8x32xf32>
    %360 = arith.mulf %354, %359 : vector<8x32xf32>
    %361 = arith.addf %356, %360 : vector<8x32xf32>
    %362 = math.tanh %361 : vector<8x32xf32>
    %cst_148 = arith.constant 1.000000e+00 : f32
    %363 = vector.broadcast %cst_148 : f32 to vector<8x32xf32>
    %364 = arith.subf %363, %355 : vector<8x32xf32>
    %365 = arith.mulf %364, %362 : vector<8x32xf32>
    %366 = arith.mulf %355, %343 : vector<8x32xf32>
    %367 = arith.addf %365, %366 : vector<8x32xf32>
    %c0_149 = arith.constant 0 : index
    %c0_150 = arith.constant 0 : index
    %368 = vector.load %arg17[%c0_149, %c0_150] : memref<8x32xf32, #tpu.memory_space<vmem>>, vector<8x32xf32>
    tpu.vector_store %arg17[%c0_149, %c0_150], %367 {strides = array<i32>} : memref<8x32xf32, #tpu.memory_space<vmem>>, vector<8x32xf32>,
    %369 = arith.truncf %367 : vector<8x32xf32> to vector<8x32xbf16>
    %cst_151 = arith.constant dense<0.000000e+00> : vector<8x128xf32>
    %370 = tpu.matmul %369, %221, %cst_151 {dimension_numbers = #tpu.dot_dimension_numbers<[1], [0], [0], [1], [0, 0, 1, 1], [], []>} : vector<8x32xbf16>, vector<32x128xbf16>, vector<8x128xf32> -> vector<8x128xf32>
    %371 = vector.broadcast %222 : vector<1x128xf32> to vector<8x128xf32>
    %372 = arith.addf %370, %371 : vector<8x128xf32>
    %373 = arith.index_cast %c3_i32_141 : i32 to index
    %c0_152 = arith.constant 0 : index
    %c0_153 = arith.constant 0 : index
    %374 = vector.load %arg14[%373, %c0_152, %c0_153] : memref<8x8x128xf32, #tpu.memory_space<vmem>>, vector<1x8x128xf32>
    %375 = vector.shape_cast %374 : vector<1x8x128xf32> to vector<8x128xf32>
    %376 = vector.shape_cast %372 : vector<8x128xf32> to vector<1x8x128xf32>
    tpu.vector_store %arg14[%373, %c0_152, %c0_153], %376 {strides = array<i32>} : memref<8x8x128xf32, #tpu.memory_space<vmem>>, vector<1x8x128xf32>,
    %c4_i32_154 = arith.constant 4 : i32
    %377 = arith.index_cast %c4_i32_154 : i32 to index
    %c0_155 = arith.constant 0 : index
    %c0_156 = arith.constant 0 : index
    %378 = vector.load %arg16[%377, %c0_155, %c0_156] : memref<8x8x128xbf16, #tpu.memory_space<vmem>>, vector<1x8x128xbf16>
    %379 = vector.shape_cast %378 : vector<1x8x128xbf16> to vector<8x128xbf16>
    %380 = arith.extf %379 : vector<8x128xbf16> to vector<8x128xf32>
    %c0_157 = arith.constant 0 : index
    %c0_158 = arith.constant 0 : index
    %381 = vector.load %arg17[%c0_157, %c0_158] : memref<8x32xf32, #tpu.memory_space<vmem>>, vector<8x32xf32>
    %382 = arith.truncf %381 : vector<8x32xf32> to vector<8x32xbf16>
    %cst_159 = arith.constant dense<0.000000e+00> : vector<8x128xf32>
    %383 = tpu.matmul %382, %219, %cst_159 {dimension_numbers = #tpu.dot_dimension_numbers<[1], [0], [0], [1], [0, 0, 1, 1], [], []>} : vector<8x32xbf16>, vector<32x128xbf16>, vector<8x128xf32> -> vector<8x128xf32>
    %384 = vector.extract_strided_slice %380 {offsets = [0, 0], sizes = [8, 64], strides = [1, 1]} : vector<8x128xf32> to vector<8x64xf32>
    %385 = vector.extract_strided_slice %383 {offsets = [0, 0], sizes = [8, 64], strides = [1, 1]} : vector<8x128xf32> to vector<8x64xf32>
    %386 = arith.addf %384, %385 : vector<8x64xf32>
    %387 = arith.negf %386 : vector<8x64xf32>
    %388 = math.exp %387 : vector<8x64xf32>
    %cst_160 = arith.constant 1.000000e+00 : f32
    %389 = vector.broadcast %cst_160 : f32 to vector<8x64xf32>
    %390 = arith.addf %389, %388 : vector<8x64xf32>
    %391 = arith.divf %389, %390 : vector<8x64xf32>
    %392 = vector.extract_strided_slice %391 {offsets = [0, 0], sizes = [8, 32], strides = [1, 1]} : vector<8x64xf32> to vector<8x32xf32>
    %393 = vector.extract_strided_slice %391 {offsets = [0, 32], sizes = [8, 32], strides = [1, 1]} : vector<8x64xf32> to vector<8x32xf32>
    %394 = vector.extract_strided_slice %380 {offsets = [0, 64], sizes = [8, 32], strides = [1, 1]} : vector<8x128xf32> to vector<8x32xf32>
    %395 = vector.extract_strided_slice %383 {offsets = [0, 64], sizes = [8, 32], strides = [1, 1]} : vector<8x128xf32> to vector<8x32xf32>
    %396 = vector.broadcast %220 : vector<1x32xf32> to vector<8x32xf32>
    %397 = arith.addf %395, %396 : vector<8x32xf32>
    %398 = arith.mulf %392, %397 : vector<8x32xf32>
    %399 = arith.addf %394, %398 : vector<8x32xf32>
    %400 = math.tanh %399 : vector<8x32xf32>
    %cst_161 = arith.constant 1.000000e+00 : f32
    %401 = vector.broadcast %cst_161 : f32 to vector<8x32xf32>
    %402 = arith.subf %401, %393 : vector<8x32xf32>
    %403 = arith.mulf %402, %400 : vector<8x32xf32>
    %404 = arith.mulf %393, %381 : vector<8x32xf32>
    %405 = arith.addf %403, %404 : vector<8x32xf32>
    %c0_162 = arith.constant 0 : index
    %c0_163 = arith.constant 0 : index
    %406 = vector.load %arg17[%c0_162, %c0_163] : memref<8x32xf32, #tpu.memory_space<vmem>>, vector<8x32xf32>
    tpu.vector_store %arg17[%c0_162, %c0_163], %405 {strides = array<i32>} : memref<8x32xf32, #tpu.memory_space<vmem>>, vector<8x32xf32>,
    %407 = arith.truncf %405 : vector<8x32xf32> to vector<8x32xbf16>
    %cst_164 = arith.constant dense<0.000000e+00> : vector<8x128xf32>
    %408 = tpu.matmul %407, %221, %cst_164 {dimension_numbers = #tpu.dot_dimension_numbers<[1], [0], [0], [1], [0, 0, 1, 1], [], []>} : vector<8x32xbf16>, vector<32x128xbf16>, vector<8x128xf32> -> vector<8x128xf32>
    %409 = vector.broadcast %222 : vector<1x128xf32> to vector<8x128xf32>
    %410 = arith.addf %408, %409 : vector<8x128xf32>
    %411 = arith.index_cast %c4_i32_154 : i32 to index
    %c0_165 = arith.constant 0 : index
    %c0_166 = arith.constant 0 : index
    %412 = vector.load %arg14[%411, %c0_165, %c0_166] : memref<8x8x128xf32, #tpu.memory_space<vmem>>, vector<1x8x128xf32>
    %413 = vector.shape_cast %412 : vector<1x8x128xf32> to vector<8x128xf32>
    %414 = vector.shape_cast %410 : vector<8x128xf32> to vector<1x8x128xf32>
    tpu.vector_store %arg14[%411, %c0_165, %c0_166], %414 {strides = array<i32>} : memref<8x8x128xf32, #tpu.memory_space<vmem>>, vector<1x8x128xf32>,
    %c5_i32_167 = arith.constant 5 : i32
    %415 = arith.index_cast %c5_i32_167 : i32 to index
    %c0_168 = arith.constant 0 : index
    %c0_169 = arith.constant 0 : index
    %416 = vector.load %arg16[%415, %c0_168, %c0_169] : memref<8x8x128xbf16, #tpu.memory_space<vmem>>, vector<1x8x128xbf16>
    %417 = vector.shape_cast %416 : vector<1x8x128xbf16> to vector<8x128xbf16>
    %418 = arith.extf %417 : vector<8x128xbf16> to vector<8x128xf32>
    %c0_170 = arith.constant 0 : index
    %c0_171 = arith.constant 0 : index
    %419 = vector.load %arg17[%c0_170, %c0_171] : memref<8x32xf32, #tpu.memory_space<vmem>>, vector<8x32xf32>
    %420 = arith.truncf %419 : vector<8x32xf32> to vector<8x32xbf16>
    %cst_172 = arith.constant dense<0.000000e+00> : vector<8x128xf32>
    %421 = tpu.matmul %420, %219, %cst_172 {dimension_numbers = #tpu.dot_dimension_numbers<[1], [0], [0], [1], [0, 0, 1, 1], [], []>} : vector<8x32xbf16>, vector<32x128xbf16>, vector<8x128xf32> -> vector<8x128xf32>
    %422 = vector.extract_strided_slice %418 {offsets = [0, 0], sizes = [8, 64], strides = [1, 1]} : vector<8x128xf32> to vector<8x64xf32>
    %423 = vector.extract_strided_slice %421 {offsets = [0, 0], sizes = [8, 64], strides = [1, 1]} : vector<8x128xf32> to vector<8x64xf32>
    %424 = arith.addf %422, %423 : vector<8x64xf32>
    %425 = arith.negf %424 : vector<8x64xf32>
    %426 = math.exp %425 : vector<8x64xf32>
    %cst_173 = arith.constant 1.000000e+00 : f32
    %427 = vector.broadcast %cst_173 : f32 to vector<8x64xf32>
    %428 = arith.addf %427, %426 : vector<8x64xf32>
    %429 = arith.divf %427, %428 : vector<8x64xf32>
    %430 = vector.extract_strided_slice %429 {offsets = [0, 0], sizes = [8, 32], strides = [1, 1]} : vector<8x64xf32> to vector<8x32xf32>
    %431 = vector.extract_strided_slice %429 {offsets = [0, 32], sizes = [8, 32], strides = [1, 1]} : vector<8x64xf32> to vector<8x32xf32>
    %432 = vector.extract_strided_slice %418 {offsets = [0, 64], sizes = [8, 32], strides = [1, 1]} : vector<8x128xf32> to vector<8x32xf32>
    %433 = vector.extract_strided_slice %421 {offsets = [0, 64], sizes = [8, 32], strides = [1, 1]} : vector<8x128xf32> to vector<8x32xf32>
    %434 = vector.broadcast %220 : vector<1x32xf32> to vector<8x32xf32>
    %435 = arith.addf %433, %434 : vector<8x32xf32>
    %436 = arith.mulf %430, %435 : vector<8x32xf32>
    %437 = arith.addf %432, %436 : vector<8x32xf32>
    %438 = math.tanh %437 : vector<8x32xf32>
    %cst_174 = arith.constant 1.000000e+00 : f32
    %439 = vector.broadcast %cst_174 : f32 to vector<8x32xf32>
    %440 = arith.subf %439, %431 : vector<8x32xf32>
    %441 = arith.mulf %440, %438 : vector<8x32xf32>
    %442 = arith.mulf %431, %419 : vector<8x32xf32>
    %443 = arith.addf %441, %442 : vector<8x32xf32>
    %c0_175 = arith.constant 0 : index
    %c0_176 = arith.constant 0 : index
    %444 = vector.load %arg17[%c0_175, %c0_176] : memref<8x32xf32, #tpu.memory_space<vmem>>, vector<8x32xf32>
    tpu.vector_store %arg17[%c0_175, %c0_176], %443 {strides = array<i32>} : memref<8x32xf32, #tpu.memory_space<vmem>>, vector<8x32xf32>,
    %445 = arith.truncf %443 : vector<8x32xf32> to vector<8x32xbf16>
    %cst_177 = arith.constant dense<0.000000e+00> : vector<8x128xf32>
    %446 = tpu.matmul %445, %221, %cst_177 {dimension_numbers = #tpu.dot_dimension_numbers<[1], [0], [0], [1], [0, 0, 1, 1], [], []>} : vector<8x32xbf16>, vector<32x128xbf16>, vector<8x128xf32> -> vector<8x128xf32>
    %447 = vector.broadcast %222 : vector<1x128xf32> to vector<8x128xf32>
    %448 = arith.addf %446, %447 : vector<8x128xf32>
    %449 = arith.index_cast %c5_i32_167 : i32 to index
    %c0_178 = arith.constant 0 : index
    %c0_179 = arith.constant 0 : index
    %450 = vector.load %arg14[%449, %c0_178, %c0_179] : memref<8x8x128xf32, #tpu.memory_space<vmem>>, vector<1x8x128xf32>
    %451 = vector.shape_cast %450 : vector<1x8x128xf32> to vector<8x128xf32>
    %452 = vector.shape_cast %448 : vector<8x128xf32> to vector<1x8x128xf32>
    tpu.vector_store %arg14[%449, %c0_178, %c0_179], %452 {strides = array<i32>} : memref<8x8x128xf32, #tpu.memory_space<vmem>>, vector<1x8x128xf32>,
    %c6_i32_180 = arith.constant 6 : i32
    %453 = arith.index_cast %c6_i32_180 : i32 to index
    %c0_181 = arith.constant 0 : index
    %c0_182 = arith.constant 0 : index
    %454 = vector.load %arg16[%453, %c0_181, %c0_182] : memref<8x8x128xbf16, #tpu.memory_space<vmem>>, vector<1x8x128xbf16>
    %455 = vector.shape_cast %454 : vector<1x8x128xbf16> to vector<8x128xbf16>
    %456 = arith.extf %455 : vector<8x128xbf16> to vector<8x128xf32>
    %c0_183 = arith.constant 0 : index
    %c0_184 = arith.constant 0 : index
    %457 = vector.load %arg17[%c0_183, %c0_184] : memref<8x32xf32, #tpu.memory_space<vmem>>, vector<8x32xf32>
    %458 = arith.truncf %457 : vector<8x32xf32> to vector<8x32xbf16>
    %cst_185 = arith.constant dense<0.000000e+00> : vector<8x128xf32>
    %459 = tpu.matmul %458, %219, %cst_185 {dimension_numbers = #tpu.dot_dimension_numbers<[1], [0], [0], [1], [0, 0, 1, 1], [], []>} : vector<8x32xbf16>, vector<32x128xbf16>, vector<8x128xf32> -> vector<8x128xf32>
    %460 = vector.extract_strided_slice %456 {offsets = [0, 0], sizes = [8, 64], strides = [1, 1]} : vector<8x128xf32> to vector<8x64xf32>
    %461 = vector.extract_strided_slice %459 {offsets = [0, 0], sizes = [8, 64], strides = [1, 1]} : vector<8x128xf32> to vector<8x64xf32>
    %462 = arith.addf %460, %461 : vector<8x64xf32>
    %463 = arith.negf %462 : vector<8x64xf32>
    %464 = math.exp %463 : vector<8x64xf32>
    %cst_186 = arith.constant 1.000000e+00 : f32
    %465 = vector.broadcast %cst_186 : f32 to vector<8x64xf32>
    %466 = arith.addf %465, %464 : vector<8x64xf32>
    %467 = arith.divf %465, %466 : vector<8x64xf32>
    %468 = vector.extract_strided_slice %467 {offsets = [0, 0], sizes = [8, 32], strides = [1, 1]} : vector<8x64xf32> to vector<8x32xf32>
    %469 = vector.extract_strided_slice %467 {offsets = [0, 32], sizes = [8, 32], strides = [1, 1]} : vector<8x64xf32> to vector<8x32xf32>
    %470 = vector.extract_strided_slice %456 {offsets = [0, 64], sizes = [8, 32], strides = [1, 1]} : vector<8x128xf32> to vector<8x32xf32>
    %471 = vector.extract_strided_slice %459 {offsets = [0, 64], sizes = [8, 32], strides = [1, 1]} : vector<8x128xf32> to vector<8x32xf32>
    %472 = vector.broadcast %220 : vector<1x32xf32> to vector<8x32xf32>
    %473 = arith.addf %471, %472 : vector<8x32xf32>
    %474 = arith.mulf %468, %473 : vector<8x32xf32>
    %475 = arith.addf %470, %474 : vector<8x32xf32>
    %476 = math.tanh %475 : vector<8x32xf32>
    %cst_187 = arith.constant 1.000000e+00 : f32
    %477 = vector.broadcast %cst_187 : f32 to vector<8x32xf32>
    %478 = arith.subf %477, %469 : vector<8x32xf32>
    %479 = arith.mulf %478, %476 : vector<8x32xf32>
    %480 = arith.mulf %469, %457 : vector<8x32xf32>
    %481 = arith.addf %479, %480 : vector<8x32xf32>
    %c0_188 = arith.constant 0 : index
    %c0_189 = arith.constant 0 : index
    %482 = vector.load %arg17[%c0_188, %c0_189] : memref<8x32xf32, #tpu.memory_space<vmem>>, vector<8x32xf32>
    tpu.vector_store %arg17[%c0_188, %c0_189], %481 {strides = array<i32>} : memref<8x32xf32, #tpu.memory_space<vmem>>, vector<8x32xf32>,
    %483 = arith.truncf %481 : vector<8x32xf32> to vector<8x32xbf16>
    %cst_190 = arith.constant dense<0.000000e+00> : vector<8x128xf32>
    %484 = tpu.matmul %483, %221, %cst_190 {dimension_numbers = #tpu.dot_dimension_numbers<[1], [0], [0], [1], [0, 0, 1, 1], [], []>} : vector<8x32xbf16>, vector<32x128xbf16>, vector<8x128xf32> -> vector<8x128xf32>
    %485 = vector.broadcast %222 : vector<1x128xf32> to vector<8x128xf32>
    %486 = arith.addf %484, %485 : vector<8x128xf32>
    %487 = arith.index_cast %c6_i32_180 : i32 to index
    %c0_191 = arith.constant 0 : index
    %c0_192 = arith.constant 0 : index
    %488 = vector.load %arg14[%487, %c0_191, %c0_192] : memref<8x8x128xf32, #tpu.memory_space<vmem>>, vector<1x8x128xf32>
    %489 = vector.shape_cast %488 : vector<1x8x128xf32> to vector<8x128xf32>
    %490 = vector.shape_cast %486 : vector<8x128xf32> to vector<1x8x128xf32>
    tpu.vector_store %arg14[%487, %c0_191, %c0_192], %490 {strides = array<i32>} : memref<8x8x128xf32, #tpu.memory_space<vmem>>, vector<1x8x128xf32>,
    %c7_i32 = arith.constant 7 : i32
    %491 = arith.index_cast %c7_i32 : i32 to index
    %c0_193 = arith.constant 0 : index
    %c0_194 = arith.constant 0 : index
    %492 = vector.load %arg16[%491, %c0_193, %c0_194] : memref<8x8x128xbf16, #tpu.memory_space<vmem>>, vector<1x8x128xbf16>
    %493 = vector.shape_cast %492 : vector<1x8x128xbf16> to vector<8x128xbf16>
    %494 = arith.extf %493 : vector<8x128xbf16> to vector<8x128xf32>
    %c0_195 = arith.constant 0 : index
    %c0_196 = arith.constant 0 : index
    %495 = vector.load %arg17[%c0_195, %c0_196] : memref<8x32xf32, #tpu.memory_space<vmem>>, vector<8x32xf32>
    %496 = arith.truncf %495 : vector<8x32xf32> to vector<8x32xbf16>
    %cst_197 = arith.constant dense<0.000000e+00> : vector<8x128xf32>
    %497 = tpu.matmul %496, %219, %cst_197 {dimension_numbers = #tpu.dot_dimension_numbers<[1], [0], [0], [1], [0, 0, 1, 1], [], []>} : vector<8x32xbf16>, vector<32x128xbf16>, vector<8x128xf32> -> vector<8x128xf32>
    %498 = vector.extract_strided_slice %494 {offsets = [0, 0], sizes = [8, 64], strides = [1, 1]} : vector<8x128xf32> to vector<8x64xf32>
    %499 = vector.extract_strided_slice %497 {offsets = [0, 0], sizes = [8, 64], strides = [1, 1]} : vector<8x128xf32> to vector<8x64xf32>
    %500 = arith.addf %498, %499 : vector<8x64xf32>
    %501 = arith.negf %500 : vector<8x64xf32>
    %502 = math.exp %501 : vector<8x64xf32>
    %cst_198 = arith.constant 1.000000e+00 : f32
    %503 = vector.broadcast %cst_198 : f32 to vector<8x64xf32>
    %504 = arith.addf %503, %502 : vector<8x64xf32>
    %505 = arith.divf %503, %504 : vector<8x64xf32>
    %506 = vector.extract_strided_slice %505 {offsets = [0, 0], sizes = [8, 32], strides = [1, 1]} : vector<8x64xf32> to vector<8x32xf32>
    %507 = vector.extract_strided_slice %505 {offsets = [0, 32], sizes = [8, 32], strides = [1, 1]} : vector<8x64xf32> to vector<8x32xf32>
    %508 = vector.extract_strided_slice %494 {offsets = [0, 64], sizes = [8, 32], strides = [1, 1]} : vector<8x128xf32> to vector<8x32xf32>
    %509 = vector.extract_strided_slice %497 {offsets = [0, 64], sizes = [8, 32], strides = [1, 1]} : vector<8x128xf32> to vector<8x32xf32>
    %510 = vector.broadcast %220 : vector<1x32xf32> to vector<8x32xf32>
    %511 = arith.addf %509, %510 : vector<8x32xf32>
    %512 = arith.mulf %506, %511 : vector<8x32xf32>
    %513 = arith.addf %508, %512 : vector<8x32xf32>
    %514 = math.tanh %513 : vector<8x32xf32>
    %cst_199 = arith.constant 1.000000e+00 : f32
    %515 = vector.broadcast %cst_199 : f32 to vector<8x32xf32>
    %516 = arith.subf %515, %507 : vector<8x32xf32>
    %517 = arith.mulf %516, %514 : vector<8x32xf32>
    %518 = arith.mulf %507, %495 : vector<8x32xf32>
    %519 = arith.addf %517, %518 : vector<8x32xf32>
    %c0_200 = arith.constant 0 : index
    %c0_201 = arith.constant 0 : index
    %520 = vector.load %arg17[%c0_200, %c0_201] : memref<8x32xf32, #tpu.memory_space<vmem>>, vector<8x32xf32>
    tpu.vector_store %arg17[%c0_200, %c0_201], %519 {strides = array<i32>} : memref<8x32xf32, #tpu.memory_space<vmem>>, vector<8x32xf32>,
    %521 = arith.truncf %519 : vector<8x32xf32> to vector<8x32xbf16>
    %cst_202 = arith.constant dense<0.000000e+00> : vector<8x128xf32>
    %522 = tpu.matmul %521, %221, %cst_202 {dimension_numbers = #tpu.dot_dimension_numbers<[1], [0], [0], [1], [0, 0, 1, 1], [], []>} : vector<8x32xbf16>, vector<32x128xbf16>, vector<8x128xf32> -> vector<8x128xf32>
    %523 = vector.broadcast %222 : vector<1x128xf32> to vector<8x128xf32>
    %524 = arith.addf %522, %523 : vector<8x128xf32>
    %525 = arith.index_cast %c7_i32 : i32 to index
    %c0_203 = arith.constant 0 : index
    %c0_204 = arith.constant 0 : index
    %526 = vector.load %arg14[%525, %c0_203, %c0_204] : memref<8x8x128xf32, #tpu.memory_space<vmem>>, vector<1x8x128xf32>
    %527 = vector.shape_cast %526 : vector<1x8x128xf32> to vector<8x128xf32>
    %528 = vector.shape_cast %524 : vector<8x128xf32> to vector<1x8x128xf32>
    tpu.vector_store %arg14[%525, %c0_203, %c0_204], %528 {strides = array<i32>} : memref<8x8x128xf32, #tpu.memory_space<vmem>>, vector<1x8x128xf32>,
    %c8_i32 = arith.constant 8 : i32
    return
  }
  func.func @transform_0(%arg0: i32) -> (i32, i32, i32, i32) {
    %c0_i32 = arith.constant 0 : i32
    %c0_i32_0 = arith.constant 0 : i32
    %c0_i32_1 = arith.constant 0 : i32
    %c0_i32_2 = arith.constant 0 : i32
    return %c0_i32, %c0_i32_0, %arg0, %c0_i32_1 : i32, i32, i32, i32
  }
  func.func @transform_1(%arg0: i32) -> (i32, i32, i32) {
    %c0_i32 = arith.constant 0 : i32
    %c0_i32_0 = arith.constant 0 : i32
    %c0_i32_1 = arith.constant 0 : i32
    return %c0_i32, %arg0, %c0_i32_0 : i32, i32, i32
  }
  func.func @transform_2(%arg0: i32) -> (i32, i32) {
    %c0_i32 = arith.constant 0 : i32
    %c0_i32_0 = arith.constant 0 : i32
    %c0_i32_1 = arith.constant 0 : i32
    return %c0_i32, %c0_i32_0 : i32, i32
  }
  func.func @transform_3(%arg0: i32) -> (i32, i32) {
    %c0_i32 = arith.constant 0 : i32
    %c0_i32_0 = arith.constant 0 : i32
    %c0_i32_1 = arith.constant 0 : i32
    return %c0_i32, %c0_i32_0 : i32, i32
  }
  func.func @transform_4(%arg0: i32) -> (i32, i32) {
    %c0_i32 = arith.constant 0 : i32
    %c0_i32_0 = arith.constant 0 : i32
    %c0_i32_1 = arith.constant 0 : i32
    return %c0_i32, %c0_i32_0 : i32, i32
  }
  func.func @transform_5(%arg0: i32) -> (i32, i32) {
    %c0_i32 = arith.constant 0 : i32
    %c0_i32_0 = arith.constant 0 : i32
    %c0_i32_1 = arith.constant 0 : i32
    return %c0_i32, %c0_i32_0 : i32, i32
  }
  func.func @transform_6(%arg0: i32) -> (i32, i32) {
    %c0_i32 = arith.constant 0 : i32
    %c0_i32_0 = arith.constant 0 : i32
    %c0_i32_1 = arith.constant 0 : i32
    return %c0_i32, %c0_i32_0 : i32, i32
  }
  func.func @transform_7(%arg0: i32) -> (i32, i32) {
    %c0_i32 = arith.constant 0 : i32
    %c0_i32_0 = arith.constant 0 : i32
    %c0_i32_1 = arith.constant 0 : i32
    return %c0_i32, %c0_i32_0 : i32, i32
  }
  func.func @transform_8(%arg0: i32) -> (i32, i32) {
    %c0_i32 = arith.constant 0 : i32
    %c0_i32_0 = arith.constant 0 : i32
    %c0_i32_1 = arith.constant 0 : i32
    return %c0_i32, %c0_i32_0 : i32, i32
  }
  func.func @transform_9(%arg0: i32) -> (i32, i32) {
    %c0_i32 = arith.constant 0 : i32
    %c0_i32_0 = arith.constant 0 : i32
    %c0_i32_1 = arith.constant 0 : i32
    return %c0_i32, %c0_i32_0 : i32, i32
  }
  func.func @transform_10(%arg0: i32) -> (i32, i32) {
    %c0_i32 = arith.constant 0 : i32
    %c0_i32_0 = arith.constant 0 : i32
    %c0_i32_1 = arith.constant 0 : i32
    return %c0_i32, %c0_i32_0 : i32, i32
  }
  func.func @transform_11(%arg0: i32) -> (i32, i32) {
    %c0_i32 = arith.constant 0 : i32
    %c0_i32_0 = arith.constant 0 : i32
    %c0_i32_1 = arith.constant 0 : i32
    return %c0_i32, %c0_i32_0 : i32, i32
  }
  func.func @transform_12(%arg0: i32) -> (i32, i32) {
    %c0_i32 = arith.constant 0 : i32
    %c0_i32_0 = arith.constant 0 : i32
    %c0_i32_1 = arith.constant 0 : i32
    return %c0_i32, %c0_i32_0 : i32, i32
  }
  func.func @transform_13(%arg0: i32) -> (i32, i32, i32) {
    %c0_i32 = arith.constant 0 : i32
    %c0_i32_0 = arith.constant 0 : i32
    %c0_i32_1 = arith.constant 0 : i32
    return %c0_i32, %arg0, %c0_i32_0 : i32, i32, i32
  }
}

</mosaic_0001>

<llo_original>
// kernel: pos_predictor_v2_chars.1
$region0: #{pos_predictor_v2_chars.1}
  #allocation0 [shape = 'u32[]', space=smem, size = 0x4, offset = 0x4, fixed_abs, tag = 'smem constant byte address 0x4 - core index']
  #allocation1 [shape = 'u32[144,128]{1,0:T(1,128)}', space=vmem, size = 0x12000, scoped, tag = 'internal scratch']
  #allocation2 [shape = 'f32[64,16]{1,0:T(8,128)}', space=vmem, size = 0x8000, scoped, tag = 'scratch operand']
  #allocation3 [shape = 'bf16[8,8,128]{2,1,0:T(8,128)(2,1)}', space=vmem, size = 0x4000, scoped, tag = 'scratch operand']
  #allocation4 [shape = 'f32[8,32]{1,0:T(8,128)}', space=vmem, size = 0x1000, scoped, tag = 'scratch operand']
  %s0 = inlined_call_operand.vmem [shape: bf16[6,8,8,8], index: 0, kind: input, shape index: {}]
  %s1 = inlined_call_operand.vmem [shape: bf16[8,8,32], index: 1, kind: input, shape index: {}]
  %s2 = inlined_call_operand.vmem [shape: bf16[8,128], index: 2, kind: input, shape index: {}]
  %s3 = inlined_call_operand.vmem [shape: bf16[16,128], index: 3, kind: input, shape index: {}]
  %s4 = inlined_call_operand.vmem [shape: f32[1,128], index: 4, kind: input, shape index: {}]
  %s5 = inlined_call_operand.vmem [shape: f32[1,16], index: 5, kind: input, shape index: {}]
  %s6 = inlined_call_operand.vmem [shape: bf16[32,128], index: 6, kind: input, shape index: {}]
  %s7 = inlined_call_operand.vmem [shape: bf16[16,128], index: 7, kind: input, shape index: {}]
  %s8 = inlined_call_operand.vmem [shape: bf16[32,128], index: 8, kind: input, shape index: {}]
  %s9 = inlined_call_operand.vmem [shape: f32[1,128], index: 9, kind: input, shape index: {}]
  %s10 = inlined_call_operand.vmem [shape: f32[1,32], index: 10, kind: input, shape index: {}]
  %s11 = inlined_call_operand.vmem [shape: bf16[32,128], index: 11, kind: input, shape index: {}]
  %s12 = inlined_call_operand.vmem [shape: f32[1,128], index: 12, kind: input, shape index: {}]
  %s13 = inlined_call_operand.vmem [shape: f32[8,8,128], index: 13, kind: output, shape index: {}]
  %s14 = sld [smem:[#allocation0]]
  $region62: #{pos_predictor_v2_chars.1} parent=0
    _
  %s16 = ssub.s32 1, %s14
  %s17 = scalar_select 0, %s16, %s14
  // Predicated region
  $region2: #{pos_predictor_v2_chars.1} parent=0 // pred_check
    _
  $region3: #{pos_predictor_v2_chars.1} parent=0 // pred_check_branch
    %19 = sbr.rel (0) target = $region5
  $region4: #{pos_predictor_v2_chars.1} parent=0 // pred_region
    _
  $region5: #{pos_predictor_v2_chars.1} parent=0 // pred_fallthru
    _
  // Predicated region
  $region6: #{pos_predictor_v2_chars.1} parent=0 // pred_check
    _
  $region7: #{pos_predictor_v2_chars.1} parent=0 // pred_check_branch
    %21 = sbr.rel (0) target = $region9
  $region8: #{pos_predictor_v2_chars.1} parent=0 // pred_region
    _
  $region9: #{pos_predictor_v2_chars.1} parent=0 // pred_fallthru
    _
  // Predicated region
  $region10: #{pos_predictor_v2_chars.1} parent=0 // pred_check
    _
  $region11: #{pos_predictor_v2_chars.1} parent=0 // pred_check_branch
    %23 = sbr.rel (0) target = $region13
  $region12: #{pos_predictor_v2_chars.1} parent=0 // pred_region
    _
  $region13: #{pos_predictor_v2_chars.1} parent=0 // pred_fallthru
    _
  // Predicated region
  $region14: #{pos_predictor_v2_chars.1} parent=0 // pred_check
    _
  $region15: #{pos_predictor_v2_chars.1} parent=0 // pred_check_branch
    %25 = sbr.rel (0) target = $region17
  $region16: #{pos_predictor_v2_chars.1} parent=0 // pred_region
    _
  $region17: #{pos_predictor_v2_chars.1} parent=0 // pred_fallthru
    _
  // Predicated region
  $region18: #{pos_predictor_v2_chars.1} parent=0 // pred_check
    _
  $region19: #{pos_predictor_v2_chars.1} parent=0 // pred_check_branch
    %27 = sbr.rel (0) target = $region21
  $region20: #{pos_predictor_v2_chars.1} parent=0 // pred_region
    _
  $region21: #{pos_predictor_v2_chars.1} parent=0 // pred_fallthru
    _
  // Predicated region
  $region22: #{pos_predictor_v2_chars.1} parent=0 // pred_check
    _
  $region23: #{pos_predictor_v2_chars.1} parent=0 // pred_check_branch
    %29 = sbr.rel (0) target = $region25
  $region24: #{pos_predictor_v2_chars.1} parent=0 // pred_region
    _
  $region25: #{pos_predictor_v2_chars.1} parent=0 // pred_fallthru
    _
  // Predicated region
  $region26: #{pos_predictor_v2_chars.1} parent=0 // pred_check
    _
  $region27: #{pos_predictor_v2_chars.1} parent=0 // pred_check_branch
    %31 = sbr.rel (0) target = $region29
  $region28: #{pos_predictor_v2_chars.1} parent=0 // pred_region
    _
  $region29: #{pos_predictor_v2_chars.1} parent=0 // pred_fallthru
    _
  // Predicated region
  $region30: #{pos_predictor_v2_chars.1} parent=0 // pred_check
    _
  $region31: #{pos_predictor_v2_chars.1} parent=0 // pred_check_branch
    %33 = sbr.rel (0) target = $region33
  $region32: #{pos_predictor_v2_chars.1} parent=0 // pred_region
    _
  $region33: #{pos_predictor_v2_chars.1} parent=0 // pred_fallthru
    _
  // Predicated region
  $region34: #{pos_predictor_v2_chars.1} parent=0 // pred_check
    _
  $region35: #{pos_predictor_v2_chars.1} parent=0 // pred_check_branch
    %35 = sbr.rel (0) target = $region37
  $region36: #{pos_predictor_v2_chars.1} parent=0 // pred_region
    _
  $region37: #{pos_predictor_v2_chars.1} parent=0 // pred_fallthru
    _
  // Predicated region
  $region38: #{pos_predictor_v2_chars.1} parent=0 // pred_check
    _
  $region39: #{pos_predictor_v2_chars.1} parent=0 // pred_check_branch
    %37 = sbr.rel (0) target = $region41
  $region40: #{pos_predictor_v2_chars.1} parent=0 // pred_region
    _
  $region41: #{pos_predictor_v2_chars.1} parent=0 // pred_fallthru
    _
  // Predicated region
  $region42: #{pos_predictor_v2_chars.1} parent=0 // pred_check
    _
  $region43: #{pos_predictor_v2_chars.1} parent=0 // pred_check_branch
    %39 = sbr.rel (0) target = $region45
  $region44: #{pos_predictor_v2_chars.1} parent=0 // pred_region
    _
  $region45: #{pos_predictor_v2_chars.1} parent=0 // pred_fallthru
    _
  // Predicated region
  $region46: #{pos_predictor_v2_chars.1} parent=0 // pred_check
    _
  $region47: #{pos_predictor_v2_chars.1} parent=0 // pred_check_branch
    %41 = sbr.rel (0) target = $region49
  $region48: #{pos_predictor_v2_chars.1} parent=0 // pred_region
    _
  $region49: #{pos_predictor_v2_chars.1} parent=0 // pred_fallthru
    _
  // Predicated region
  $region50: #{pos_predictor_v2_chars.1} parent=0 // pred_check
    _
  $region51: #{pos_predictor_v2_chars.1} parent=0 // pred_check_branch
    %43 = sbr.rel (0) target = $region53
  $region52: #{pos_predictor_v2_chars.1} parent=0 // pred_region
    _
  $region53: #{pos_predictor_v2_chars.1} parent=0 // pred_fallthru
    _
  %v45 = vld [vmem:[%s2] sm:$0xf]
  %v46 = vld [vmem:[%s3] sm:$0xf]
  %v47 = vld [vmem:[%s3 + $0x4] sm:$0xf]
  %v48 = vld [vmem:[%s4] sm:$0x1]
  %v49 = vld [vmem:[%s5] sm:$0x1]
  %vm50 = vcmask 130048
  %51 = vst.msk [vmem:[#allocation2] sm:$0xff] %vm50, 0.0
  %52 = vst.msk [vmem:[#allocation2 + $0x8] sm:$0xff] %vm50, 0.0
  %53 = vst.msk [vmem:[#allocation2 + $0x10] sm:$0xff] %vm50, 0.0
  %54 = vst.msk [vmem:[#allocation2 + $0x18] sm:$0xff] %vm50, 0.0
  %55 = vst.msk [vmem:[#allocation2 + $0x20] sm:$0xff] %vm50, 0.0
  %56 = vst.msk [vmem:[#allocation2 + $0x28] sm:$0xff] %vm50, 0.0
  %57 = vst.msk [vmem:[#allocation2 + $0x30] sm:$0xff] %vm50, 0.0
  %58 = vst.msk [vmem:[#allocation2 + $0x38] sm:$0xff] %vm50, 0.0
  %v59 = vld [vmem:[%s0] sm:$0xf]
  %v60 = vld [vmem:[%s0 + $0x4] sm:$0xf]
  %v61 = vld [vmem:[%s0 + $0x8] sm:$0xf]
  %v62 = vld [vmem:[%s0 + $0xc] sm:$0xf]
  %v63 = vld [vmem:[%s0 + $0x10] sm:$0xf]
  %v64 = vld [vmem:[%s0 + $0x14] sm:$0xf]
  %v65 = vld [vmem:[%s0 + $0x18] sm:$0xf]
  %v66 = vld [vmem:[%s0 + $0x1c] sm:$0xf]
  %v67 = vld [vmem:[#allocation2] sm:$0xff]
  %v68 = vld [vmem:[#allocation2 + $0x8] sm:$0xff]
  %v69 = vld [vmem:[#allocation2 + $0x10] sm:$0xff]
  %v70 = vld [vmem:[#allocation2 + $0x18] sm:$0xff]
  %v71 = vld [vmem:[#allocation2 + $0x20] sm:$0xff]
  %v72 = vld [vmem:[#allocation2 + $0x28] sm:$0xff]
  %v73 = vld [vmem:[#allocation2 + $0x30] sm:$0xff]
  %v74 = vld [vmem:[#allocation2 + $0x38] sm:$0xff]
  %v76 = vlaneseq
  %v77 = vshrl.u32 %v76, 7
  %v78 = vsub.s32 0, %v77
  %v79 = vrot.slane %v48, %v78
  %v89 = vunpack.c.l.b16 %v59
  %v90 = vunpack.c.l.b16 %v60
  %v91 = vunpack.c.l.b16 %v61
  %v92 = vunpack.c.l.b16 %v62
  %v93 = vunpack.c.l.b16 %v63
  %v94 = vunpack.c.l.b16 %v64
  %v95 = vunpack.c.l.b16 %v65
  %v96 = vunpack.c.l.b16 %v66
  %v97 = vpack.c.b16 %v90, %v89
  %v98 = vpack.c.b16 %v92, %v91
  %v99 = vpack.c.b16 %v94, %v93
  %v100 = vpack.c.b16 %v96, %v95
  %vm101 = vcmask 64512
  %v103 = vsel %vm101, %v97, 0
  %v106 = vsel %vm101, %v98, 0
  %v109 = vsel %vm101, %v99, 0
  %v112 = vsel %vm101, %v100, 0
  %vm114 = vcmask 1043456
  %v116 = vsel %vm114, %v45, 0
  %118 = vmatprep.subr.bf16.mxu0 0
  %119 = vmatpush1.bf16.msra.mxu0 0
  %120 = vmatprep.subr.bf16.mxu0 0
  %121 = vmatpush1.bf16.msra.mxu0 0
  %122 = vmatprep.subr.bf16.mxu0 0
  %123 = vmatpush1.bf16.msra.mxu0 0
  %124 = vmatprep.subr.bf16.mxu0 0
  %125 = vmatpush1.bf16.msra.mxu0 0
  %126 = vmatprep.subr.bf16.mxu0 0
  %127 = vmatpush1.bf16.msra.mxu0 0
  %128 = vmatprep.subr.bf16.mxu0 0
  %129 = vmatpush1.bf16.msra.mxu0 0
  %130 = vmatprep.subr.bf16.mxu0 0
  %131 = vmatpush1.bf16.msra.mxu0 0
  %132 = vmatprep.subr.bf16.mxu0 0
  %133 = vmatpush1.bf16.msra.mxu0 %v116
  %134 = vmatprep.subr.bf16.mxu0 0
  %135 = vmatpush2.bf16.msra.mxu0 0
  %136 = vmatprep.subr.bf16.mxu0 0
  %137 = vmatpush2.bf16.msra.mxu0 0
  %138 = vmatprep.subr.bf16.mxu0 0
  %139 = vmatpush2.bf16.msra.mxu0 0
  %140 = vmatprep.subr.bf16.mxu0 0
  %141 = vmatpush2.bf16.msra.mxu0 0
  %142 = vmatprep.subr.bf16.mxu0 0
  %143 = vmatpush2.bf16.msra.mxu0 0
  %144 = vmatprep.subr.bf16.mxu0 0
  %145 = vmatpush2.bf16.msra.mxu0 0
  %146 = vmatprep.subr.bf16.mxu0 0
  %147 = vmatpush2.bf16.msra.mxu0 0
  %148 = vmatprep.subr.bf16.mxu0 0
  %149 = vmatpush2.bf16.msra.mxu0 0
  %150 = vmatprep.mubr.bf16.mxu0 0
  %151 = vmatmul.mubr.bf16.gmra.mxu0 %v103
  %v152 = vpop.f32.mrf.mxu0
  %v153 = vadd.f32 %v79, %v152
  %v154 = vpop.f32.mrf.mxu0
  %v155 = vpop.f32.mrf.mxu0
  %v156 = vadd.f32 %v79, %v155
  %v157 = vpop.f32.mrf.mxu0
  %158 = vmatprep.mubr.bf16.mxu0 0
  %159 = vmatmul.mubr.bf16.gmra.mxu0 %v106
  %v160 = vpop.f32.mrf.mxu0
  %v161 = vadd.f32 %v79, %v160
  %v162 = vpop.f32.mrf.mxu0
  %v163 = vpop.f32.mrf.mxu0
  %v164 = vadd.f32 %v79, %v163
  %v165 = vpop.f32.mrf.mxu0
  %166 = vmatprep.mubr.bf16.mxu0 0
  %167 = vmatmul.mubr.bf16.gmra.mxu0 %v109
  %v168 = vpop.f32.mrf.mxu0
  %v169 = vadd.f32 %v79, %v168
  %v170 = vpop.f32.mrf.mxu0
  %v171 = vpop.f32.mrf.mxu0
  %v172 = vadd.f32 %v79, %v171
  %v173 = vpop.f32.mrf.mxu0
  %174 = vmatprep.mubr.bf16.mxu0 0
  %175 = vmatmul.mubr.bf16.gmra.mxu0 %v112
  %v176 = vpop.f32.mrf.mxu0
  %v177 = vadd.f32 %v79, %v176
  %v178 = vpop.f32.mrf.mxu0
  %v179 = vpop.f32.mrf.mxu0
  %v180 = vadd.f32 %v79, %v179
  %v181 = vpop.f32.mrf.mxu0
  %182 = vdwg.mxu0
  %v183 = vpack.c.bf16 %v68, %v67
  %v184 = vpack.c.bf16 %v70, %v69
  %v185 = vpack.c.bf16 %v72, %v71
  %v186 = vpack.c.bf16 %v74, %v73
  %v189 = vunpack.c.l.b16 %v46
  %v190 = vunpack.c.l.b16 %v47
  %v191 = vpack.c.b16 %v190, %v189
  %v194 = vsel %vm50, %v183, 0
  %v197 = vsel %vm50, %v184, 0
  %v200 = vsel %vm50, %v185, 0
  %v203 = vsel %vm50, %v186, 0
  %205 = vmatprep.subr.bf16.mxu0 0
  %206 = vmatpush1.bf16.msra.mxu0 0
  %207 = vmatprep.subr.bf16.mxu0 0
  %208 = vmatpush1.bf16.msra.mxu0 0
  %209 = vmatprep.subr.bf16.mxu0 0
  %210 = vmatpush1.bf16.msra.mxu0 0
  %211 = vmatprep.subr.bf16.mxu0 0
  %212 = vmatpush1.bf16.msra.mxu0 0
  %213 = vmatprep.subr.bf16.mxu0 0
  %214 = vmatpush1.bf16.msra.mxu0 0
  %215 = vmatprep.subr.bf16.mxu0 0
  %216 = vmatpush1.bf16.msra.mxu0 0
  %217 = vmatprep.subr.bf16.mxu0 0
  %218 = vmatpush1.bf16.msra.mxu0 0
  %219 = vmatprep.subr.bf16.mxu0 0
  %220 = vmatpush1.bf16.msra.mxu0 %v191
  %221 = vmatprep.subr.bf16.mxu0 0
  %222 = vmatpush2.bf16.msra.mxu0 0
  %223 = vmatprep.subr.bf16.mxu0 0
  %224 = vmatpush2.bf16.msra.mxu0 0
  %225 = vmatprep.subr.bf16.mxu0 0
  %226 = vmatpush2.bf16.msra.mxu0 0
  %227 = vmatprep.subr.bf16.mxu0 0
  %228 = vmatpush2.bf16.msra.mxu0 0
  %229 = vmatprep.subr.bf16.mxu0 0
  %230 = vmatpush2.bf16.msra.mxu0 0
  %231 = vmatprep.subr.bf16.mxu0 0
  %232 = vmatpush2.bf16.msra.mxu0 0
  %233 = vmatprep.subr.bf16.mxu0 0
  %234 = vmatpush2.bf16.msra.mxu0 0
  %235 = vmatprep.subr.bf16.mxu0 0
  %236 = vmatpush2.bf16.msra.mxu0 0
  %237 = vmatprep.mubr.bf16.mxu0 0
  %238 = vmatmul.mubr.bf16.gmra.mxu0 %v194
  %v239 = vpop.f32.mrf.mxu0
  %v240 = vadd.f32 0.0, %v239
  %v241 = vpop.f32.mrf.mxu0
  %v242 = vpop.f32.mrf.mxu0
  %v243 = vadd.f32 0.0, %v242
  %v244 = vpop.f32.mrf.mxu0
  %245 = vmatprep.mubr.bf16.mxu0 0
  %246 = vmatmul.mubr.bf16.gmra.mxu0 %v197
  %v247 = vpop.f32.mrf.mxu0
  %v248 = vadd.f32 0.0, %v247
  %v249 = vpop.f32.mrf.mxu0
  %v250 = vpop.f32.mrf.mxu0
  %v251 = vadd.f32 0.0, %v250
  %v252 = vpop.f32.mrf.mxu0
  %253 = vmatprep.mubr.bf16.mxu0 0
  %254 = vmatmul.mubr.bf16.gmra.mxu0 %v200
  %v255 = vpop.f32.mrf.mxu0
  %v256 = vadd.f32 0.0, %v255
  %v257 = vpop.f32.mrf.mxu0
  %v258 = vpop.f32.mrf.mxu0
  %v259 = vadd.f32 0.0, %v258
  %v260 = vpop.f32.mrf.mxu0
  %261 = vmatprep.mubr.bf16.mxu0 0
  %262 = vmatmul.mubr.bf16.gmra.mxu0 %v203
  %v263 = vpop.f32.mrf.mxu0
  %v264 = vadd.f32 0.0, %v263
  %v265 = vpop.f32.mrf.mxu0
  %v266 = vpop.f32.mrf.mxu0
  %v267 = vadd.f32 0.0, %v266
  %v268 = vpop.f32.mrf.mxu0
  %269 = vdwg.mxu0
  %v270 = vadd.f32 %v153, %v240
  %v271 = vadd.f32 %v156, %v243
  %v272 = vadd.f32 %v161, %v248
  %v273 = vadd.f32 %v164, %v251
  %v274 = vadd.f32 %v169, %v256
  %v275 = vadd.f32 %v172, %v259
  %v276 = vadd.f32 %v177, %v264
  %v277 = vadd.f32 %v180, %v267
  %v278 = vxor.u32 %v270, 2147483648
  %v279 = vxor.u32 %v271, 2147483648
  %v280 = vxor.u32 %v272, 2147483648
  %v281 = vxor.u32 %v273, 2147483648
  %v282 = vxor.u32 %v274, 2147483648
  %v283 = vxor.u32 %v275, 2147483648
  %v284 = vxor.u32 %v276, 2147483648
  %v285 = vxor.u32 %v277, 2147483648
  %v286 = vmul.f32 %v278, 1.442695
  %v287 = vpow.pop %v286
  %v288 = vmul.f32 %v279, 1.442695
  %v289 = vpow.pop %v288
  %v290 = vmul.f32 %v280, 1.442695
  %v291 = vpow.pop %v290
  %v292 = vmul.f32 %v281, 1.442695
  %v293 = vpow.pop %v292
  %v294 = vmul.f32 %v282, 1.442695
  %v295 = vpow.pop %v294
  %v296 = vmul.f32 %v283, 1.442695
  %v297 = vpow.pop %v296
  %v298 = vmul.f32 %v284, 1.442695
  %v299 = vpow.pop %v298
  %v300 = vmul.f32 %v285, 1.442695
  %v301 = vpow.pop %v300
  %v302 = vadd.f32 %v287, 1.0
  %v303 = vadd.f32 %v289, 1.0
  %v304 = vadd.f32 %v291, 1.0
  %v305 = vadd.f32 %v293, 1.0
  %v306 = vadd.f32 %v295, 1.0
  %v307 = vadd.f32 %v297, 1.0
  %v308 = vadd.f32 %v299, 1.0
  %v309 = vadd.f32 %v301, 1.0
  %v310 = vrcp.pop %v302
  %v311 = vmul.f32 1.0, %v310
  %v312 = vrcp.pop %v303
  %v313 = vmul.f32 1.0, %v312
  %v314 = vrcp.pop %v304
  %v315 = vmul.f32 1.0, %v314
  %v316 = vrcp.pop %v305
  %v317 = vmul.f32 1.0, %v316
  %v318 = vrcp.pop %v306
  %v319 = vmul.f32 1.0, %v318
  %v320 = vrcp.pop %v307
  %v321 = vmul.f32 1.0, %v320
  %v322 = vrcp.pop %v308
  %v323 = vmul.f32 1.0, %v322
  %v324 = vrcp.pop %v309
  %v325 = vmul.f32 1.0, %v324
  %v327 = vlaneseq
  %v328 = vshrl.u32 %v327, 7
  %v329 = vsub.s32 0, %v328
  %v330 = vrot.slane %v49, %v329
  %331 = vrot.lane.b32.xlu0 %v330, 32
  %v332 = vpop.permute.xlu0 %331
  %v334 = vadd.f32 %v240, %v332
  %v335 = vadd.f32 %v243, %v332
  %v336 = vadd.f32 %v248, %v332
  %v337 = vadd.f32 %v251, %v332
  %v338 = vadd.f32 %v256, %v332
  %v339 = vadd.f32 %v259, %v332
  %v340 = vadd.f32 %v264, %v332
  %v341 = vadd.f32 %v267, %v332
  %350 = vrot.lane.b32.xlu0 %v334, 96
  %v351 = vpop.permute.xlu0 %350
  %352 = vrot.lane.b32.xlu0 %v335, 96
  %v353 = vpop.permute.xlu0 %352
  %354 = vrot.lane.b32.xlu0 %v336, 96
  %v355 = vpop.permute.xlu0 %354
  %356 = vrot.lane.b32.xlu0 %v337, 96
  %v357 = vpop.permute.xlu0 %356
  %358 = vrot.lane.b32.xlu0 %v338, 96
  %v359 = vpop.permute.xlu0 %358
  %360 = vrot.lane.b32.xlu0 %v339, 96
  %v361 = vpop.permute.xlu0 %360
  %362 = vrot.lane.b32.xlu0 %v340, 96
  %v363 = vpop.permute.xlu0 %362
  %364 = vrot.lane.b32.xlu0 %v341, 96
  %v365 = vpop.permute.xlu0 %364
  %v374 = vmul.f32 %v311, %v351
  %v375 = vmul.f32 %v313, %v353
  %v376 = vmul.f32 %v315, %v355
  %v377 = vmul.f32 %v317, %v357
  %v378 = vmul.f32 %v319, %v359
  %v379 = vmul.f32 %v321, %v361
  %v380 = vmul.f32 %v323, %v363
  %v381 = vmul.f32 %v325, %v365
  %390 = vrot.lane.b32.xlu0 %v374, 32
  %v391 = vpop.permute.xlu0 %390
  %392 = vrot.lane.b32.xlu0 %v375, 32
  %v393 = vpop.permute.xlu0 %392
  %394 = vrot.lane.b32.xlu0 %v376, 32
  %v395 = vpop.permute.xlu0 %394
  %396 = vrot.lane.b32.xlu0 %v377, 32
  %v397 = vpop.permute.xlu0 %396
  %398 = vrot.lane.b32.xlu0 %v378, 32
  %v399 = vpop.permute.xlu0 %398
  %400 = vrot.lane.b32.xlu0 %v379, 32
  %v401 = vpop.permute.xlu0 %400
  %402 = vrot.lane.b32.xlu0 %v380, 32
  %v403 = vpop.permute.xlu0 %402
  %404 = vrot.lane.b32.xlu0 %v381, 32
  %v405 = vpop.permute.xlu0 %404
  %v414 = vadd.f32 %v153, %v391
  %v415 = vadd.f32 %v156, %v393
  %v416 = vadd.f32 %v161, %v395
  %v417 = vadd.f32 %v164, %v397
  %v418 = vadd.f32 %v169, %v399
  %v419 = vadd.f32 %v172, %v401
  %v420 = vadd.f32 %v177, %v403
  %v421 = vadd.f32 %v180, %v405
  %v422 = vtanh.pop %v414
  %v423 = vtanh.pop %v415
  %v424 = vtanh.pop %v416
  %v425 = vtanh.pop %v417
  %v426 = vtanh.pop %v418
  %v427 = vtanh.pop %v419
  %v428 = vtanh.pop %v420
  %v429 = vtanh.pop %v421
  %v430 = vsub.f32 1.0, %v311
  %v431 = vsub.f32 1.0, %v313
  %v432 = vsub.f32 1.0, %v315
  %v433 = vsub.f32 1.0, %v317
  %v434 = vsub.f32 1.0, %v319
  %v435 = vsub.f32 1.0, %v321
  %v436 = vsub.f32 1.0, %v323
  %v437 = vsub.f32 1.0, %v325
  %446 = vrot.lane.b32.xlu0 %v422, 112
  %v447 = vpop.permute.xlu0 %446
  %448 = vrot.lane.b32.xlu0 %v423, 112
  %v449 = vpop.permute.xlu0 %448
  %450 = vrot.lane.b32.xlu0 %v424, 112
  %v451 = vpop.permute.xlu0 %450
  %452 = vrot.lane.b32.xlu0 %v425, 112
  %v453 = vpop.permute.xlu0 %452
  %454 = vrot.lane.b32.xlu0 %v426, 112
  %v455 = vpop.permute.xlu0 %454
  %456 = vrot.lane.b32.xlu0 %v427, 112
  %v457 = vpop.permute.xlu0 %456
  %458 = vrot.lane.b32.xlu0 %v428, 112
  %v459 = vpop.permute.xlu0 %458
  %460 = vrot.lane.b32.xlu0 %v429, 112
  %v461 = vpop.permute.xlu0 %460
  %v470 = vmul.f32 %v430, %v447
  %v471 = vmul.f32 %v431, %v449
  %v472 = vmul.f32 %v432, %v451
  %v473 = vmul.f32 %v433, %v453
  %v474 = vmul.f32 %v434, %v455
  %v475 = vmul.f32 %v435, %v457
  %v476 = vmul.f32 %v436, %v459
  %v477 = vmul.f32 %v437, %v461
  %486 = vrot.lane.b32.xlu0 %v67, 16
  %v487 = vpop.permute.xlu0 %486
  %488 = vrot.lane.b32.xlu0 %v68, 16
  %v489 = vpop.permute.xlu0 %488
  %490 = vrot.lane.b32.xlu0 %v69, 16
  %v491 = vpop.permute.xlu0 %490
  %492 = vrot.lane.b32.xlu0 %v70, 16
  %v493 = vpop.permute.xlu0 %492
  %494 = vrot.lane.b32.xlu0 %v71, 16
  %v495 = vpop.permute.xlu0 %494
  %496 = vrot.lane.b32.xlu0 %v72, 16
  %v497 = vpop.permute.xlu0 %496
  %498 = vrot.lane.b32.xlu0 %v73, 16
  %v499 = vpop.permute.xlu0 %498
  %500 = vrot.lane.b32.xlu0 %v74, 16
  %v501 = vpop.permute.xlu0 %500
  %v510 = vmul.f32 %v311, %v487
  %v511 = vmul.f32 %v313, %v489
  %v512 = vmul.f32 %v315, %v491
  %v513 = vmul.f32 %v317, %v493
  %v514 = vmul.f32 %v319, %v495
  %v515 = vmul.f32 %v321, %v497
  %v516 = vmul.f32 %v323, %v499
  %v517 = vmul.f32 %v325, %v501
  %v518 = vadd.f32 %v470, %v510
  %v519 = vadd.f32 %v471, %v511
  %v520 = vadd.f32 %v472, %v512
  %v521 = vadd.f32 %v473, %v513
  %v522 = vadd.f32 %v474, %v514
  %v523 = vadd.f32 %v475, %v515
  %v524 = vadd.f32 %v476, %v516
  %v525 = vadd.f32 %v477, %v517
  %534 = vrot.lane.b32.xlu0 %v518, 112
  %v535 = vpop.permute.xlu0 %534
  %536 = vrot.lane.b32.xlu0 %v519, 112
  %v537 = vpop.permute.xlu0 %536
  %538 = vrot.lane.b32.xlu0 %v520, 112
  %v539 = vpop.permute.xlu0 %538
  %540 = vrot.lane.b32.xlu0 %v521, 112
  %v541 = vpop.permute.xlu0 %540
  %542 = vrot.lane.b32.xlu0 %v522, 112
  %v543 = vpop.permute.xlu0 %542
  %544 = vrot.lane.b32.xlu0 %v523, 112
  %v545 = vpop.permute.xlu0 %544
  %546 = vrot.lane.b32.xlu0 %v524, 112
  %v547 = vpop.permute.xlu0 %546
  %548 = vrot.lane.b32.xlu0 %v525, 112
  %v549 = vpop.permute.xlu0 %548
  %558 = vst.msk [vmem:[#allocation2] sm:$0xff] %vm50, %v535
  %559 = vst.msk [vmem:[#allocation2 + $0x8] sm:$0xff] %vm50, %v537
  %560 = vst.msk [vmem:[#allocation2 + $0x10] sm:$0xff] %vm50, %v539
  %561 = vst.msk [vmem:[#allocation2 + $0x18] sm:$0xff] %vm50, %v541
  %562 = vst.msk [vmem:[#allocation2 + $0x20] sm:$0xff] %vm50, %v543
  %563 = vst.msk [vmem:[#allocation2 + $0x28] sm:$0xff] %vm50, %v545
  %564 = vst.msk [vmem:[#allocation2 + $0x30] sm:$0xff] %vm50, %v547
  %565 = vst.msk [vmem:[#allocation2 + $0x38] sm:$0xff] %vm50, %v549
  %s566 = scalar_lea.vmem %s0, 32
  %v567 = vld [vmem:[%s566] sm:$0xf]
  %v568 = vld [vmem:[%s566 + $0x4] sm:$0xf]
  %v569 = vld [vmem:[%s566 + $0x8] sm:$0xf]
  %v570 = vld [vmem:[%s566 + $0xc] sm:$0xf]
  %v571 = vld [vmem:[%s566 + $0x10] sm:$0xf]
  %v572 = vld [vmem:[%s566 + $0x14] sm:$0xf]
  %v573 = vld [vmem:[%s566 + $0x18] sm:$0xf]
  %v574 = vld [vmem:[%s566 + $0x1c] sm:$0xf]
  %v575 = vld [vmem:[#allocation2] sm:$0xff]
  %v576 = vld [vmem:[#allocation2 + $0x8] sm:$0xff]
  %v577 = vld [vmem:[#allocation2 + $0x10] sm:$0xff]
  %v578 = vld [vmem:[#allocation2 + $0x18] sm:$0xff]
  %v579 = vld [vmem:[#allocation2 + $0x20] sm:$0xff]
  %v580 = vld [vmem:[#allocation2 + $0x28] sm:$0xff]
  %v581 = vld [vmem:[#allocation2 + $0x30] sm:$0xff]
  %v582 = vld [vmem:[#allocation2 + $0x38] sm:$0xff]
  %v591 = vunpack.c.l.b16 %v567
  %v592 = vunpack.c.l.b16 %v568
  %v593 = vunpack.c.l.b16 %v569
  %v594 = vunpack.c.l.b16 %v570
  %v595 = vunpack.c.l.b16 %v571
  %v596 = vunpack.c.l.b16 %v572
  %v597 = vunpack.c.l.b16 %v573
  %v598 = vunpack.c.l.b16 %v574
  %v599 = vpack.c.b16 %v592, %v591
  %v600 = vpack.c.b16 %v594, %v593
  %v601 = vpack.c.b16 %v596, %v595
  %v602 = vpack.c.b16 %v598, %v597
  %v604 = vsel %vm101, %v599, 0
  %v607 = vsel %vm101, %v600, 0
  %v610 = vsel %vm101, %v601, 0
  %v613 = vsel %vm101, %v602, 0
  %615 = vmatprep.subr.bf16.mxu0 0
  %616 = vmatpush1.bf16.msra.mxu0 0
  %617 = vmatprep.subr.bf16.mxu0 0
  %618 = vmatpush1.bf16.msra.mxu0 0
  %619 = vmatprep.subr.bf16.mxu0 0
  %620 = vmatpush1.bf16.msra.mxu0 0
  %621 = vmatprep.subr.bf16.mxu0 0
  %622 = vmatpush1.bf16.msra.mxu0 0
  %623 = vmatprep.subr.bf16.mxu0 0
  %624 = vmatpush1.bf16.msra.mxu0 0
  %625 = vmatprep.subr.bf16.mxu0 0
  %626 = vmatpush1.bf16.msra.mxu0 0
  %627 = vmatprep.subr.bf16.mxu0 0
  %628 = vmatpush1.bf16.msra.mxu0 0
  %629 = vmatprep.subr.bf16.mxu0 0
  %630 = vmatpush1.bf16.msra.mxu0 %v116
  %631 = vmatprep.subr.bf16.mxu0 0
  %632 = vmatpush2.bf16.msra.mxu0 0
  %633 = vmatprep.subr.bf16.mxu0 0
  %634 = vmatpush2.bf16.msra.mxu0 0
  %635 = vmatprep.subr.bf16.mxu0 0
  %636 = vmatpush2.bf16.msra.mxu0 0
  %637 = vmatprep.subr.bf16.mxu0 0
  %638 = vmatpush2.bf16.msra.mxu0 0
  %639 = vmatprep.subr.bf16.mxu0 0
  %640 = vmatpush2.bf16.msra.mxu0 0
  %641 = vmatprep.subr.bf16.mxu0 0
  %642 = vmatpush2.bf16.msra.mxu0 0
  %643 = vmatprep.subr.bf16.mxu0 0
  %644 = vmatpush2.bf16.msra.mxu0 0
  %645 = vmatprep.subr.bf16.mxu0 0
  %646 = vmatpush2.bf16.msra.mxu0 0
  %647 = vmatprep.mubr.bf16.mxu0 0
  %648 = vmatmul.mubr.bf16.gmra.mxu0 %v604
  %v649 = vpop.f32.mrf.mxu0
  %v650 = vadd.f32 %v79, %v649
  %v651 = vpop.f32.mrf.mxu0
  %v652 = vpop.f32.mrf.mxu0
  %v653 = vadd.f32 %v79, %v652
  %v654 = vpop.f32.mrf.mxu0
  %655 = vmatprep.mubr.bf16.mxu0 0
  %656 = vmatmul.mubr.bf16.gmra.mxu0 %v607
  %v657 = vpop.f32.mrf.mxu0
  %v658 = vadd.f32 %v79, %v657
  %v659 = vpop.f32.mrf.mxu0
  %v660 = vpop.f32.mrf.mxu0
  %v661 = vadd.f32 %v79, %v660
  %v662 = vpop.f32.mrf.mxu0
  %663 = vmatprep.mubr.bf16.mxu0 0
  %664 = vmatmul.mubr.bf16.gmra.mxu0 %v610
  %v665 = vpop.f32.mrf.mxu0
  %v666 = vadd.f32 %v79, %v665
  %v667 = vpop.f32.mrf.mxu0
  %v668 = vpop.f32.mrf.mxu0
  %v669 = vadd.f32 %v79, %v668
  %v670 = vpop.f32.mrf.mxu0
  %671 = vmatprep.mubr.bf16.mxu0 0
  %672 = vmatmul.mubr.bf16.gmra.mxu0 %v613
  %v673 = vpop.f32.mrf.mxu0
  %v674 = vadd.f32 %v79, %v673
  %v675 = vpop.f32.mrf.mxu0
  %v676 = vpop.f32.mrf.mxu0
  %v677 = vadd.f32 %v79, %v676
  %v678 = vpop.f32.mrf.mxu0
  %679 = vdwg.mxu0
  %v680 = vpack.c.bf16 %v576, %v575
  %v681 = vpack.c.bf16 %v578, %v577
  %v682 = vpack.c.bf16 %v580, %v579
  %v683 = vpack.c.bf16 %v582, %v581
  %v685 = vsel %vm50, %v680, 0
  %v688 = vsel %vm50, %v681, 0
  %v691 = vsel %vm50, %v682, 0
  %v694 = vsel %vm50, %v683, 0
  %696 = vmatprep.subr.bf16.mxu0 0
  %697 = vmatpush1.bf16.msra.mxu0 0
  %698 = vmatprep.subr.bf16.mxu0 0
  %699 = vmatpush1.bf16.msra.mxu0 0
  %700 = vmatprep.subr.bf16.mxu0 0
  %701 = vmatpush1.bf16.msra.mxu0 0
  %702 = vmatprep.subr.bf16.mxu0 0
  %703 = vmatpush1.bf16.msra.mxu0 0
  %704 = vmatprep.subr.bf16.mxu0 0
  %705 = vmatpush1.bf16.msra.mxu0 0
  %706 = vmatprep.subr.bf16.mxu0 0
  %707 = vmatpush1.bf16.msra.mxu0 0
  %708 = vmatprep.subr.bf16.mxu0 0
  %709 = vmatpush1.bf16.msra.mxu0 0
  %710 = vmatprep.subr.bf16.mxu0 0
  %711 = vmatpush1.bf16.msra.mxu0 %v191
  %712 = vmatprep.subr.bf16.mxu0 0
  %713 = vmatpush2.bf16.msra.mxu0 0
  %714 = vmatprep.subr.bf16.mxu0 0
  %715 = vmatpush2.bf16.msra.mxu0 0
  %716 = vmatprep.subr.bf16.mxu0 0
  %717 = vmatpush2.bf16.msra.mxu0 0
  %718 = vmatprep.subr.bf16.mxu0 0
  %719 = vmatpush2.bf16.msra.mxu0 0
  %720 = vmatprep.subr.bf16.mxu0 0
  %721 = vmatpush2.bf16.msra.mxu0 0
  %722 = vmatprep.subr.bf16.mxu0 0
  %723 = vmatpush2.bf16.msra.mxu0 0
  %724 = vmatprep.subr.bf16.mxu0 0
  %725 = vmatpush2.bf16.msra.mxu0 0
  %726 = vmatprep.subr.bf16.mxu0 0
  %727 = vmatpush2.bf16.msra.mxu0 0
  %728 = vmatprep.mubr.bf16.mxu0 0
  %729 = vmatmul.mubr.bf16.gmra.mxu0 %v685
  %v730 = vpop.f32.mrf.mxu0
  %v731 = vadd.f32 0.0, %v730
  %v732 = vpop.f32.mrf.mxu0
  %v733 = vpop.f32.mrf.mxu0
  %v734 = vadd.f32 0.0, %v733
  %v735 = vpop.f32.mrf.mxu0
  %736 = vmatprep.mubr.bf16.mxu0 0
  %737 = vmatmul.mubr.bf16.gmra.mxu0 %v688
  %v738 = vpop.f32.mrf.mxu0
  %v739 = vadd.f32 0.0, %v738
  %v740 = vpop.f32.mrf.mxu0
  %v741 = vpop.f32.mrf.mxu0
  %v742 = vadd.f32 0.0, %v741
  %v743 = vpop.f32.mrf.mxu0
  %744 = vmatprep.mubr.bf16.mxu0 0
  %745 = vmatmul.mubr.bf16.gmra.mxu0 %v691
  %v746 = vpop.f32.mrf.mxu0
  %v747 = vadd.f32 0.0, %v746
  %v748 = vpop.f32.mrf.mxu0
  %v749 = vpop.f32.mrf.mxu0
  %v750 = vadd.f32 0.0, %v749
  %v751 = vpop.f32.mrf.mxu0
  %752 = vmatprep.mubr.bf16.mxu0 0
  %753 = vmatmul.mubr.bf16.gmra.mxu0 %v694
  %v754 = vpop.f32.mrf.mxu0
  %v755 = vadd.f32 0.0, %v754
  %v756 = vpop.f32.mrf.mxu0
  %v757 = vpop.f32.mrf.mxu0
  %v758 = vadd.f32 0.0, %v757
  %v759 = vpop.f32.mrf.mxu0
  %760 = vdwg.mxu0
  %v761 = vadd.f32 %v650, %v731
  %v762 = vadd.f32 %v653, %v734
  %v763 = vadd.f32 %v658, %v739
  %v764 = vadd.f32 %v661, %v742
  %v765 = vadd.f32 %v666, %v747
  %v766 = vadd.f32 %v669, %v750
  %v767 = vadd.f32 %v674, %v755
  %v768 = vadd.f32 %v677, %v758
  %v769 = vxor.u32 %v761, 2147483648
  %v770 = vxor.u32 %v762, 2147483648
  %v771 = vxor.u32 %v763, 2147483648
  %v772 = vxor.u32 %v764, 2147483648
  %v773 = vxor.u32 %v765, 2147483648
  %v774 = vxor.u32 %v766, 2147483648
  %v775 = vxor.u32 %v767, 2147483648
  %v776 = vxor.u32 %v768, 2147483648
  %v777 = vmul.f32 %v769, 1.442695
  %v778 = vpow.pop %v777
  %v779 = vmul.f32 %v770, 1.442695
  %v780 = vpow.pop %v779
  %v781 = vmul.f32 %v771, 1.442695
  %v782 = vpow.pop %v781
  %v783 = vmul.f32 %v772, 1.442695
  %v784 = vpow.pop %v783
  %v785 = vmul.f32 %v773, 1.442695
  %v786 = vpow.pop %v785
  %v787 = vmul.f32 %v774, 1.442695
  %v788 = vpow.pop %v787
  %v789 = vmul.f32 %v775, 1.442695
  %v790 = vpow.pop %v789
  %v791 = vmul.f32 %v776, 1.442695
  %v792 = vpow.pop %v791
  %v793 = vadd.f32 %v778, 1.0
  %v794 = vadd.f32 %v780, 1.0
  %v795 = vadd.f32 %v782, 1.0
  %v796 = vadd.f32 %v784, 1.0
  %v797 = vadd.f32 %v786, 1.0
  %v798 = vadd.f32 %v788, 1.0
  %v799 = vadd.f32 %v790, 1.0
  %v800 = vadd.f32 %v792, 1.0
  %v801 = vrcp.pop %v793
  %v802 = vmul.f32 1.0, %v801
  %v803 = vrcp.pop %v794
  %v804 = vmul.f32 1.0, %v803
  %v805 = vrcp.pop %v795
  %v806 = vmul.f32 1.0, %v805
  %v807 = vrcp.pop %v796
  %v808 = vmul.f32 1.0, %v807
  %v809 = vrcp.pop %v797
  %v810 = vmul.f32 1.0, %v809
  %v811 = vrcp.pop %v798
  %v812 = vmul.f32 1.0, %v811
  %v813 = vrcp.pop %v799
  %v814 = vmul.f32 1.0, %v813
  %v815 = vrcp.pop %v800
  %v816 = vmul.f32 1.0, %v815
  %v817 = vadd.f32 %v731, %v332
  %v818 = vadd.f32 %v734, %v332
  %v819 = vadd.f32 %v739, %v332
  %v820 = vadd.f32 %v742, %v332
  %v821 = vadd.f32 %v747, %v332
  %v822 = vadd.f32 %v750, %v332
  %v823 = vadd.f32 %v755, %v332
  %v824 = vadd.f32 %v758, %v332
  %833 = vrot.lane.b32.xlu0 %v817, 96
  %v834 = vpop.permute.xlu0 %833
  %835 = vrot.lane.b32.xlu0 %v818, 96
  %v836 = vpop.permute.xlu0 %835
  %837 = vrot.lane.b32.xlu0 %v819, 96
  %v838 = vpop.permute.xlu0 %837
  %839 = vrot.lane.b32.xlu0 %v820, 96
  %v840 = vpop.permute.xlu0 %839
  %841 = vrot.lane.b32.xlu0 %v821, 96
  %v842 = vpop.permute.xlu0 %841
  %843 = vrot.lane.b32.xlu0 %v822, 96
  %v844 = vpop.permute.xlu0 %843
  %845 = vrot.lane.b32.xlu0 %v823, 96
  %v846 = vpop.permute.xlu0 %845
  %847 = vrot.lane.b32.xlu0 %v824, 96
  %v848 = vpop.permute.xlu0 %847
  %v857 = vmul.f32 %v802, %v834
  %v858 = vmul.f32 %v804, %v836
  %v859 = vmul.f32 %v806, %v838
  %v860 = vmul.f32 %v808, %v840
  %v861 = vmul.f32 %v810, %v842
  %v862 = vmul.f32 %v812, %v844
  %v863 = vmul.f32 %v814, %v846
  %v864 = vmul.f32 %v816, %v848
  %873 = vrot.lane.b32.xlu0 %v857, 32
  %v874 = vpop.permute.xlu0 %873
  %875 = vrot.lane.b32.xlu0 %v858, 32
  %v876 = vpop.permute.xlu0 %875
  %877 = vrot.lane.b32.xlu0 %v859, 32
  %v878 = vpop.permute.xlu0 %877
  %879 = vrot.lane.b32.xlu0 %v860, 32
  %v880 = vpop.permute.xlu0 %879
  %881 = vrot.lane.b32.xlu0 %v861, 32
  %v882 = vpop.permute.xlu0 %881
  %883 = vrot.lane.b32.xlu0 %v862, 32
  %v884 = vpop.permute.xlu0 %883
  %885 = vrot.lane.b32.xlu0 %v863, 32
  %v886 = vpop.permute.xlu0 %885
  %887 = vrot.lane.b32.xlu0 %v864, 32
  %v888 = vpop.permute.xlu0 %887
  %v897 = vadd.f32 %v650, %v874
  %v898 = vadd.f32 %v653, %v876
  %v899 = vadd.f32 %v658, %v878
  %v900 = vadd.f32 %v661, %v880
  %v901 = vadd.f32 %v666, %v882
  %v902 = vadd.f32 %v669, %v884
  %v903 = vadd.f32 %v674, %v886
  %v904 = vadd.f32 %v677, %v888
  %v905 = vtanh.pop %v897
  %v906 = vtanh.pop %v898
  %v907 = vtanh.pop %v899
  %v908 = vtanh.pop %v900
  %v909 = vtanh.pop %v901
  %v910 = vtanh.pop %v902
  %v911 = vtanh.pop %v903
  %v912 = vtanh.pop %v904
  %v913 = vsub.f32 1.0, %v802
  %v914 = vsub.f32 1.0, %v804
  %v915 = vsub.f32 1.0, %v806
  %v916 = vsub.f32 1.0, %v808
  %v917 = vsub.f32 1.0, %v810
  %v918 = vsub.f32 1.0, %v812
  %v919 = vsub.f32 1.0, %v814
  %v920 = vsub.f32 1.0, %v816
  %929 = vrot.lane.b32.xlu0 %v905, 112
  %v930 = vpop.permute.xlu0 %929
  %931 = vrot.lane.b32.xlu0 %v906, 112
  %v932 = vpop.permute.xlu0 %931
  %933 = vrot.lane.b32.xlu0 %v907, 112
  %v934 = vpop.permute.xlu0 %933
  %935 = vrot.lane.b32.xlu0 %v908, 112
  %v936 = vpop.permute.xlu0 %935
  %937 = vrot.lane.b32.xlu0 %v909, 112
  %v938 = vpop.permute.xlu0 %937
  %939 = vrot.lane.b32.xlu0 %v910, 112
  %v940 = vpop.permute.xlu0 %939
  %941 = vrot.lane.b32.xlu0 %v911, 112
  %v942 = vpop.permute.xlu0 %941
  %943 = vrot.lane.b32.xlu0 %v912, 112
  %v944 = vpop.permute.xlu0 %943
  %v953 = vmul.f32 %v913, %v930
  %v954 = vmul.f32 %v914, %v932
  %v955 = vmul.f32 %v915, %v934
  %v956 = vmul.f32 %v916, %v936
  %v957 = vmul.f32 %v917, %v938
  %v958 = vmul.f32 %v918, %v940
  %v959 = vmul.f32 %v919, %v942
  %v960 = vmul.f32 %v920, %v944
  %969 = vrot.lane.b32.xlu0 %v575, 16
  %v970 = vpop.permute.xlu0 %969
  %971 = vrot.lane.b32.xlu0 %v576, 16
  %v972 = vpop.permute.xlu0 %971
  %973 = vrot.lane.b32.xlu0 %v577, 16
  %v974 = vpop.permute.xlu0 %973
  %975 = vrot.lane.b32.xlu0 %v578, 16
  %v976 = vpop.permute.xlu0 %975
  %977 = vrot.lane.b32.xlu0 %v579, 16
  %v978 = vpop.permute.xlu0 %977
  %979 = vrot.lane.b32.xlu0 %v580, 16
  %v980 = vpop.permute.xlu0 %979
  %981 = vrot.lane.b32.xlu0 %v581, 16
  %v982 = vpop.permute.xlu0 %981
  %983 = vrot.lane.b32.xlu0 %v582, 16
  %v984 = vpop.permute.xlu0 %983
  %v993 = vmul.f32 %v802, %v970
  %v994 = vmul.f32 %v804, %v972
  %v995 = vmul.f32 %v806, %v974
  %v996 = vmul.f32 %v808, %v976
  %v997 = vmul.f32 %v810, %v978
  %v998 = vmul.f32 %v812, %v980
  %v999 = vmul.f32 %v814, %v982
  %v1000 = vmul.f32 %v816, %v984
  %v1001 = vadd.f32 %v953, %v993
  %v1002 = vadd.f32 %v954, %v994
  %v1003 = vadd.f32 %v955, %v995
  %v1004 = vadd.f32 %v956, %v996
  %v1005 = vadd.f32 %v957, %v997
  %v1006 = vadd.f32 %v958, %v998
  %v1007 = vadd.f32 %v959, %v999
  %v1008 = vadd.f32 %v960, %v1000
  %1017 = vrot.lane.b32.xlu0 %v1001, 112
  %v1018 = vpop.permute.xlu0 %1017
  %1019 = vrot.lane.b32.xlu0 %v1002, 112
  %v1020 = vpop.permute.xlu0 %1019
  %1021 = vrot.lane.b32.xlu0 %v1003, 112
  %v1022 = vpop.permute.xlu0 %1021
  %1023 = vrot.lane.b32.xlu0 %v1004, 112
  %v1024 = vpop.permute.xlu0 %1023
  %1025 = vrot.lane.b32.xlu0 %v1005, 112
  %v1026 = vpop.permute.xlu0 %1025
  %1027 = vrot.lane.b32.xlu0 %v1006, 112
  %v1028 = vpop.permute.xlu0 %1027
  %1029 = vrot.lane.b32.xlu0 %v1007, 112
  %v1030 = vpop.permute.xlu0 %1029
  %1031 = vrot.lane.b32.xlu0 %v1008, 112
  %v1032 = vpop.permute.xlu0 %1031
  %1041 = vst.msk [vmem:[#allocation2] sm:$0xff] %vm50, %v1018
  %1042 = vst.msk [vmem:[#allocation2 + $0x8] sm:$0xff] %vm50, %v1020
  %1043 = vst.msk [vmem:[#allocation2 + $0x10] sm:$0xff] %vm50, %v1022
  %1044 = vst.msk [vmem:[#allocation2 + $0x18] sm:$0xff] %vm50, %v1024
  %1045 = vst.msk [vmem:[#allocation2 + $0x20] sm:$0xff] %vm50, %v1026
  %1046 = vst.msk [vmem:[#allocation2 + $0x28] sm:$0xff] %vm50, %v1028
  %1047 = vst.msk [vmem:[#allocation2 + $0x30] sm:$0xff] %vm50, %v1030
  %1048 = vst.msk [vmem:[#allocation2 + $0x38] sm:$0xff] %vm50, %v1032
  %s1049 = scalar_lea.vmem %s0, 64
  %v1050 = vld [vmem:[%s1049] sm:$0xf]
  %v1051 = vld [vmem:[%s1049 + $0x4] sm:$0xf]
  %v1052 = vld [vmem:[%s1049 + $0x8] sm:$0xf]
  %v1053 = vld [vmem:[%s1049 + $0xc] sm:$0xf]
  %v1054 = vld [vmem:[%s1049 + $0x10] sm:$0xf]
  %v1055 = vld [vmem:[%s1049 + $0x14] sm:$0xf]
  %v1056 = vld [vmem:[%s1049 + $0x18] sm:$0xf]
  %v1057 = vld [vmem:[%s1049 + $0x1c] sm:$0xf]
  %v1058 = vld [vmem:[#allocation2] sm:$0xff]
  %v1059 = vld [vmem:[#allocation2 + $0x8] sm:$0xff]
  %v1060 = vld [vmem:[#allocation2 + $0x10] sm:$0xff]
  %v1061 = vld [vmem:[#allocation2 + $0x18] sm:$0xff]
  %v1062 = vld [vmem:[#allocation2 + $0x20] sm:$0xff]
  %v1063 = vld [vmem:[#allocation2 + $0x28] sm:$0xff]
  %v1064 = vld [vmem:[#allocation2 + $0x30] sm:$0xff]
  %v1065 = vld [vmem:[#allocation2 + $0x38] sm:$0xff]
  %v1074 = vunpack.c.l.b16 %v1050
  %v1075 = vunpack.c.l.b16 %v1051
  %v1076 = vunpack.c.l.b16 %v1052
  %v1077 = vunpack.c.l.b16 %v1053
  %v1078 = vunpack.c.l.b16 %v1054
  %v1079 = vunpack.c.l.b16 %v1055
  %v1080 = vunpack.c.l.b16 %v1056
  %v1081 = vunpack.c.l.b16 %v1057
  %v1082 = vpack.c.b16 %v1075, %v1074
  %v1083 = vpack.c.b16 %v1077, %v1076
  %v1084 = vpack.c.b16 %v1079, %v1078
  %v1085 = vpack.c.b16 %v1081, %v1080
  %v1087 = vsel %vm101, %v1082, 0
  %v1090 = vsel %vm101, %v1083, 0
  %v1093 = vsel %vm101, %v1084, 0
  %v1096 = vsel %vm101, %v1085, 0
  %1098 = vmatprep.subr.bf16.mxu0 0
  %1099 = vmatpush1.bf16.msra.mxu0 0
  %1100 = vmatprep.subr.bf16.mxu0 0
  %1101 = vmatpush1.bf16.msra.mxu0 0
  %1102 = vmatprep.subr.bf16.mxu0 0
  %1103 = vmatpush1.bf16.msra.mxu0 0
  %1104 = vmatprep.subr.bf16.mxu0 0
  %1105 = vmatpush1.bf16.msra.mxu0 0
  %1106 = vmatprep.subr.bf16.mxu0 0
  %1107 = vmatpush1.bf16.msra.mxu0 0
  %1108 = vmatprep.subr.bf16.mxu0 0
  %1109 = vmatpush1.bf16.msra.mxu0 0
  %1110 = vmatprep.subr.bf16.mxu0 0
  %1111 = vmatpush1.bf16.msra.mxu0 0
  %1112 = vmatprep.subr.bf16.mxu0 0
  %1113 = vmatpush1.bf16.msra.mxu0 %v116
  %1114 = vmatprep.subr.bf16.mxu0 0
  %1115 = vmatpush2.bf16.msra.mxu0 0
  %1116 = vmatprep.subr.bf16.mxu0 0
  %1117 = vmatpush2.bf16.msra.mxu0 0
  %1118 = vmatprep.subr.bf16.mxu0 0
  %1119 = vmatpush2.bf16.msra.mxu0 0
  %1120 = vmatprep.subr.bf16.mxu0 0
  %1121 = vmatpush2.bf16.msra.mxu0 0
  %1122 = vmatprep.subr.bf16.mxu0 0
  %1123 = vmatpush2.bf16.msra.mxu0 0
  %1124 = vmatprep.subr.bf16.mxu0 0
  %1125 = vmatpush2.bf16.msra.mxu0 0
  %1126 = vmatprep.subr.bf16.mxu0 0
  %1127 = vmatpush2.bf16.msra.mxu0 0
  %1128 = vmatprep.subr.bf16.mxu0 0
  %1129 = vmatpush2.bf16.msra.mxu0 0
  %1130 = vmatprep.mubr.bf16.mxu0 0
  %1131 = vmatmul.mubr.bf16.gmra.mxu0 %v1087
  %v1132 = vpop.f32.mrf.mxu0
  %v1133 = vadd.f32 %v79, %v1132
  %v1134 = vpop.f32.mrf.mxu0
  %v1135 = vpop.f32.mrf.mxu0
  %v1136 = vadd.f32 %v79, %v1135
  %v1137 = vpop.f32.mrf.mxu0
  %1138 = vmatprep.mubr.bf16.mxu0 0
  %1139 = vmatmul.mubr.bf16.gmra.mxu0 %v1090
  %v1140 = vpop.f32.mrf.mxu0
  %v1141 = vadd.f32 %v79, %v1140
  %v1142 = vpop.f32.mrf.mxu0
  %v1143 = vpop.f32.mrf.mxu0
  %v1144 = vadd.f32 %v79, %v1143
  %v1145 = vpop.f32.mrf.mxu0
  %1146 = vmatprep.mubr.bf16.mxu0 0
  %1147 = vmatmul.mubr.bf16.gmra.mxu0 %v1093
  %v1148 = vpop.f32.mrf.mxu0
  %v1149 = vadd.f32 %v79, %v1148
  %v1150 = vpop.f32.mrf.mxu0
  %v1151 = vpop.f32.mrf.mxu0
  %v1152 = vadd.f32 %v79, %v1151
  %v1153 = vpop.f32.mrf.mxu0
  %1154 = vmatprep.mubr.bf16.mxu0 0
  %1155 = vmatmul.mubr.bf16.gmra.mxu0 %v1096
  %v1156 = vpop.f32.mrf.mxu0
  %v1157 = vadd.f32 %v79, %v1156
  %v1158 = vpop.f32.mrf.mxu0
  %v1159 = vpop.f32.mrf.mxu0
  %v1160 = vadd.f32 %v79, %v1159
  %v1161 = vpop.f32.mrf.mxu0
  %1162 = vdwg.mxu0
  %v1163 = vpack.c.bf16 %v1059, %v1058
  %v1164 = vpack.c.bf16 %v1061, %v1060
  %v1165 = vpack.c.bf16 %v1063, %v1062
  %v1166 = vpack.c.bf16 %v1065, %v1064
  %v1168 = vsel %vm50, %v1163, 0
  %v1171 = vsel %vm50, %v1164, 0
  %v1174 = vsel %vm50, %v1165, 0
  %v1177 = vsel %vm50, %v1166, 0
  %1179 = vmatprep.subr.bf16.mxu0 0
  %1180 = vmatpush1.bf16.msra.mxu0 0
  %1181 = vmatprep.subr.bf16.mxu0 0
  %1182 = vmatpush1.bf16.msra.mxu0 0
  %1183 = vmatprep.subr.bf16.mxu0 0
  %1184 = vmatpush1.bf16.msra.mxu0 0
  %1185 = vmatprep.subr.bf16.mxu0 0
  %1186 = vmatpush1.bf16.msra.mxu0 0
  %1187 = vmatprep.subr.bf16.mxu0 0
  %1188 = vmatpush1.bf16.msra.mxu0 0
  %1189 = vmatprep.subr.bf16.mxu0 0
  %1190 = vmatpush1.bf16.msra.mxu0 0
  %1191 = vmatprep.subr.bf16.mxu0 0
  %1192 = vmatpush1.bf16.msra.mxu0 0
  %1193 = vmatprep.subr.bf16.mxu0 0
  %1194 = vmatpush1.bf16.msra.mxu0 %v191
  %1195 = vmatprep.subr.bf16.mxu0 0
  %1196 = vmatpush2.bf16.msra.mxu0 0
  %1197 = vmatprep.subr.bf16.mxu0 0
  %1198 = vmatpush2.bf16.msra.mxu0 0
  %1199 = vmatprep.subr.bf16.mxu0 0
  %1200 = vmatpush2.bf16.msra.mxu0 0
  %1201 = vmatprep.subr.bf16.mxu0 0
  %1202 = vmatpush2.bf16.msra.mxu0 0
  %1203 = vmatprep.subr.bf16.mxu0 0
  %1204 = vmatpush2.bf16.msra.mxu0 0
  %1205 = vmatprep.subr.bf16.mxu0 0
  %1206 = vmatpush2.bf16.msra.mxu0 0
  %1207 = vmatprep.subr.bf16.mxu0 0
  %1208 = vmatpush2.bf16.msra.mxu0 0
  %1209 = vmatprep.subr.bf16.mxu0 0
  %1210 = vmatpush2.bf16.msra.mxu0 0
  %1211 = vmatprep.mubr.bf16.mxu0 0
  %1212 = vmatmul.mubr.bf16.gmra.mxu0 %v1168
  %v1213 = vpop.f32.mrf.mxu0
  %v1214 = vadd.f32 0.0, %v1213
  %v1215 = vpop.f32.mrf.mxu0
  %v1216 = vpop.f32.mrf.mxu0
  %v1217 = vadd.f32 0.0, %v1216
  %v1218 = vpop.f32.mrf.mxu0
  %1219 = vmatprep.mubr.bf16.mxu0 0
  %1220 = vmatmul.mubr.bf16.gmra.mxu0 %v1171
  %v1221 = vpop.f32.mrf.mxu0
  %v1222 = vadd.f32 0.0, %v1221
  %v1223 = vpop.f32.mrf.mxu0
  %v1224 = vpop.f32.mrf.mxu0
  %v1225 = vadd.f32 0.0, %v1224
  %v1226 = vpop.f32.mrf.mxu0
  %1227 = vmatprep.mubr.bf16.mxu0 0
  %1228 = vmatmul.mubr.bf16.gmra.mxu0 %v1174
  %v1229 = vpop.f32.mrf.mxu0
  %v1230 = vadd.f32 0.0, %v1229
  %v1231 = vpop.f32.mrf.mxu0
  %v1232 = vpop.f32.mrf.mxu0
  %v1233 = vadd.f32 0.0, %v1232
  %v1234 = vpop.f32.mrf.mxu0
  %1235 = vmatprep.mubr.bf16.mxu0 0
  %1236 = vmatmul.mubr.bf16.gmra.mxu0 %v1177
  %v1237 = vpop.f32.mrf.mxu0
  %v1238 = vadd.f32 0.0, %v1237
  %v1239 = vpop.f32.mrf.mxu0
  %v1240 = vpop.f32.mrf.mxu0
  %v1241 = vadd.f32 0.0, %v1240
  %v1242 = vpop.f32.mrf.mxu0
  %1243 = vdwg.mxu0
  %v1244 = vadd.f32 %v1133, %v1214
  %v1245 = vadd.f32 %v1136, %v1217
  %v1246 = vadd.f32 %v1141, %v1222
  %v1247 = vadd.f32 %v1144, %v1225
  %v1248 = vadd.f32 %v1149, %v1230
  %v1249 = vadd.f32 %v1152, %v1233
  %v1250 = vadd.f32 %v1157, %v1238
  %v1251 = vadd.f32 %v1160, %v1241
  %v1252 = vxor.u32 %v1244, 2147483648
  %v1253 = vxor.u32 %v1245, 2147483648
  %v1254 = vxor.u32 %v1246, 2147483648
  %v1255 = vxor.u32 %v1247, 2147483648
  %v1256 = vxor.u32 %v1248, 2147483648
  %v1257 = vxor.u32 %v1249, 2147483648
  %v1258 = vxor.u32 %v1250, 2147483648
  %v1259 = vxor.u32 %v1251, 2147483648
  %v1260 = vmul.f32 %v1252, 1.442695
  %v1261 = vpow.pop %v1260
  %v1262 = vmul.f32 %v1253, 1.442695
  %v1263 = vpow.pop %v1262
  %v1264 = vmul.f32 %v1254, 1.442695
  %v1265 = vpow.pop %v1264
  %v1266 = vmul.f32 %v1255, 1.442695
  %v1267 = vpow.pop %v1266
  %v1268 = vmul.f32 %v1256, 1.442695
  %v1269 = vpow.pop %v1268
  %v1270 = vmul.f32 %v1257, 1.442695
  %v1271 = vpow.pop %v1270
  %v1272 = vmul.f32 %v1258, 1.442695
  %v1273 = vpow.pop %v1272
  %v1274 = vmul.f32 %v1259, 1.442695
  %v1275 = vpow.pop %v1274
  %v1276 = vadd.f32 %v1261, 1.0
  %v1277 = vadd.f32 %v1263, 1.0
  %v1278 = vadd.f32 %v1265, 1.0
  %v1279 = vadd.f32 %v1267, 1.0
  %v1280 = vadd.f32 %v1269, 1.0
  %v1281 = vadd.f32 %v1271, 1.0
  %v1282 = vadd.f32 %v1273, 1.0
  %v1283 = vadd.f32 %v1275, 1.0
  %v1284 = vrcp.pop %v1276
  %v1285 = vmul.f32 1.0, %v1284
  %v1286 = vrcp.pop %v1277
  %v1287 = vmul.f32 1.0, %v1286
  %v1288 = vrcp.pop %v1278
  %v1289 = vmul.f32 1.0, %v1288
  %v1290 = vrcp.pop %v1279
  %v1291 = vmul.f32 1.0, %v1290
  %v1292 = vrcp.pop %v1280
  %v1293 = vmul.f32 1.0, %v1292
  %v1294 = vrcp.pop %v1281
  %v1295 = vmul.f32 1.0, %v1294
  %v1296 = vrcp.pop %v1282
  %v1297 = vmul.f32 1.0, %v1296
  %v1298 = vrcp.pop %v1283
  %v1299 = vmul.f32 1.0, %v1298
  %v1300 = vadd.f32 %v1214, %v332
  %v1301 = vadd.f32 %v1217, %v332
  %v1302 = vadd.f32 %v1222, %v332
  %v1303 = vadd.f32 %v1225, %v332
  %v1304 = vadd.f32 %v1230, %v332
  %v1305 = vadd.f32 %v1233, %v332
  %v1306 = vadd.f32 %v1238, %v332
  %v1307 = vadd.f32 %v1241, %v332
  %1316 = vrot.lane.b32.xlu0 %v1300, 96
  %v1317 = vpop.permute.xlu0 %1316
  %1318 = vrot.lane.b32.xlu0 %v1301, 96
  %v1319 = vpop.permute.xlu0 %1318
  %1320 = vrot.lane.b32.xlu0 %v1302, 96
  %v1321 = vpop.permute.xlu0 %1320
  %1322 = vrot.lane.b32.xlu0 %v1303, 96
  %v1323 = vpop.permute.xlu0 %1322
  %1324 = vrot.lane.b32.xlu0 %v1304, 96
  %v1325 = vpop.permute.xlu0 %1324
  %1326 = vrot.lane.b32.xlu0 %v1305, 96
  %v1327 = vpop.permute.xlu0 %1326
  %1328 = vrot.lane.b32.xlu0 %v1306, 96
  %v1329 = vpop.permute.xlu0 %1328
  %1330 = vrot.lane.b32.xlu0 %v1307, 96
  %v1331 = vpop.permute.xlu0 %1330
  %v1340 = vmul.f32 %v1285, %v1317
  %v1341 = vmul.f32 %v1287, %v1319
  %v1342 = vmul.f32 %v1289, %v1321
  %v1343 = vmul.f32 %v1291, %v1323
  %v1344 = vmul.f32 %v1293, %v1325
  %v1345 = vmul.f32 %v1295, %v1327
  %v1346 = vmul.f32 %v1297, %v1329
  %v1347 = vmul.f32 %v1299, %v1331
  %1356 = vrot.lane.b32.xlu0 %v1340, 32
  %v1357 = vpop.permute.xlu0 %1356
  %1358 = vrot.lane.b32.xlu0 %v1341, 32
  %v1359 = vpop.permute.xlu0 %1358
  %1360 = vrot.lane.b32.xlu0 %v1342, 32
  %v1361 = vpop.permute.xlu0 %1360
  %1362 = vrot.lane.b32.xlu0 %v1343, 32
  %v1363 = vpop.permute.xlu0 %1362
  %1364 = vrot.lane.b32.xlu0 %v1344, 32
  %v1365 = vpop.permute.xlu0 %1364
  %1366 = vrot.lane.b32.xlu0 %v1345, 32
  %v1367 = vpop.permute.xlu0 %1366
  %1368 = vrot.lane.b32.xlu0 %v1346, 32
  %v1369 = vpop.permute.xlu0 %1368
  %1370 = vrot.lane.b32.xlu0 %v1347, 32
  %v1371 = vpop.permute.xlu0 %1370
  %v1380 = vadd.f32 %v1133, %v1357
  %v1381 = vadd.f32 %v1136, %v1359
  %v1382 = vadd.f32 %v1141, %v1361
  %v1383 = vadd.f32 %v1144, %v1363
  %v1384 = vadd.f32 %v1149, %v1365
  %v1385 = vadd.f32 %v1152, %v1367
  %v1386 = vadd.f32 %v1157, %v1369
  %v1387 = vadd.f32 %v1160, %v1371
  %v1388 = vtanh.pop %v1380
  %v1389 = vtanh.pop %v1381
  %v1390 = vtanh.pop %v1382
  %v1391 = vtanh.pop %v1383
  %v1392 = vtanh.pop %v1384
  %v1393 = vtanh.pop %v1385
  %v1394 = vtanh.pop %v1386
  %v1395 = vtanh.pop %v1387
  %v1396 = vsub.f32 1.0, %v1285
  %v1397 = vsub.f32 1.0, %v1287
  %v1398 = vsub.f32 1.0, %v1289
  %v1399 = vsub.f32 1.0, %v1291
  %v1400 = vsub.f32 1.0, %v1293
  %v1401 = vsub.f32 1.0, %v1295
  %v1402 = vsub.f32 1.0, %v1297
  %v1403 = vsub.f32 1.0, %v1299
  %1412 = vrot.lane.b32.xlu0 %v1388, 112
  %v1413 = vpop.permute.xlu0 %1412
  %1414 = vrot.lane.b32.xlu0 %v1389, 112
  %v1415 = vpop.permute.xlu0 %1414
  %1416 = vrot.lane.b32.xlu0 %v1390, 112
  %v1417 = vpop.permute.xlu0 %1416
  %1418 = vrot.lane.b32.xlu0 %v1391, 112
  %v1419 = vpop.permute.xlu0 %1418
  %1420 = vrot.lane.b32.xlu0 %v1392, 112
  %v1421 = vpop.permute.xlu0 %1420
  %1422 = vrot.lane.b32.xlu0 %v1393, 112
  %v1423 = vpop.permute.xlu0 %1422
  %1424 = vrot.lane.b32.xlu0 %v1394, 112
  %v1425 = vpop.permute.xlu0 %1424
  %1426 = vrot.lane.b32.xlu0 %v1395, 112
  %v1427 = vpop.permute.xlu0 %1426
  %v1436 = vmul.f32 %v1396, %v1413
  %v1437 = vmul.f32 %v1397, %v1415
  %v1438 = vmul.f32 %v1398, %v1417
  %v1439 = vmul.f32 %v1399, %v1419
  %v1440 = vmul.f32 %v1400, %v1421
  %v1441 = vmul.f32 %v1401, %v1423
  %v1442 = vmul.f32 %v1402, %v1425
  %v1443 = vmul.f32 %v1403, %v1427
  %1452 = vrot.lane.b32.xlu0 %v1058, 16
  %v1453 = vpop.permute.xlu0 %1452
  %1454 = vrot.lane.b32.xlu0 %v1059, 16
  %v1455 = vpop.permute.xlu0 %1454
  %1456 = vrot.lane.b32.xlu0 %v1060, 16
  %v1457 = vpop.permute.xlu0 %1456
  %1458 = vrot.lane.b32.xlu0 %v1061, 16
  %v1459 = vpop.permute.xlu0 %1458
  %1460 = vrot.lane.b32.xlu0 %v1062, 16
  %v1461 = vpop.permute.xlu0 %1460
  %1462 = vrot.lane.b32.xlu0 %v1063, 16
  %v1463 = vpop.permute.xlu0 %1462
  %1464 = vrot.lane.b32.xlu0 %v1064, 16
  %v1465 = vpop.permute.xlu0 %1464
  %1466 = vrot.lane.b32.xlu0 %v1065, 16
  %v1467 = vpop.permute.xlu0 %1466
  %v1476 = vmul.f32 %v1285, %v1453
  %v1477 = vmul.f32 %v1287, %v1455
  %v1478 = vmul.f32 %v1289, %v1457
  %v1479 = vmul.f32 %v1291, %v1459
  %v1480 = vmul.f32 %v1293, %v1461
  %v1481 = vmul.f32 %v1295, %v1463
  %v1482 = vmul.f32 %v1297, %v1465
  %v1483 = vmul.f32 %v1299, %v1467
  %v1484 = vadd.f32 %v1436, %v1476
  %v1485 = vadd.f32 %v1437, %v1477
  %v1486 = vadd.f32 %v1438, %v1478
  %v1487 = vadd.f32 %v1439, %v1479
  %v1488 = vadd.f32 %v1440, %v1480
  %v1489 = vadd.f32 %v1441, %v1481
  %v1490 = vadd.f32 %v1442, %v1482
  %v1491 = vadd.f32 %v1443, %v1483
  %1500 = vrot.lane.b32.xlu0 %v1484, 112
  %v1501 = vpop.permute.xlu0 %1500
  %1502 = vrot.lane.b32.xlu0 %v1485, 112
  %v1503 = vpop.permute.xlu0 %1502
  %1504 = vrot.lane.b32.xlu0 %v1486, 112
  %v1505 = vpop.permute.xlu0 %1504
  %1506 = vrot.lane.b32.xlu0 %v1487, 112
  %v1507 = vpop.permute.xlu0 %1506
  %1508 = vrot.lane.b32.xlu0 %v1488, 112
  %v1509 = vpop.permute.xlu0 %1508
  %1510 = vrot.lane.b32.xlu0 %v1489, 112
  %v1511 = vpop.permute.xlu0 %1510
  %1512 = vrot.lane.b32.xlu0 %v1490, 112
  %v1513 = vpop.permute.xlu0 %1512
  %1514 = vrot.lane.b32.xlu0 %v1491, 112
  %v1515 = vpop.permute.xlu0 %1514
  %1524 = vst.msk [vmem:[#allocation2] sm:$0xff] %vm50, %v1501
  %1525 = vst.msk [vmem:[#allocation2 + $0x8] sm:$0xff] %vm50, %v1503
  %1526 = vst.msk [vmem:[#allocation2 + $0x10] sm:$0xff] %vm50, %v1505
  %1527 = vst.msk [vmem:[#allocation2 + $0x18] sm:$0xff] %vm50, %v1507
  %1528 = vst.msk [vmem:[#allocation2 + $0x20] sm:$0xff] %vm50, %v1509
  %1529 = vst.msk [vmem:[#allocation2 + $0x28] sm:$0xff] %vm50, %v1511
  %1530 = vst.msk [vmem:[#allocation2 + $0x30] sm:$0xff] %vm50, %v1513
  %1531 = vst.msk [vmem:[#allocation2 + $0x38] sm:$0xff] %vm50, %v1515
  %s1532 = scalar_lea.vmem %s0, 96
  %v1533 = vld [vmem:[%s1532] sm:$0xf]
  %v1534 = vld [vmem:[%s1532 + $0x4] sm:$0xf]
  %v1535 = vld [vmem:[%s1532 + $0x8] sm:$0xf]
  %v1536 = vld [vmem:[%s1532 + $0xc] sm:$0xf]
  %v1537 = vld [vmem:[%s1532 + $0x10] sm:$0xf]
  %v1538 = vld [vmem:[%s1532 + $0x14] sm:$0xf]
  %v1539 = vld [vmem:[%s1532 + $0x18] sm:$0xf]
  %v1540 = vld [vmem:[%s1532 + $0x1c] sm:$0xf]
  %v1541 = vld [vmem:[#allocation2] sm:$0xff]
  %v1542 = vld [vmem:[#allocation2 + $0x8] sm:$0xff]
  %v1543 = vld [vmem:[#allocation2 + $0x10] sm:$0xff]
  %v1544 = vld [vmem:[#allocation2 + $0x18] sm:$0xff]
  %v1545 = vld [vmem:[#allocation2 + $0x20] sm:$0xff]
  %v1546 = vld [vmem:[#allocation2 + $0x28] sm:$0xff]
  %v1547 = vld [vmem:[#allocation2 + $0x30] sm:$0xff]
  %v1548 = vld [vmem:[#allocation2 + $0x38] sm:$0xff]
  %v1557 = vunpack.c.l.b16 %v1533
  %v1558 = vunpack.c.l.b16 %v1534
  %v1559 = vunpack.c.l.b16 %v1535
  %v1560 = vunpack.c.l.b16 %v1536
  %v1561 = vunpack.c.l.b16 %v1537
  %v1562 = vunpack.c.l.b16 %v1538
  %v1563 = vunpack.c.l.b16 %v1539
  %v1564 = vunpack.c.l.b16 %v1540
  %v1565 = vpack.c.b16 %v1558, %v1557
  %v1566 = vpack.c.b16 %v1560, %v1559
  %v1567 = vpack.c.b16 %v1562, %v1561
  %v1568 = vpack.c.b16 %v1564, %v1563
  %v1570 = vsel %vm101, %v1565, 0
  %v1573 = vsel %vm101, %v1566, 0
  %v1576 = vsel %vm101, %v1567, 0
  %v1579 = vsel %vm101, %v1568, 0
  %1581 = vmatprep.subr.bf16.mxu0 0
  %1582 = vmatpush1.bf16.msra.mxu0 0
  %1583 = vmatprep.subr.bf16.mxu0 0
  %1584 = vmatpush1.bf16.msra.mxu0 0
  %1585 = vmatprep.subr.bf16.mxu0 0
  %1586 = vmatpush1.bf16.msra.mxu0 0
  %1587 = vmatprep.subr.bf16.mxu0 0
  %1588 = vmatpush1.bf16.msra.mxu0 0
  %1589 = vmatprep.subr.bf16.mxu0 0
  %1590 = vmatpush1.bf16.msra.mxu0 0
  %1591 = vmatprep.subr.bf16.mxu0 0
  %1592 = vmatpush1.bf16.msra.mxu0 0
  %1593 = vmatprep.subr.bf16.mxu0 0
  %1594 = vmatpush1.bf16.msra.mxu0 0
  %1595 = vmatprep.subr.bf16.mxu0 0
  %1596 = vmatpush1.bf16.msra.mxu0 %v116
  %1597 = vmatprep.subr.bf16.mxu0 0
  %1598 = vmatpush2.bf16.msra.mxu0 0
  %1599 = vmatprep.subr.bf16.mxu0 0
  %1600 = vmatpush2.bf16.msra.mxu0 0
  %1601 = vmatprep.subr.bf16.mxu0 0
  %1602 = vmatpush2.bf16.msra.mxu0 0
  %1603 = vmatprep.subr.bf16.mxu0 0
  %1604 = vmatpush2.bf16.msra.mxu0 0
  %1605 = vmatprep.subr.bf16.mxu0 0
  %1606 = vmatpush2.bf16.msra.mxu0 0
  %1607 = vmatprep.subr.bf16.mxu0 0
  %1608 = vmatpush2.bf16.msra.mxu0 0
  %1609 = vmatprep.subr.bf16.mxu0 0
  %1610 = vmatpush2.bf16.msra.mxu0 0
  %1611 = vmatprep.subr.bf16.mxu0 0
  %1612 = vmatpush2.bf16.msra.mxu0 0
  %1613 = vmatprep.mubr.bf16.mxu0 0
  %1614 = vmatmul.mubr.bf16.gmra.mxu0 %v1570
  %v1615 = vpop.f32.mrf.mxu0
  %v1616 = vadd.f32 %v79, %v1615
  %v1617 = vpop.f32.mrf.mxu0
  %v1618 = vpop.f32.mrf.mxu0
  %v1619 = vadd.f32 %v79, %v1618
  %v1620 = vpop.f32.mrf.mxu0
  %1621 = vmatprep.mubr.bf16.mxu0 0
  %1622 = vmatmul.mubr.bf16.gmra.mxu0 %v1573
  %v1623 = vpop.f32.mrf.mxu0
  %v1624 = vadd.f32 %v79, %v1623
  %v1625 = vpop.f32.mrf.mxu0
  %v1626 = vpop.f32.mrf.mxu0
  %v1627 = vadd.f32 %v79, %v1626
  %v1628 = vpop.f32.mrf.mxu0
  %1629 = vmatprep.mubr.bf16.mxu0 0
  %1630 = vmatmul.mubr.bf16.gmra.mxu0 %v1576
  %v1631 = vpop.f32.mrf.mxu0
  %v1632 = vadd.f32 %v79, %v1631
  %v1633 = vpop.f32.mrf.mxu0
  %v1634 = vpop.f32.mrf.mxu0
  %v1635 = vadd.f32 %v79, %v1634
  %v1636 = vpop.f32.mrf.mxu0
  %1637 = vmatprep.mubr.bf16.mxu0 0
  %1638 = vmatmul.mubr.bf16.gmra.mxu0 %v1579
  %v1639 = vpop.f32.mrf.mxu0
  %v1640 = vadd.f32 %v79, %v1639
  %v1641 = vpop.f32.mrf.mxu0
  %v1642 = vpop.f32.mrf.mxu0
  %v1643 = vadd.f32 %v79, %v1642
  %v1644 = vpop.f32.mrf.mxu0
  %1645 = vdwg.mxu0
  %v1646 = vpack.c.bf16 %v1542, %v1541
  %v1647 = vpack.c.bf16 %v1544, %v1543
  %v1648 = vpack.c.bf16 %v1546, %v1545
  %v1649 = vpack.c.bf16 %v1548, %v1547
  %v1651 = vsel %vm50, %v1646, 0
  %v1654 = vsel %vm50, %v1647, 0
  %v1657 = vsel %vm50, %v1648, 0
  %v1660 = vsel %vm50, %v1649, 0
  %1662 = vmatprep.subr.bf16.mxu0 0
  %1663 = vmatpush1.bf16.msra.mxu0 0
  %1664 = vmatprep.subr.bf16.mxu0 0
  %1665 = vmatpush1.bf16.msra.mxu0 0
  %1666 = vmatprep.subr.bf16.mxu0 0
  %1667 = vmatpush1.bf16.msra.mxu0 0
  %1668 = vmatprep.subr.bf16.mxu0 0
  %1669 = vmatpush1.bf16.msra.mxu0 0
  %1670 = vmatprep.subr.bf16.mxu0 0
  %1671 = vmatpush1.bf16.msra.mxu0 0
  %1672 = vmatprep.subr.bf16.mxu0 0
  %1673 = vmatpush1.bf16.msra.mxu0 0
  %1674 = vmatprep.subr.bf16.mxu0 0
  %1675 = vmatpush1.bf16.msra.mxu0 0
  %1676 = vmatprep.subr.bf16.mxu0 0
  %1677 = vmatpush1.bf16.msra.mxu0 %v191
  %1678 = vmatprep.subr.bf16.mxu0 0
  %1679 = vmatpush2.bf16.msra.mxu0 0
  %1680 = vmatprep.subr.bf16.mxu0 0
  %1681 = vmatpush2.bf16.msra.mxu0 0
  %1682 = vmatprep.subr.bf16.mxu0 0
  %1683 = vmatpush2.bf16.msra.mxu0 0
  %1684 = vmatprep.subr.bf16.mxu0 0
  %1685 = vmatpush2.bf16.msra.mxu0 0
  %1686 = vmatprep.subr.bf16.mxu0 0
  %1687 = vmatpush2.bf16.msra.mxu0 0
  %1688 = vmatprep.subr.bf16.mxu0 0
  %1689 = vmatpush2.bf16.msra.mxu0 0
  %1690 = vmatprep.subr.bf16.mxu0 0
  %1691 = vmatpush2.bf16.msra.mxu0 0
  %1692 = vmatprep.subr.bf16.mxu0 0
  %1693 = vmatpush2.bf16.msra.mxu0 0
  %1694 = vmatprep.mubr.bf16.mxu0 0
  %1695 = vmatmul.mubr.bf16.gmra.mxu0 %v1651
  %v1696 = vpop.f32.mrf.mxu0
  %v1697 = vadd.f32 0.0, %v1696
  %v1698 = vpop.f32.mrf.mxu0
  %v1699 = vpop.f32.mrf.mxu0
  %v1700 = vadd.f32 0.0, %v1699
  %v1701 = vpop.f32.mrf.mxu0
  %1702 = vmatprep.mubr.bf16.mxu0 0
  %1703 = vmatmul.mubr.bf16.gmra.mxu0 %v1654
  %v1704 = vpop.f32.mrf.mxu0
  %v1705 = vadd.f32 0.0, %v1704
  %v1706 = vpop.f32.mrf.mxu0
  %v1707 = vpop.f32.mrf.mxu0
  %v1708 = vadd.f32 0.0, %v1707
  %v1709 = vpop.f32.mrf.mxu0
  %1710 = vmatprep.mubr.bf16.mxu0 0
  %1711 = vmatmul.mubr.bf16.gmra.mxu0 %v1657
  %v1712 = vpop.f32.mrf.mxu0
  %v1713 = vadd.f32 0.0, %v1712
  %v1714 = vpop.f32.mrf.mxu0
  %v1715 = vpop.f32.mrf.mxu0
  %v1716 = vadd.f32 0.0, %v1715
  %v1717 = vpop.f32.mrf.mxu0
  %1718 = vmatprep.mubr.bf16.mxu0 0
  %1719 = vmatmul.mubr.bf16.gmra.mxu0 %v1660
  %v1720 = vpop.f32.mrf.mxu0
  %v1721 = vadd.f32 0.0, %v1720
  %v1722 = vpop.f32.mrf.mxu0
  %v1723 = vpop.f32.mrf.mxu0
  %v1724 = vadd.f32 0.0, %v1723
  %v1725 = vpop.f32.mrf.mxu0
  %1726 = vdwg.mxu0
  %v1727 = vadd.f32 %v1616, %v1697
  %v1728 = vadd.f32 %v1619, %v1700
  %v1729 = vadd.f32 %v1624, %v1705
  %v1730 = vadd.f32 %v1627, %v1708
  %v1731 = vadd.f32 %v1632, %v1713
  %v1732 = vadd.f32 %v1635, %v1716
  %v1733 = vadd.f32 %v1640, %v1721
  %v1734 = vadd.f32 %v1643, %v1724
  %v1735 = vxor.u32 %v1727, 2147483648
  %v1736 = vxor.u32 %v1728, 2147483648
  %v1737 = vxor.u32 %v1729, 2147483648
  %v1738 = vxor.u32 %v1730, 2147483648
  %v1739 = vxor.u32 %v1731, 2147483648
  %v1740 = vxor.u32 %v1732, 2147483648
  %v1741 = vxor.u32 %v1733, 2147483648
  %v1742 = vxor.u32 %v1734, 2147483648
  %v1743 = vmul.f32 %v1735, 1.442695
  %v1744 = vpow.pop %v1743
  %v1745 = vmul.f32 %v1736, 1.442695
  %v1746 = vpow.pop %v1745
  %v1747 = vmul.f32 %v1737, 1.442695
  %v1748 = vpow.pop %v1747
  %v1749 = vmul.f32 %v1738, 1.442695
  %v1750 = vpow.pop %v1749
  %v1751 = vmul.f32 %v1739, 1.442695
  %v1752 = vpow.pop %v1751
  %v1753 = vmul.f32 %v1740, 1.442695
  %v1754 = vpow.pop %v1753
  %v1755 = vmul.f32 %v1741, 1.442695
  %v1756 = vpow.pop %v1755
  %v1757 = vmul.f32 %v1742, 1.442695
  %v1758 = vpow.pop %v1757
  %v1759 = vadd.f32 %v1744, 1.0
  %v1760 = vadd.f32 %v1746, 1.0
  %v1761 = vadd.f32 %v1748, 1.0
  %v1762 = vadd.f32 %v1750, 1.0
  %v1763 = vadd.f32 %v1752, 1.0
  %v1764 = vadd.f32 %v1754, 1.0
  %v1765 = vadd.f32 %v1756, 1.0
  %v1766 = vadd.f32 %v1758, 1.0
  %v1767 = vrcp.pop %v1759
  %v1768 = vmul.f32 1.0, %v1767
  %v1769 = vrcp.pop %v1760
  %v1770 = vmul.f32 1.0, %v1769
  %v1771 = vrcp.pop %v1761
  %v1772 = vmul.f32 1.0, %v1771
  %v1773 = vrcp.pop %v1762
  %v1774 = vmul.f32 1.0, %v1773
  %v1775 = vrcp.pop %v1763
  %v1776 = vmul.f32 1.0, %v1775
  %v1777 = vrcp.pop %v1764
  %v1778 = vmul.f32 1.0, %v1777
  %v1779 = vrcp.pop %v1765
  %v1780 = vmul.f32 1.0, %v1779
  %v1781 = vrcp.pop %v1766
  %v1782 = vmul.f32 1.0, %v1781
  %v1783 = vadd.f32 %v1697, %v332
  %v1784 = vadd.f32 %v1700, %v332
  %v1785 = vadd.f32 %v1705, %v332
  %v1786 = vadd.f32 %v1708, %v332
  %v1787 = vadd.f32 %v1713, %v332
  %v1788 = vadd.f32 %v1716, %v332
  %v1789 = vadd.f32 %v1721, %v332
  %v1790 = vadd.f32 %v1724, %v332
  %1799 = vrot.lane.b32.xlu0 %v1783, 96
  %v1800 = vpop.permute.xlu0 %1799
  %1801 = vrot.lane.b32.xlu0 %v1784, 96
  %v1802 = vpop.permute.xlu0 %1801
  %1803 = vrot.lane.b32.xlu0 %v1785, 96
  %v1804 = vpop.permute.xlu0 %1803
  %1805 = vrot.lane.b32.xlu0 %v1786, 96
  %v1806 = vpop.permute.xlu0 %1805
  %1807 = vrot.lane.b32.xlu0 %v1787, 96
  %v1808 = vpop.permute.xlu0 %1807
  %1809 = vrot.lane.b32.xlu0 %v1788, 96
  %v1810 = vpop.permute.xlu0 %1809
  %1811 = vrot.lane.b32.xlu0 %v1789, 96
  %v1812 = vpop.permute.xlu0 %1811
  %1813 = vrot.lane.b32.xlu0 %v1790, 96
  %v1814 = vpop.permute.xlu0 %1813
  %v1823 = vmul.f32 %v1768, %v1800
  %v1824 = vmul.f32 %v1770, %v1802
  %v1825 = vmul.f32 %v1772, %v1804
  %v1826 = vmul.f32 %v1774, %v1806
  %v1827 = vmul.f32 %v1776, %v1808
  %v1828 = vmul.f32 %v1778, %v1810
  %v1829 = vmul.f32 %v1780, %v1812
  %v1830 = vmul.f32 %v1782, %v1814
  %1839 = vrot.lane.b32.xlu0 %v1823, 32
  %v1840 = vpop.permute.xlu0 %1839
  %1841 = vrot.lane.b32.xlu0 %v1824, 32
  %v1842 = vpop.permute.xlu0 %1841
  %1843 = vrot.lane.b32.xlu0 %v1825, 32
  %v1844 = vpop.permute.xlu0 %1843
  %1845 = vrot.lane.b32.xlu0 %v1826, 32
  %v1846 = vpop.permute.xlu0 %1845
  %1847 = vrot.lane.b32.xlu0 %v1827, 32
  %v1848 = vpop.permute.xlu0 %1847
  %1849 = vrot.lane.b32.xlu0 %v1828, 32
  %v1850 = vpop.permute.xlu0 %1849
  %1851 = vrot.lane.b32.xlu0 %v1829, 32
  %v1852 = vpop.permute.xlu0 %1851
  %1853 = vrot.lane.b32.xlu0 %v1830, 32
  %v1854 = vpop.permute.xlu0 %1853
  %v1863 = vadd.f32 %v1616, %v1840
  %v1864 = vadd.f32 %v1619, %v1842
  %v1865 = vadd.f32 %v1624, %v1844
  %v1866 = vadd.f32 %v1627, %v1846
  %v1867 = vadd.f32 %v1632, %v1848
  %v1868 = vadd.f32 %v1635, %v1850
  %v1869 = vadd.f32 %v1640, %v1852
  %v1870 = vadd.f32 %v1643, %v1854
  %v1871 = vtanh.pop %v1863
  %v1872 = vtanh.pop %v1864
  %v1873 = vtanh.pop %v1865
  %v1874 = vtanh.pop %v1866
  %v1875 = vtanh.pop %v1867
  %v1876 = vtanh.pop %v1868
  %v1877 = vtanh.pop %v1869
  %v1878 = vtanh.pop %v1870
  %v1879 = vsub.f32 1.0, %v1768
  %v1880 = vsub.f32 1.0, %v1770
  %v1881 = vsub.f32 1.0, %v1772
  %v1882 = vsub.f32 1.0, %v1774
  %v1883 = vsub.f32 1.0, %v1776
  %v1884 = vsub.f32 1.0, %v1778
  %v1885 = vsub.f32 1.0, %v1780
  %v1886 = vsub.f32 1.0, %v1782
  %1895 = vrot.lane.b32.xlu0 %v1871, 112
  %v1896 = vpop.permute.xlu0 %1895
  %1897 = vrot.lane.b32.xlu0 %v1872, 112
  %v1898 = vpop.permute.xlu0 %1897
  %1899 = vrot.lane.b32.xlu0 %v1873, 112
  %v1900 = vpop.permute.xlu0 %1899
  %1901 = vrot.lane.b32.xlu0 %v1874, 112
  %v1902 = vpop.permute.xlu0 %1901
  %1903 = vrot.lane.b32.xlu0 %v1875, 112
  %v1904 = vpop.permute.xlu0 %1903
  %1905 = vrot.lane.b32.xlu0 %v1876, 112
  %v1906 = vpop.permute.xlu0 %1905
  %1907 = vrot.lane.b32.xlu0 %v1877, 112
  %v1908 = vpop.permute.xlu0 %1907
  %1909 = vrot.lane.b32.xlu0 %v1878, 112
  %v1910 = vpop.permute.xlu0 %1909
  %v1919 = vmul.f32 %v1879, %v1896
  %v1920 = vmul.f32 %v1880, %v1898
  %v1921 = vmul.f32 %v1881, %v1900
  %v1922 = vmul.f32 %v1882, %v1902
  %v1923 = vmul.f32 %v1883, %v1904
  %v1924 = vmul.f32 %v1884, %v1906
  %v1925 = vmul.f32 %v1885, %v1908
  %v1926 = vmul.f32 %v1886, %v1910
  %1935 = vrot.lane.b32.xlu0 %v1541, 16
  %v1936 = vpop.permute.xlu0 %1935
  %1937 = vrot.lane.b32.xlu0 %v1542, 16
  %v1938 = vpop.permute.xlu0 %1937
  %1939 = vrot.lane.b32.xlu0 %v1543, 16
  %v1940 = vpop.permute.xlu0 %1939
  %1941 = vrot.lane.b32.xlu0 %v1544, 16
  %v1942 = vpop.permute.xlu0 %1941
  %1943 = vrot.lane.b32.xlu0 %v1545, 16
  %v1944 = vpop.permute.xlu0 %1943
  %1945 = vrot.lane.b32.xlu0 %v1546, 16
  %v1946 = vpop.permute.xlu0 %1945
  %1947 = vrot.lane.b32.xlu0 %v1547, 16
  %v1948 = vpop.permute.xlu0 %1947
  %1949 = vrot.lane.b32.xlu0 %v1548, 16
  %v1950 = vpop.permute.xlu0 %1949
  %v1959 = vmul.f32 %v1768, %v1936
  %v1960 = vmul.f32 %v1770, %v1938
  %v1961 = vmul.f32 %v1772, %v1940
  %v1962 = vmul.f32 %v1774, %v1942
  %v1963 = vmul.f32 %v1776, %v1944
  %v1964 = vmul.f32 %v1778, %v1946
  %v1965 = vmul.f32 %v1780, %v1948
  %v1966 = vmul.f32 %v1782, %v1950
  %v1967 = vadd.f32 %v1919, %v1959
  %v1968 = vadd.f32 %v1920, %v1960
  %v1969 = vadd.f32 %v1921, %v1961
  %v1970 = vadd.f32 %v1922, %v1962
  %v1971 = vadd.f32 %v1923, %v1963
  %v1972 = vadd.f32 %v1924, %v1964
  %v1973 = vadd.f32 %v1925, %v1965
  %v1974 = vadd.f32 %v1926, %v1966
  %1983 = vrot.lane.b32.xlu0 %v1967, 112
  %v1984 = vpop.permute.xlu0 %1983
  %1985 = vrot.lane.b32.xlu0 %v1968, 112
  %v1986 = vpop.permute.xlu0 %1985
  %1987 = vrot.lane.b32.xlu0 %v1969, 112
  %v1988 = vpop.permute.xlu0 %1987
  %1989 = vrot.lane.b32.xlu0 %v1970, 112
  %v1990 = vpop.permute.xlu0 %1989
  %1991 = vrot.lane.b32.xlu0 %v1971, 112
  %v1992 = vpop.permute.xlu0 %1991
  %1993 = vrot.lane.b32.xlu0 %v1972, 112
  %v1994 = vpop.permute.xlu0 %1993
  %1995 = vrot.lane.b32.xlu0 %v1973, 112
  %v1996 = vpop.permute.xlu0 %1995
  %1997 = vrot.lane.b32.xlu0 %v1974, 112
  %v1998 = vpop.permute.xlu0 %1997
  %2007 = vst.msk [vmem:[#allocation2] sm:$0xff] %vm50, %v1984
  %2008 = vst.msk [vmem:[#allocation2 + $0x8] sm:$0xff] %vm50, %v1986
  %2009 = vst.msk [vmem:[#allocation2 + $0x10] sm:$0xff] %vm50, %v1988
  %2010 = vst.msk [vmem:[#allocation2 + $0x18] sm:$0xff] %vm50, %v1990
  %2011 = vst.msk [vmem:[#allocation2 + $0x20] sm:$0xff] %vm50, %v1992
  %2012 = vst.msk [vmem:[#allocation2 + $0x28] sm:$0xff] %vm50, %v1994
  %2013 = vst.msk [vmem:[#allocation2 + $0x30] sm:$0xff] %vm50, %v1996
  %2014 = vst.msk [vmem:[#allocation2 + $0x38] sm:$0xff] %vm50, %v1998
  %s2015 = scalar_lea.vmem %s0, 128
  %v2016 = vld [vmem:[%s2015] sm:$0xf]
  %v2017 = vld [vmem:[%s2015 + $0x4] sm:$0xf]
  %v2018 = vld [vmem:[%s2015 + $0x8] sm:$0xf]
  %v2019 = vld [vmem:[%s2015 + $0xc] sm:$0xf]
  %v2020 = vld [vmem:[%s2015 + $0x10] sm:$0xf]
  %v2021 = vld [vmem:[%s2015 + $0x14] sm:$0xf]
  %v2022 = vld [vmem:[%s2015 + $0x18] sm:$0xf]
  %v2023 = vld [vmem:[%s2015 + $0x1c] sm:$0xf]
  %v2024 = vld [vmem:[#allocation2] sm:$0xff]
  %v2025 = vld [vmem:[#allocation2 + $0x8] sm:$0xff]
  %v2026 = vld [vmem:[#allocation2 + $0x10] sm:$0xff]
  %v2027 = vld [vmem:[#allocation2 + $0x18] sm:$0xff]
  %v2028 = vld [vmem:[#allocation2 + $0x20] sm:$0xff]
  %v2029 = vld [vmem:[#allocation2 + $0x28] sm:$0xff]
  %v2030 = vld [vmem:[#allocation2 + $0x30] sm:$0xff]
  %v2031 = vld [vmem:[#allocation2 + $0x38] sm:$0xff]
  %v2040 = vunpack.c.l.b16 %v2016
  %v2041 = vunpack.c.l.b16 %v2017
  %v2042 = vunpack.c.l.b16 %v2018
  %v2043 = vunpack.c.l.b16 %v2019
  %v2044 = vunpack.c.l.b16 %v2020
  %v2045 = vunpack.c.l.b16 %v2021
  %v2046 = vunpack.c.l.b16 %v2022
  %v2047 = vunpack.c.l.b16 %v2023
  %v2048 = vpack.c.b16 %v2041, %v2040
  %v2049 = vpack.c.b16 %v2043, %v2042
  %v2050 = vpack.c.b16 %v2045, %v2044
  %v2051 = vpack.c.b16 %v2047, %v2046
  %v2053 = vsel %vm101, %v2048, 0
  %v2056 = vsel %vm101, %v2049, 0
  %v2059 = vsel %vm101, %v2050, 0
  %v2062 = vsel %vm101, %v2051, 0
  %2064 = vmatprep.subr.bf16.mxu0 0
  %2065 = vmatpush1.bf16.msra.mxu0 0
  %2066 = vmatprep.subr.bf16.mxu0 0
  %2067 = vmatpush1.bf16.msra.mxu0 0
  %2068 = vmatprep.subr.bf16.mxu0 0
  %2069 = vmatpush1.bf16.msra.mxu0 0
  %2070 = vmatprep.subr.bf16.mxu0 0
  %2071 = vmatpush1.bf16.msra.mxu0 0
  %2072 = vmatprep.subr.bf16.mxu0 0
  %2073 = vmatpush1.bf16.msra.mxu0 0
  %2074 = vmatprep.subr.bf16.mxu0 0
  %2075 = vmatpush1.bf16.msra.mxu0 0
  %2076 = vmatprep.subr.bf16.mxu0 0
  %2077 = vmatpush1.bf16.msra.mxu0 0
  %2078 = vmatprep.subr.bf16.mxu0 0
  %2079 = vmatpush1.bf16.msra.mxu0 %v116
  %2080 = vmatprep.subr.bf16.mxu0 0
  %2081 = vmatpush2.bf16.msra.mxu0 0
  %2082 = vmatprep.subr.bf16.mxu0 0
  %2083 = vmatpush2.bf16.msra.mxu0 0
  %2084 = vmatprep.subr.bf16.mxu0 0
  %2085 = vmatpush2.bf16.msra.mxu0 0
  %2086 = vmatprep.subr.bf16.mxu0 0
  %2087 = vmatpush2.bf16.msra.mxu0 0
  %2088 = vmatprep.subr.bf16.mxu0 0
  %2089 = vmatpush2.bf16.msra.mxu0 0
  %2090 = vmatprep.subr.bf16.mxu0 0
  %2091 = vmatpush2.bf16.msra.mxu0 0
  %2092 = vmatprep.subr.bf16.mxu0 0
  %2093 = vmatpush2.bf16.msra.mxu0 0
  %2094 = vmatprep.subr.bf16.mxu0 0
  %2095 = vmatpush2.bf16.msra.mxu0 0
  %2096 = vmatprep.mubr.bf16.mxu0 0
  %2097 = vmatmul.mubr.bf16.gmra.mxu0 %v2053
  %v2098 = vpop.f32.mrf.mxu0
  %v2099 = vadd.f32 %v79, %v2098
  %v2100 = vpop.f32.mrf.mxu0
  %v2101 = vpop.f32.mrf.mxu0
  %v2102 = vadd.f32 %v79, %v2101
  %v2103 = vpop.f32.mrf.mxu0
  %2104 = vmatprep.mubr.bf16.mxu0 0
  %2105 = vmatmul.mubr.bf16.gmra.mxu0 %v2056
  %v2106 = vpop.f32.mrf.mxu0
  %v2107 = vadd.f32 %v79, %v2106
  %v2108 = vpop.f32.mrf.mxu0
  %v2109 = vpop.f32.mrf.mxu0
  %v2110 = vadd.f32 %v79, %v2109
  %v2111 = vpop.f32.mrf.mxu0
  %2112 = vmatprep.mubr.bf16.mxu0 0
  %2113 = vmatmul.mubr.bf16.gmra.mxu0 %v2059
  %v2114 = vpop.f32.mrf.mxu0
  %v2115 = vadd.f32 %v79, %v2114
  %v2116 = vpop.f32.mrf.mxu0
  %v2117 = vpop.f32.mrf.mxu0
  %v2118 = vadd.f32 %v79, %v2117
  %v2119 = vpop.f32.mrf.mxu0
  %2120 = vmatprep.mubr.bf16.mxu0 0
  %2121 = vmatmul.mubr.bf16.gmra.mxu0 %v2062
  %v2122 = vpop.f32.mrf.mxu0
  %v2123 = vadd.f32 %v79, %v2122
  %v2124 = vpop.f32.mrf.mxu0
  %v2125 = vpop.f32.mrf.mxu0
  %v2126 = vadd.f32 %v79, %v2125
  %v2127 = vpop.f32.mrf.mxu0
  %2128 = vdwg.mxu0
  %v2129 = vpack.c.bf16 %v2025, %v2024
  %v2130 = vpack.c.bf16 %v2027, %v2026
  %v2131 = vpack.c.bf16 %v2029, %v2028
  %v2132 = vpack.c.bf16 %v2031, %v2030
  %v2134 = vsel %vm50, %v2129, 0
  %v2137 = vsel %vm50, %v2130, 0
  %v2140 = vsel %vm50, %v2131, 0
  %v2143 = vsel %vm50, %v2132, 0
  %2145 = vmatprep.subr.bf16.mxu0 0
  %2146 = vmatpush1.bf16.msra.mxu0 0
  %2147 = vmatprep.subr.bf16.mxu0 0
  %2148 = vmatpush1.bf16.msra.mxu0 0
  %2149 = vmatprep.subr.bf16.mxu0 0
  %2150 = vmatpush1.bf16.msra.mxu0 0
  %2151 = vmatprep.subr.bf16.mxu0 0
  %2152 = vmatpush1.bf16.msra.mxu0 0
  %2153 = vmatprep.subr.bf16.mxu0 0
  %2154 = vmatpush1.bf16.msra.mxu0 0
  %2155 = vmatprep.subr.bf16.mxu0 0
  %2156 = vmatpush1.bf16.msra.mxu0 0
  %2157 = vmatprep.subr.bf16.mxu0 0
  %2158 = vmatpush1.bf16.msra.mxu0 0
  %2159 = vmatprep.subr.bf16.mxu0 0
  %2160 = vmatpush1.bf16.msra.mxu0 %v191
  %2161 = vmatprep.subr.bf16.mxu0 0
  %2162 = vmatpush2.bf16.msra.mxu0 0
  %2163 = vmatprep.subr.bf16.mxu0 0
  %2164 = vmatpush2.bf16.msra.mxu0 0
  %2165 = vmatprep.subr.bf16.mxu0 0
  %2166 = vmatpush2.bf16.msra.mxu0 0
  %2167 = vmatprep.subr.bf16.mxu0 0
  %2168 = vmatpush2.bf16.msra.mxu0 0
  %2169 = vmatprep.subr.bf16.mxu0 0
  %2170 = vmatpush2.bf16.msra.mxu0 0
  %2171 = vmatprep.subr.bf16.mxu0 0
  %2172 = vmatpush2.bf16.msra.mxu0 0
  %2173 = vmatprep.subr.bf16.mxu0 0
  %2174 = vmatpush2.bf16.msra.mxu0 0
  %2175 = vmatprep.subr.bf16.mxu0 0
  %2176 = vmatpush2.bf16.msra.mxu0 0
  %2177 = vmatprep.mubr.bf16.mxu0 0
  %2178 = vmatmul.mubr.bf16.gmra.mxu0 %v2134
  %v2179 = vpop.f32.mrf.mxu0
  %v2180 = vadd.f32 0.0, %v2179
  %v2181 = vpop.f32.mrf.mxu0
  %v2182 = vpop.f32.mrf.mxu0
  %v2183 = vadd.f32 0.0, %v2182
  %v2184 = vpop.f32.mrf.mxu0
  %2185 = vmatprep.mubr.bf16.mxu0 0
  %2186 = vmatmul.mubr.bf16.gmra.mxu0 %v2137
  %v2187 = vpop.f32.mrf.mxu0
  %v2188 = vadd.f32 0.0, %v2187
  %v2189 = vpop.f32.mrf.mxu0
  %v2190 = vpop.f32.mrf.mxu0
  %v2191 = vadd.f32 0.0, %v2190
  %v2192 = vpop.f32.mrf.mxu0
  %2193 = vmatprep.mubr.bf16.mxu0 0
  %2194 = vmatmul.mubr.bf16.gmra.mxu0 %v2140
  %v2195 = vpop.f32.mrf.mxu0
  %v2196 = vadd.f32 0.0, %v2195
  %v2197 = vpop.f32.mrf.mxu0
  %v2198 = vpop.f32.mrf.mxu0
  %v2199 = vadd.f32 0.0, %v2198
  %v2200 = vpop.f32.mrf.mxu0
  %2201 = vmatprep.mubr.bf16.mxu0 0
  %2202 = vmatmul.mubr.bf16.gmra.mxu0 %v2143
  %v2203 = vpop.f32.mrf.mxu0
  %v2204 = vadd.f32 0.0, %v2203
  %v2205 = vpop.f32.mrf.mxu0
  %v2206 = vpop.f32.mrf.mxu0
  %v2207 = vadd.f32 0.0, %v2206
  %v2208 = vpop.f32.mrf.mxu0
  %2209 = vdwg.mxu0
  %v2210 = vadd.f32 %v2099, %v2180
  %v2211 = vadd.f32 %v2102, %v2183
  %v2212 = vadd.f32 %v2107, %v2188
  %v2213 = vadd.f32 %v2110, %v2191
  %v2214 = vadd.f32 %v2115, %v2196
  %v2215 = vadd.f32 %v2118, %v2199
  %v2216 = vadd.f32 %v2123, %v2204
  %v2217 = vadd.f32 %v2126, %v2207
  %v2218 = vxor.u32 %v2210, 2147483648
  %v2219 = vxor.u32 %v2211, 2147483648
  %v2220 = vxor.u32 %v2212, 2147483648
  %v2221 = vxor.u32 %v2213, 2147483648
  %v2222 = vxor.u32 %v2214, 2147483648
  %v2223 = vxor.u32 %v2215, 2147483648
  %v2224 = vxor.u32 %v2216, 2147483648
  %v2225 = vxor.u32 %v2217, 2147483648
  %v2226 = vmul.f32 %v2218, 1.442695
  %v2227 = vpow.pop %v2226
  %v2228 = vmul.f32 %v2219, 1.442695
  %v2229 = vpow.pop %v2228
  %v2230 = vmul.f32 %v2220, 1.442695
  %v2231 = vpow.pop %v2230
  %v2232 = vmul.f32 %v2221, 1.442695
  %v2233 = vpow.pop %v2232
  %v2234 = vmul.f32 %v2222, 1.442695
  %v2235 = vpow.pop %v2234
  %v2236 = vmul.f32 %v2223, 1.442695
  %v2237 = vpow.pop %v2236
  %v2238 = vmul.f32 %v2224, 1.442695
  %v2239 = vpow.pop %v2238
  %v2240 = vmul.f32 %v2225, 1.442695
  %v2241 = vpow.pop %v2240
  %v2242 = vadd.f32 %v2227, 1.0
  %v2243 = vadd.f32 %v2229, 1.0
  %v2244 = vadd.f32 %v2231, 1.0
  %v2245 = vadd.f32 %v2233, 1.0
  %v2246 = vadd.f32 %v2235, 1.0
  %v2247 = vadd.f32 %v2237, 1.0
  %v2248 = vadd.f32 %v2239, 1.0
  %v2249 = vadd.f32 %v2241, 1.0
  %v2250 = vrcp.pop %v2242
  %v2251 = vmul.f32 1.0, %v2250
  %v2252 = vrcp.pop %v2243
  %v2253 = vmul.f32 1.0, %v2252
  %v2254 = vrcp.pop %v2244
  %v2255 = vmul.f32 1.0, %v2254
  %v2256 = vrcp.pop %v2245
  %v2257 = vmul.f32 1.0, %v2256
  %v2258 = vrcp.pop %v2246
  %v2259 = vmul.f32 1.0, %v2258
  %v2260 = vrcp.pop %v2247
  %v2261 = vmul.f32 1.0, %v2260
  %v2262 = vrcp.pop %v2248
  %v2263 = vmul.f32 1.0, %v2262
  %v2264 = vrcp.pop %v2249
  %v2265 = vmul.f32 1.0, %v2264
  %v2266 = vadd.f32 %v2180, %v332
  %v2267 = vadd.f32 %v2183, %v332
  %v2268 = vadd.f32 %v2188, %v332
  %v2269 = vadd.f32 %v2191, %v332
  %v2270 = vadd.f32 %v2196, %v332
  %v2271 = vadd.f32 %v2199, %v332
  %v2272 = vadd.f32 %v2204, %v332
  %v2273 = vadd.f32 %v2207, %v332
  %2282 = vrot.lane.b32.xlu0 %v2266, 96
  %v2283 = vpop.permute.xlu0 %2282
  %2284 = vrot.lane.b32.xlu0 %v2267, 96
  %v2285 = vpop.permute.xlu0 %2284
  %2286 = vrot.lane.b32.xlu0 %v2268, 96
  %v2287 = vpop.permute.xlu0 %2286
  %2288 = vrot.lane.b32.xlu0 %v2269, 96
  %v2289 = vpop.permute.xlu0 %2288
  %2290 = vrot.lane.b32.xlu0 %v2270, 96
  %v2291 = vpop.permute.xlu0 %2290
  %2292 = vrot.lane.b32.xlu0 %v2271, 96
  %v2293 = vpop.permute.xlu0 %2292
  %2294 = vrot.lane.b32.xlu0 %v2272, 96
  %v2295 = vpop.permute.xlu0 %2294
  %2296 = vrot.lane.b32.xlu0 %v2273, 96
  %v2297 = vpop.permute.xlu0 %2296
  %v2306 = vmul.f32 %v2251, %v2283
  %v2307 = vmul.f32 %v2253, %v2285
  %v2308 = vmul.f32 %v2255, %v2287
  %v2309 = vmul.f32 %v2257, %v2289
  %v2310 = vmul.f32 %v2259, %v2291
  %v2311 = vmul.f32 %v2261, %v2293
  %v2312 = vmul.f32 %v2263, %v2295
  %v2313 = vmul.f32 %v2265, %v2297
  %2322 = vrot.lane.b32.xlu0 %v2306, 32
  %v2323 = vpop.permute.xlu0 %2322
  %2324 = vrot.lane.b32.xlu0 %v2307, 32
  %v2325 = vpop.permute.xlu0 %2324
  %2326 = vrot.lane.b32.xlu0 %v2308, 32
  %v2327 = vpop.permute.xlu0 %2326
  %2328 = vrot.lane.b32.xlu0 %v2309, 32
  %v2329 = vpop.permute.xlu0 %2328
  %2330 = vrot.lane.b32.xlu0 %v2310, 32
  %v2331 = vpop.permute.xlu0 %2330
  %2332 = vrot.lane.b32.xlu0 %v2311, 32
  %v2333 = vpop.permute.xlu0 %2332
  %2334 = vrot.lane.b32.xlu0 %v2312, 32
  %v2335 = vpop.permute.xlu0 %2334
  %2336 = vrot.lane.b32.xlu0 %v2313, 32
  %v2337 = vpop.permute.xlu0 %2336
  %v2346 = vadd.f32 %v2099, %v2323
  %v2347 = vadd.f32 %v2102, %v2325
  %v2348 = vadd.f32 %v2107, %v2327
  %v2349 = vadd.f32 %v2110, %v2329
  %v2350 = vadd.f32 %v2115, %v2331
  %v2351 = vadd.f32 %v2118, %v2333
  %v2352 = vadd.f32 %v2123, %v2335
  %v2353 = vadd.f32 %v2126, %v2337
  %v2354 = vtanh.pop %v2346
  %v2355 = vtanh.pop %v2347
  %v2356 = vtanh.pop %v2348
  %v2357 = vtanh.pop %v2349
  %v2358 = vtanh.pop %v2350
  %v2359 = vtanh.pop %v2351
  %v2360 = vtanh.pop %v2352
  %v2361 = vtanh.pop %v2353
  %v2362 = vsub.f32 1.0, %v2251
  %v2363 = vsub.f32 1.0, %v2253
  %v2364 = vsub.f32 1.0, %v2255
  %v2365 = vsub.f32 1.0, %v2257
  %v2366 = vsub.f32 1.0, %v2259
  %v2367 = vsub.f32 1.0, %v2261
  %v2368 = vsub.f32 1.0, %v2263
  %v2369 = vsub.f32 1.0, %v2265
  %2378 = vrot.lane.b32.xlu0 %v2354, 112
  %v2379 = vpop.permute.xlu0 %2378
  %2380 = vrot.lane.b32.xlu0 %v2355, 112
  %v2381 = vpop.permute.xlu0 %2380
  %2382 = vrot.lane.b32.xlu0 %v2356, 112
  %v2383 = vpop.permute.xlu0 %2382
  %2384 = vrot.lane.b32.xlu0 %v2357, 112
  %v2385 = vpop.permute.xlu0 %2384
  %2386 = vrot.lane.b32.xlu0 %v2358, 112
  %v2387 = vpop.permute.xlu0 %2386
  %2388 = vrot.lane.b32.xlu0 %v2359, 112
  %v2389 = vpop.permute.xlu0 %2388
  %2390 = vrot.lane.b32.xlu0 %v2360, 112
  %v2391 = vpop.permute.xlu0 %2390
  %2392 = vrot.lane.b32.xlu0 %v2361, 112
  %v2393 = vpop.permute.xlu0 %2392
  %v2402 = vmul.f32 %v2362, %v2379
  %v2403 = vmul.f32 %v2363, %v2381
  %v2404 = vmul.f32 %v2364, %v2383
  %v2405 = vmul.f32 %v2365, %v2385
  %v2406 = vmul.f32 %v2366, %v2387
  %v2407 = vmul.f32 %v2367, %v2389
  %v2408 = vmul.f32 %v2368, %v2391
  %v2409 = vmul.f32 %v2369, %v2393
  %2418 = vrot.lane.b32.xlu0 %v2024, 16
  %v2419 = vpop.permute.xlu0 %2418
  %2420 = vrot.lane.b32.xlu0 %v2025, 16
  %v2421 = vpop.permute.xlu0 %2420
  %2422 = vrot.lane.b32.xlu0 %v2026, 16
  %v2423 = vpop.permute.xlu0 %2422
  %2424 = vrot.lane.b32.xlu0 %v2027, 16
  %v2425 = vpop.permute.xlu0 %2424
  %2426 = vrot.lane.b32.xlu0 %v2028, 16
  %v2427 = vpop.permute.xlu0 %2426
  %2428 = vrot.lane.b32.xlu0 %v2029, 16
  %v2429 = vpop.permute.xlu0 %2428
  %2430 = vrot.lane.b32.xlu0 %v2030, 16
  %v2431 = vpop.permute.xlu0 %2430
  %2432 = vrot.lane.b32.xlu0 %v2031, 16
  %v2433 = vpop.permute.xlu0 %2432
  %v2442 = vmul.f32 %v2251, %v2419
  %v2443 = vmul.f32 %v2253, %v2421
  %v2444 = vmul.f32 %v2255, %v2423
  %v2445 = vmul.f32 %v2257, %v2425
  %v2446 = vmul.f32 %v2259, %v2427
  %v2447 = vmul.f32 %v2261, %v2429
  %v2448 = vmul.f32 %v2263, %v2431
  %v2449 = vmul.f32 %v2265, %v2433
  %v2450 = vadd.f32 %v2402, %v2442
  %v2451 = vadd.f32 %v2403, %v2443
  %v2452 = vadd.f32 %v2404, %v2444
  %v2453 = vadd.f32 %v2405, %v2445
  %v2454 = vadd.f32 %v2406, %v2446
  %v2455 = vadd.f32 %v2407, %v2447
  %v2456 = vadd.f32 %v2408, %v2448
  %v2457 = vadd.f32 %v2409, %v2449
  %2466 = vrot.lane.b32.xlu0 %v2450, 112
  %v2467 = vpop.permute.xlu0 %2466
  %2468 = vrot.lane.b32.xlu0 %v2451, 112
  %v2469 = vpop.permute.xlu0 %2468
  %2470 = vrot.lane.b32.xlu0 %v2452, 112
  %v2471 = vpop.permute.xlu0 %2470
  %2472 = vrot.lane.b32.xlu0 %v2453, 112
  %v2473 = vpop.permute.xlu0 %2472
  %2474 = vrot.lane.b32.xlu0 %v2454, 112
  %v2475 = vpop.permute.xlu0 %2474
  %2476 = vrot.lane.b32.xlu0 %v2455, 112
  %v2477 = vpop.permute.xlu0 %2476
  %2478 = vrot.lane.b32.xlu0 %v2456, 112
  %v2479 = vpop.permute.xlu0 %2478
  %2480 = vrot.lane.b32.xlu0 %v2457, 112
  %v2481 = vpop.permute.xlu0 %2480
  %2490 = vst.msk [vmem:[#allocation2] sm:$0xff] %vm50, %v2467
  %2491 = vst.msk [vmem:[#allocation2 + $0x8] sm:$0xff] %vm50, %v2469
  %2492 = vst.msk [vmem:[#allocation2 + $0x10] sm:$0xff] %vm50, %v2471
  %2493 = vst.msk [vmem:[#allocation2 + $0x18] sm:$0xff] %vm50, %v2473
  %2494 = vst.msk [vmem:[#allocation2 + $0x20] sm:$0xff] %vm50, %v2475
  %2495 = vst.msk [vmem:[#allocation2 + $0x28] sm:$0xff] %vm50, %v2477
  %2496 = vst.msk [vmem:[#allocation2 + $0x30] sm:$0xff] %vm50, %v2479
  %2497 = vst.msk [vmem:[#allocation2 + $0x38] sm:$0xff] %vm50, %v2481
  %s2498 = scalar_lea.vmem %s0, 160
  %v2499 = vld [vmem:[%s2498] sm:$0xf]
  %v2500 = vld [vmem:[%s2498 + $0x4] sm:$0xf]
  %v2501 = vld [vmem:[%s2498 + $0x8] sm:$0xf]
  %v2502 = vld [vmem:[%s2498 + $0xc] sm:$0xf]
  %v2503 = vld [vmem:[%s2498 + $0x10] sm:$0xf]
  %v2504 = vld [vmem:[%s2498 + $0x14] sm:$0xf]
  %v2505 = vld [vmem:[%s2498 + $0x18] sm:$0xf]
  %v2506 = vld [vmem:[%s2498 + $0x1c] sm:$0xf]
  %v2507 = vld [vmem:[#allocation2] sm:$0xff]
  %v2508 = vld [vmem:[#allocation2 + $0x8] sm:$0xff]
  %v2509 = vld [vmem:[#allocation2 + $0x10] sm:$0xff]
  %v2510 = vld [vmem:[#allocation2 + $0x18] sm:$0xff]
  %v2511 = vld [vmem:[#allocation2 + $0x20] sm:$0xff]
  %v2512 = vld [vmem:[#allocation2 + $0x28] sm:$0xff]
  %v2513 = vld [vmem:[#allocation2 + $0x30] sm:$0xff]
  %v2514 = vld [vmem:[#allocation2 + $0x38] sm:$0xff]
  %v2523 = vunpack.c.l.b16 %v2499
  %v2524 = vunpack.c.l.b16 %v2500
  %v2525 = vunpack.c.l.b16 %v2501
  %v2526 = vunpack.c.l.b16 %v2502
  %v2527 = vunpack.c.l.b16 %v2503
  %v2528 = vunpack.c.l.b16 %v2504
  %v2529 = vunpack.c.l.b16 %v2505
  %v2530 = vunpack.c.l.b16 %v2506
  %v2531 = vpack.c.b16 %v2524, %v2523
  %v2532 = vpack.c.b16 %v2526, %v2525
  %v2533 = vpack.c.b16 %v2528, %v2527
  %v2534 = vpack.c.b16 %v2530, %v2529
  %v2536 = vsel %vm101, %v2531, 0
  %v2539 = vsel %vm101, %v2532, 0
  %v2542 = vsel %vm101, %v2533, 0
  %v2545 = vsel %vm101, %v2534, 0
  %2547 = vmatprep.subr.bf16.mxu0 0
  %2548 = vmatpush1.bf16.msra.mxu0 0
  %2549 = vmatprep.subr.bf16.mxu0 0
  %2550 = vmatpush1.bf16.msra.mxu0 0
  %2551 = vmatprep.subr.bf16.mxu0 0
  %2552 = vmatpush1.bf16.msra.mxu0 0
  %2553 = vmatprep.subr.bf16.mxu0 0
  %2554 = vmatpush1.bf16.msra.mxu0 0
  %2555 = vmatprep.subr.bf16.mxu0 0
  %2556 = vmatpush1.bf16.msra.mxu0 0
  %2557 = vmatprep.subr.bf16.mxu0 0
  %2558 = vmatpush1.bf16.msra.mxu0 0
  %2559 = vmatprep.subr.bf16.mxu0 0
  %2560 = vmatpush1.bf16.msra.mxu0 0
  %2561 = vmatprep.subr.bf16.mxu0 0
  %2562 = vmatpush1.bf16.msra.mxu0 %v116
  %2563 = vmatprep.subr.bf16.mxu0 0
  %2564 = vmatpush2.bf16.msra.mxu0 0
  %2565 = vmatprep.subr.bf16.mxu0 0
  %2566 = vmatpush2.bf16.msra.mxu0 0
  %2567 = vmatprep.subr.bf16.mxu0 0
  %2568 = vmatpush2.bf16.msra.mxu0 0
  %2569 = vmatprep.subr.bf16.mxu0 0
  %2570 = vmatpush2.bf16.msra.mxu0 0
  %2571 = vmatprep.subr.bf16.mxu0 0
  %2572 = vmatpush2.bf16.msra.mxu0 0
  %2573 = vmatprep.subr.bf16.mxu0 0
  %2574 = vmatpush2.bf16.msra.mxu0 0
  %2575 = vmatprep.subr.bf16.mxu0 0
  %2576 = vmatpush2.bf16.msra.mxu0 0
  %2577 = vmatprep.subr.bf16.mxu0 0
  %2578 = vmatpush2.bf16.msra.mxu0 0
  %2579 = vmatprep.mubr.bf16.mxu0 0
  %2580 = vmatmul.mubr.bf16.gmra.mxu0 %v2536
  %v2581 = vpop.f32.mrf.mxu0
  %v2582 = vadd.f32 %v79, %v2581
  %v2583 = vpop.f32.mrf.mxu0
  %v2584 = vpop.f32.mrf.mxu0
  %v2585 = vadd.f32 %v79, %v2584
  %v2586 = vpop.f32.mrf.mxu0
  %2587 = vmatprep.mubr.bf16.mxu0 0
  %2588 = vmatmul.mubr.bf16.gmra.mxu0 %v2539
  %v2589 = vpop.f32.mrf.mxu0
  %v2590 = vadd.f32 %v79, %v2589
  %v2591 = vpop.f32.mrf.mxu0
  %v2592 = vpop.f32.mrf.mxu0
  %v2593 = vadd.f32 %v79, %v2592
  %v2594 = vpop.f32.mrf.mxu0
  %2595 = vmatprep.mubr.bf16.mxu0 0
  %2596 = vmatmul.mubr.bf16.gmra.mxu0 %v2542
  %v2597 = vpop.f32.mrf.mxu0
  %v2598 = vadd.f32 %v79, %v2597
  %v2599 = vpop.f32.mrf.mxu0
  %v2600 = vpop.f32.mrf.mxu0
  %v2601 = vadd.f32 %v79, %v2600
  %v2602 = vpop.f32.mrf.mxu0
  %2603 = vmatprep.mubr.bf16.mxu0 0
  %2604 = vmatmul.mubr.bf16.gmra.mxu0 %v2545
  %v2605 = vpop.f32.mrf.mxu0
  %v2606 = vadd.f32 %v79, %v2605
  %v2607 = vpop.f32.mrf.mxu0
  %v2608 = vpop.f32.mrf.mxu0
  %v2609 = vadd.f32 %v79, %v2608
  %v2610 = vpop.f32.mrf.mxu0
  %2611 = vdwg.mxu0
  %v2612 = vpack.c.bf16 %v2508, %v2507
  %v2613 = vpack.c.bf16 %v2510, %v2509
  %v2614 = vpack.c.bf16 %v2512, %v2511
  %v2615 = vpack.c.bf16 %v2514, %v2513
  %v2617 = vsel %vm50, %v2612, 0
  %v2620 = vsel %vm50, %v2613, 0
  %v2623 = vsel %vm50, %v2614, 0
  %v2626 = vsel %vm50, %v2615, 0
  %2628 = vmatprep.subr.bf16.mxu0 0
  %2629 = vmatpush1.bf16.msra.mxu0 0
  %2630 = vmatprep.subr.bf16.mxu0 0
  %2631 = vmatpush1.bf16.msra.mxu0 0
  %2632 = vmatprep.subr.bf16.mxu0 0
  %2633 = vmatpush1.bf16.msra.mxu0 0
  %2634 = vmatprep.subr.bf16.mxu0 0
  %2635 = vmatpush1.bf16.msra.mxu0 0
  %2636 = vmatprep.subr.bf16.mxu0 0
  %2637 = vmatpush1.bf16.msra.mxu0 0
  %2638 = vmatprep.subr.bf16.mxu0 0
  %2639 = vmatpush1.bf16.msra.mxu0 0
  %2640 = vmatprep.subr.bf16.mxu0 0
  %2641 = vmatpush1.bf16.msra.mxu0 0
  %2642 = vmatprep.subr.bf16.mxu0 0
  %2643 = vmatpush1.bf16.msra.mxu0 %v191
  %2644 = vmatprep.subr.bf16.mxu0 0
  %2645 = vmatpush2.bf16.msra.mxu0 0
  %2646 = vmatprep.subr.bf16.mxu0 0
  %2647 = vmatpush2.bf16.msra.mxu0 0
  %2648 = vmatprep.subr.bf16.mxu0 0
  %2649 = vmatpush2.bf16.msra.mxu0 0
  %2650 = vmatprep.subr.bf16.mxu0 0
  %2651 = vmatpush2.bf16.msra.mxu0 0
  %2652 = vmatprep.subr.bf16.mxu0 0
  %2653 = vmatpush2.bf16.msra.mxu0 0
  %2654 = vmatprep.subr.bf16.mxu0 0
  %2655 = vmatpush2.bf16.msra.mxu0 0
  %2656 = vmatprep.subr.bf16.mxu0 0
  %2657 = vmatpush2.bf16.msra.mxu0 0
  %2658 = vmatprep.subr.bf16.mxu0 0
  %2659 = vmatpush2.bf16.msra.mxu0 0
  %2660 = vmatprep.mubr.bf16.mxu0 0
  %2661 = vmatmul.mubr.bf16.gmra.mxu0 %v2617
  %v2662 = vpop.f32.mrf.mxu0
  %v2663 = vadd.f32 0.0, %v2662
  %v2664 = vpop.f32.mrf.mxu0
  %v2665 = vpop.f32.mrf.mxu0
  %v2666 = vadd.f32 0.0, %v2665
  %v2667 = vpop.f32.mrf.mxu0
  %2668 = vmatprep.mubr.bf16.mxu0 0
  %2669 = vmatmul.mubr.bf16.gmra.mxu0 %v2620
  %v2670 = vpop.f32.mrf.mxu0
  %v2671 = vadd.f32 0.0, %v2670
  %v2672 = vpop.f32.mrf.mxu0
  %v2673 = vpop.f32.mrf.mxu0
  %v2674 = vadd.f32 0.0, %v2673
  %v2675 = vpop.f32.mrf.mxu0
  %2676 = vmatprep.mubr.bf16.mxu0 0
  %2677 = vmatmul.mubr.bf16.gmra.mxu0 %v2623
  %v2678 = vpop.f32.mrf.mxu0
  %v2679 = vadd.f32 0.0, %v2678
  %v2680 = vpop.f32.mrf.mxu0
  %v2681 = vpop.f32.mrf.mxu0
  %v2682 = vadd.f32 0.0, %v2681
  %v2683 = vpop.f32.mrf.mxu0
  %2684 = vmatprep.mubr.bf16.mxu0 0
  %2685 = vmatmul.mubr.bf16.gmra.mxu0 %v2626
  %v2686 = vpop.f32.mrf.mxu0
  %v2687 = vadd.f32 0.0, %v2686
  %v2688 = vpop.f32.mrf.mxu0
  %v2689 = vpop.f32.mrf.mxu0
  %v2690 = vadd.f32 0.0, %v2689
  %v2691 = vpop.f32.mrf.mxu0
  %2692 = vdwg.mxu0
  %v2693 = vadd.f32 %v2582, %v2663
  %v2694 = vadd.f32 %v2585, %v2666
  %v2695 = vadd.f32 %v2590, %v2671
  %v2696 = vadd.f32 %v2593, %v2674
  %v2697 = vadd.f32 %v2598, %v2679
  %v2698 = vadd.f32 %v2601, %v2682
  %v2699 = vadd.f32 %v2606, %v2687
  %v2700 = vadd.f32 %v2609, %v2690
  %v2701 = vxor.u32 %v2693, 2147483648
  %v2702 = vxor.u32 %v2694, 2147483648
  %v2703 = vxor.u32 %v2695, 2147483648
  %v2704 = vxor.u32 %v2696, 2147483648
  %v2705 = vxor.u32 %v2697, 2147483648
  %v2706 = vxor.u32 %v2698, 2147483648
  %v2707 = vxor.u32 %v2699, 2147483648
  %v2708 = vxor.u32 %v2700, 2147483648
  %v2709 = vmul.f32 %v2701, 1.442695
  %v2710 = vpow.pop %v2709
  %v2711 = vmul.f32 %v2702, 1.442695
  %v2712 = vpow.pop %v2711
  %v2713 = vmul.f32 %v2703, 1.442695
  %v2714 = vpow.pop %v2713
  %v2715 = vmul.f32 %v2704, 1.442695
  %v2716 = vpow.pop %v2715
  %v2717 = vmul.f32 %v2705, 1.442695
  %v2718 = vpow.pop %v2717
  %v2719 = vmul.f32 %v2706, 1.442695
  %v2720 = vpow.pop %v2719
  %v2721 = vmul.f32 %v2707, 1.442695
  %v2722 = vpow.pop %v2721
  %v2723 = vmul.f32 %v2708, 1.442695
  %v2724 = vpow.pop %v2723
  %v2725 = vadd.f32 %v2710, 1.0
  %v2726 = vadd.f32 %v2712, 1.0
  %v2727 = vadd.f32 %v2714, 1.0
  %v2728 = vadd.f32 %v2716, 1.0
  %v2729 = vadd.f32 %v2718, 1.0
  %v2730 = vadd.f32 %v2720, 1.0
  %v2731 = vadd.f32 %v2722, 1.0
  %v2732 = vadd.f32 %v2724, 1.0
  %v2733 = vrcp.pop %v2725
  %v2734 = vmul.f32 1.0, %v2733
  %v2735 = vrcp.pop %v2726
  %v2736 = vmul.f32 1.0, %v2735
  %v2737 = vrcp.pop %v2727
  %v2738 = vmul.f32 1.0, %v2737
  %v2739 = vrcp.pop %v2728
  %v2740 = vmul.f32 1.0, %v2739
  %v2741 = vrcp.pop %v2729
  %v2742 = vmul.f32 1.0, %v2741
  %v2743 = vrcp.pop %v2730
  %v2744 = vmul.f32 1.0, %v2743
  %v2745 = vrcp.pop %v2731
  %v2746 = vmul.f32 1.0, %v2745
  %v2747 = vrcp.pop %v2732
  %v2748 = vmul.f32 1.0, %v2747
  %v2749 = vadd.f32 %v2663, %v332
  %v2750 = vadd.f32 %v2666, %v332
  %v2751 = vadd.f32 %v2671, %v332
  %v2752 = vadd.f32 %v2674, %v332
  %v2753 = vadd.f32 %v2679, %v332
  %v2754 = vadd.f32 %v2682, %v332
  %v2755 = vadd.f32 %v2687, %v332
  %v2756 = vadd.f32 %v2690, %v332
  %2765 = vrot.lane.b32.xlu0 %v2749, 96
  %v2766 = vpop.permute.xlu0 %2765
  %2767 = vrot.lane.b32.xlu0 %v2750, 96
  %v2768 = vpop.permute.xlu0 %2767
  %2769 = vrot.lane.b32.xlu0 %v2751, 96
  %v2770 = vpop.permute.xlu0 %2769
  %2771 = vrot.lane.b32.xlu0 %v2752, 96
  %v2772 = vpop.permute.xlu0 %2771
  %2773 = vrot.lane.b32.xlu0 %v2753, 96
  %v2774 = vpop.permute.xlu0 %2773
  %2775 = vrot.lane.b32.xlu0 %v2754, 96
  %v2776 = vpop.permute.xlu0 %2775
  %2777 = vrot.lane.b32.xlu0 %v2755, 96
  %v2778 = vpop.permute.xlu0 %2777
  %2779 = vrot.lane.b32.xlu0 %v2756, 96
  %v2780 = vpop.permute.xlu0 %2779
  %v2789 = vmul.f32 %v2734, %v2766
  %v2790 = vmul.f32 %v2736, %v2768
  %v2791 = vmul.f32 %v2738, %v2770
  %v2792 = vmul.f32 %v2740, %v2772
  %v2793 = vmul.f32 %v2742, %v2774
  %v2794 = vmul.f32 %v2744, %v2776
  %v2795 = vmul.f32 %v2746, %v2778
  %v2796 = vmul.f32 %v2748, %v2780
  %2805 = vrot.lane.b32.xlu0 %v2789, 32
  %v2806 = vpop.permute.xlu0 %2805
  %2807 = vrot.lane.b32.xlu0 %v2790, 32
  %v2808 = vpop.permute.xlu0 %2807
  %2809 = vrot.lane.b32.xlu0 %v2791, 32
  %v2810 = vpop.permute.xlu0 %2809
  %2811 = vrot.lane.b32.xlu0 %v2792, 32
  %v2812 = vpop.permute.xlu0 %2811
  %2813 = vrot.lane.b32.xlu0 %v2793, 32
  %v2814 = vpop.permute.xlu0 %2813
  %2815 = vrot.lane.b32.xlu0 %v2794, 32
  %v2816 = vpop.permute.xlu0 %2815
  %2817 = vrot.lane.b32.xlu0 %v2795, 32
  %v2818 = vpop.permute.xlu0 %2817
  %2819 = vrot.lane.b32.xlu0 %v2796, 32
  %v2820 = vpop.permute.xlu0 %2819
  %v2829 = vadd.f32 %v2582, %v2806
  %v2830 = vadd.f32 %v2585, %v2808
  %v2831 = vadd.f32 %v2590, %v2810
  %v2832 = vadd.f32 %v2593, %v2812
  %v2833 = vadd.f32 %v2598, %v2814
  %v2834 = vadd.f32 %v2601, %v2816
  %v2835 = vadd.f32 %v2606, %v2818
  %v2836 = vadd.f32 %v2609, %v2820
  %v2837 = vtanh.pop %v2829
  %v2838 = vtanh.pop %v2830
  %v2839 = vtanh.pop %v2831
  %v2840 = vtanh.pop %v2832
  %v2841 = vtanh.pop %v2833
  %v2842 = vtanh.pop %v2834
  %v2843 = vtanh.pop %v2835
  %v2844 = vtanh.pop %v2836
  %v2845 = vsub.f32 1.0, %v2734
  %v2846 = vsub.f32 1.0, %v2736
  %v2847 = vsub.f32 1.0, %v2738
  %v2848 = vsub.f32 1.0, %v2740
  %v2849 = vsub.f32 1.0, %v2742
  %v2850 = vsub.f32 1.0, %v2744
  %v2851 = vsub.f32 1.0, %v2746
  %v2852 = vsub.f32 1.0, %v2748
  %2861 = vrot.lane.b32.xlu0 %v2837, 112
  %v2862 = vpop.permute.xlu0 %2861
  %2863 = vrot.lane.b32.xlu0 %v2838, 112
  %v2864 = vpop.permute.xlu0 %2863
  %2865 = vrot.lane.b32.xlu0 %v2839, 112
  %v2866 = vpop.permute.xlu0 %2865
  %2867 = vrot.lane.b32.xlu0 %v2840, 112
  %v2868 = vpop.permute.xlu0 %2867
  %2869 = vrot.lane.b32.xlu0 %v2841, 112
  %v2870 = vpop.permute.xlu0 %2869
  %2871 = vrot.lane.b32.xlu0 %v2842, 112
  %v2872 = vpop.permute.xlu0 %2871
  %2873 = vrot.lane.b32.xlu0 %v2843, 112
  %v2874 = vpop.permute.xlu0 %2873
  %2875 = vrot.lane.b32.xlu0 %v2844, 112
  %v2876 = vpop.permute.xlu0 %2875
  %v2885 = vmul.f32 %v2845, %v2862
  %v2886 = vmul.f32 %v2846, %v2864
  %v2887 = vmul.f32 %v2847, %v2866
  %v2888 = vmul.f32 %v2848, %v2868
  %v2889 = vmul.f32 %v2849, %v2870
  %v2890 = vmul.f32 %v2850, %v2872
  %v2891 = vmul.f32 %v2851, %v2874
  %v2892 = vmul.f32 %v2852, %v2876
  %2901 = vrot.lane.b32.xlu0 %v2507, 16
  %v2902 = vpop.permute.xlu0 %2901
  %2903 = vrot.lane.b32.xlu0 %v2508, 16
  %v2904 = vpop.permute.xlu0 %2903
  %2905 = vrot.lane.b32.xlu0 %v2509, 16
  %v2906 = vpop.permute.xlu0 %2905
  %2907 = vrot.lane.b32.xlu0 %v2510, 16
  %v2908 = vpop.permute.xlu0 %2907
  %2909 = vrot.lane.b32.xlu0 %v2511, 16
  %v2910 = vpop.permute.xlu0 %2909
  %2911 = vrot.lane.b32.xlu0 %v2512, 16
  %v2912 = vpop.permute.xlu0 %2911
  %2913 = vrot.lane.b32.xlu0 %v2513, 16
  %v2914 = vpop.permute.xlu0 %2913
  %2915 = vrot.lane.b32.xlu0 %v2514, 16
  %v2916 = vpop.permute.xlu0 %2915
  %v2925 = vmul.f32 %v2734, %v2902
  %v2926 = vmul.f32 %v2736, %v2904
  %v2927 = vmul.f32 %v2738, %v2906
  %v2928 = vmul.f32 %v2740, %v2908
  %v2929 = vmul.f32 %v2742, %v2910
  %v2930 = vmul.f32 %v2744, %v2912
  %v2931 = vmul.f32 %v2746, %v2914
  %v2932 = vmul.f32 %v2748, %v2916
  %v2933 = vadd.f32 %v2885, %v2925
  %v2934 = vadd.f32 %v2886, %v2926
  %v2935 = vadd.f32 %v2887, %v2927
  %v2936 = vadd.f32 %v2888, %v2928
  %v2937 = vadd.f32 %v2889, %v2929
  %v2938 = vadd.f32 %v2890, %v2930
  %v2939 = vadd.f32 %v2891, %v2931
  %v2940 = vadd.f32 %v2892, %v2932
  %2949 = vrot.lane.b32.xlu0 %v2933, 112
  %v2950 = vpop.permute.xlu0 %2949
  %2951 = vrot.lane.b32.xlu0 %v2934, 112
  %v2952 = vpop.permute.xlu0 %2951
  %2953 = vrot.lane.b32.xlu0 %v2935, 112
  %v2954 = vpop.permute.xlu0 %2953
  %2955 = vrot.lane.b32.xlu0 %v2936, 112
  %v2956 = vpop.permute.xlu0 %2955
  %2957 = vrot.lane.b32.xlu0 %v2937, 112
  %v2958 = vpop.permute.xlu0 %2957
  %2959 = vrot.lane.b32.xlu0 %v2938, 112
  %v2960 = vpop.permute.xlu0 %2959
  %2961 = vrot.lane.b32.xlu0 %v2939, 112
  %v2962 = vpop.permute.xlu0 %2961
  %2963 = vrot.lane.b32.xlu0 %v2940, 112
  %v2964 = vpop.permute.xlu0 %2963
  %2973 = vst.msk [vmem:[#allocation2] sm:$0xff] %vm50, %v2950
  %2974 = vst.msk [vmem:[#allocation2 + $0x8] sm:$0xff] %vm50, %v2952
  %2975 = vst.msk [vmem:[#allocation2 + $0x10] sm:$0xff] %vm50, %v2954
  %2976 = vst.msk [vmem:[#allocation2 + $0x18] sm:$0xff] %vm50, %v2956
  %2977 = vst.msk [vmem:[#allocation2 + $0x20] sm:$0xff] %vm50, %v2958
  %2978 = vst.msk [vmem:[#allocation2 + $0x28] sm:$0xff] %vm50, %v2960
  %2979 = vst.msk [vmem:[#allocation2 + $0x30] sm:$0xff] %vm50, %v2962
  %2980 = vst.msk [vmem:[#allocation2 + $0x38] sm:$0xff] %vm50, %v2964
  %v2981 = vld [vmem:[%s1] sm:$0xf]
  %v2982 = vld [vmem:[%s1 + $0x4] sm:$0xf]
  %v2983 = vld [vmem:[%s1 + $0x8] sm:$0xf]
  %v2984 = vld [vmem:[%s1 + $0xc] sm:$0xf]
  %v2985 = vld [vmem:[%s1 + $0x10] sm:$0xf]
  %v2986 = vld [vmem:[%s1 + $0x14] sm:$0xf]
  %v2987 = vld [vmem:[%s1 + $0x18] sm:$0xf]
  %v2988 = vld [vmem:[%s1 + $0x1c] sm:$0xf]
  %v2989 = vld [vmem:[#allocation2] sm:$0xff]
  %v2990 = vld [vmem:[#allocation2 + $0x8] sm:$0xff]
  %v2991 = vld [vmem:[#allocation2 + $0x10] sm:$0xff]
  %v2992 = vld [vmem:[#allocation2 + $0x18] sm:$0xff]
  %v2993 = vld [vmem:[#allocation2 + $0x20] sm:$0xff]
  %v2994 = vld [vmem:[#allocation2 + $0x28] sm:$0xff]
  %v2995 = vld [vmem:[#allocation2 + $0x30] sm:$0xff]
  %v2996 = vld [vmem:[#allocation2 + $0x38] sm:$0xff]
  %v2997 = vpack.c.bf16 %v2990, %v2989
  %v2998 = vpack.c.bf16 %v2992, %v2991
  %v2999 = vpack.c.bf16 %v2994, %v2993
  %v3000 = vpack.c.bf16 %v2996, %v2995
  %v3001 = vld [vmem:[%s6] sm:$0xf]
  %v3002 = vld [vmem:[%s6 + $0x4] sm:$0xf]
  %v3003 = vld [vmem:[%s6 + $0x8] sm:$0xf]
  %v3004 = vld [vmem:[%s6 + $0xc] sm:$0xf]
  %v3005 = vld [vmem:[%s7] sm:$0xf]
  %v3006 = vld [vmem:[%s7 + $0x4] sm:$0xf]
  %v3009 = vunpack.c.l.b16 %v3005
  %v3010 = vunpack.c.l.b16 %v3006
  %v3011 = vpack.c.b16 %v3010, %v3009
  %v3014 = vsel %vm50, %v2997, 0
  %v3017 = vsel %vm50, %v2998, 0
  %v3020 = vsel %vm50, %v2999, 0
  %v3023 = vsel %vm50, %v3000, 0
  %3025 = vmatprep.subr.bf16.mxu0 0
  %3026 = vmatpush1.bf16.msra.mxu0 0
  %3027 = vmatprep.subr.bf16.mxu0 0
  %3028 = vmatpush1.bf16.msra.mxu0 0
  %3029 = vmatprep.subr.bf16.mxu0 0
  %3030 = vmatpush1.bf16.msra.mxu0 0
  %3031 = vmatprep.subr.bf16.mxu0 0
  %3032 = vmatpush1.bf16.msra.mxu0 0
  %3033 = vmatprep.subr.bf16.mxu0 0
  %3034 = vmatpush1.bf16.msra.mxu0 0
  %3035 = vmatprep.subr.bf16.mxu0 0
  %3036 = vmatpush1.bf16.msra.mxu0 0
  %3037 = vmatprep.subr.bf16.mxu0 0
  %3038 = vmatpush1.bf16.msra.mxu0 0
  %3039 = vmatprep.subr.bf16.mxu0 0
  %3040 = vmatpush1.bf16.msra.mxu0 %v3011
  %3041 = vmatprep.subr.bf16.mxu0 0
  %3042 = vmatpush2.bf16.msra.mxu0 0
  %3043 = vmatprep.subr.bf16.mxu0 0
  %3044 = vmatpush2.bf16.msra.mxu0 0
  %3045 = vmatprep.subr.bf16.mxu0 0
  %3046 = vmatpush2.bf16.msra.mxu0 0
  %3047 = vmatprep.subr.bf16.mxu0 0
  %3048 = vmatpush2.bf16.msra.mxu0 0
  %3049 = vmatprep.subr.bf16.mxu0 0
  %3050 = vmatpush2.bf16.msra.mxu0 0
  %3051 = vmatprep.subr.bf16.mxu0 0
  %3052 = vmatpush2.bf16.msra.mxu0 0
  %3053 = vmatprep.subr.bf16.mxu0 0
  %3054 = vmatpush2.bf16.msra.mxu0 0
  %3055 = vmatprep.subr.bf16.mxu0 0
  %3056 = vmatpush2.bf16.msra.mxu0 0
  %3057 = vmatprep.mubr.bf16.mxu0 0
  %3058 = vmatmul.mubr.bf16.gmra.mxu0 %v3014
  %v3059 = vpop.f32.mrf.mxu0
  %v3060 = vadd.f32 0.0, %v3059
  %v3061 = vpop.f32.mrf.mxu0
  %v3062 = vpop.f32.mrf.mxu0
  %v3063 = vadd.f32 0.0, %v3062
  %v3064 = vpop.f32.mrf.mxu0
  %3065 = vmatprep.mubr.bf16.mxu0 0
  %3066 = vmatmul.mubr.bf16.gmra.mxu0 %v3017
  %v3067 = vpop.f32.mrf.mxu0
  %v3068 = vadd.f32 0.0, %v3067
  %v3069 = vpop.f32.mrf.mxu0
  %v3070 = vpop.f32.mrf.mxu0
  %v3071 = vadd.f32 0.0, %v3070
  %v3072 = vpop.f32.mrf.mxu0
  %3073 = vmatprep.mubr.bf16.mxu0 0
  %3074 = vmatmul.mubr.bf16.gmra.mxu0 %v3020
  %v3075 = vpop.f32.mrf.mxu0
  %v3076 = vadd.f32 0.0, %v3075
  %v3077 = vpop.f32.mrf.mxu0
  %v3078 = vpop.f32.mrf.mxu0
  %v3079 = vadd.f32 0.0, %v3078
  %v3080 = vpop.f32.mrf.mxu0
  %3081 = vmatprep.mubr.bf16.mxu0 0
  %3082 = vmatmul.mubr.bf16.gmra.mxu0 %v3023
  %v3083 = vpop.f32.mrf.mxu0
  %v3084 = vadd.f32 0.0, %v3083
  %v3085 = vpop.f32.mrf.mxu0
  %v3086 = vpop.f32.mrf.mxu0
  %v3087 = vadd.f32 0.0, %v3086
  %v3088 = vpop.f32.mrf.mxu0
  %3089 = vdwg.mxu0
  %v3098 = vunpack.c.l.b16 %v2981
  %v3099 = vunpack.c.l.b16 %v2982
  %v3100 = vunpack.c.l.b16 %v2983
  %v3101 = vunpack.c.l.b16 %v2984
  %v3102 = vunpack.c.l.b16 %v2985
  %v3103 = vunpack.c.l.b16 %v2986
  %v3104 = vunpack.c.l.b16 %v2987
  %v3105 = vunpack.c.l.b16 %v2988
  %v3106 = vpack.c.b16 %v3099, %v3098
  %v3107 = vpack.c.b16 %v3101, %v3100
  %v3108 = vpack.c.b16 %v3103, %v3102
  %v3109 = vpack.c.b16 %v3105, %v3104
  %v3114 = vunpack.c.l.b16 %v3001
  %v3115 = vunpack.c.l.b16 %v3002
  %v3116 = vunpack.c.l.b16 %v3003
  %v3117 = vunpack.c.l.b16 %v3004
  %v3118 = vpack.c.b16 %v3115, %v3114
  %v3119 = vpack.c.b16 %v3117, %v3116
  %vm3122 = vcmask 261120
  %v3124 = vsel %vm3122, %v3106, 0
  %v3127 = vsel %vm3122, %v3107, 0
  %v3130 = vsel %vm3122, %v3108, 0
  %v3133 = vsel %vm3122, %v3109, 0
  %3135 = vmatprep.subr.bf16.mxu0 0
  %3136 = vmatpush1.bf16.msra.mxu0 0
  %3137 = vmatprep.subr.bf16.mxu0 0
  %3138 = vmatpush1.bf16.msra.mxu0 0
  %3139 = vmatprep.subr.bf16.mxu0 0
  %3140 = vmatpush1.bf16.msra.mxu0 0
  %3141 = vmatprep.subr.bf16.mxu0 0
  %3142 = vmatpush1.bf16.msra.mxu0 0
  %3143 = vmatprep.subr.bf16.mxu0 0
  %3144 = vmatpush1.bf16.msra.mxu0 0
  %3145 = vmatprep.subr.bf16.mxu0 0
  %3146 = vmatpush1.bf16.msra.mxu0 0
  %3147 = vmatprep.subr.bf16.mxu0 0
  %3148 = vmatpush1.bf16.msra.mxu0 %v3119
  %3149 = vmatprep.subr.bf16.mxu0 0
  %3150 = vmatpush1.bf16.msra.mxu0 %v3118
  %3151 = vmatprep.subr.bf16.mxu0 0
  %3152 = vmatpush2.bf16.msra.mxu0 0
  %3153 = vmatprep.subr.bf16.mxu0 0
  %3154 = vmatpush2.bf16.msra.mxu0 0
  %3155 = vmatprep.subr.bf16.mxu0 0
  %3156 = vmatpush2.bf16.msra.mxu0 0
  %3157 = vmatprep.subr.bf16.mxu0 0
  %3158 = vmatpush2.bf16.msra.mxu0 0
  %3159 = vmatprep.subr.bf16.mxu0 0
  %3160 = vmatpush2.bf16.msra.mxu0 0
  %3161 = vmatprep.subr.bf16.mxu0 0
  %3162 = vmatpush2.bf16.msra.mxu0 0
  %3163 = vmatprep.subr.bf16.mxu0 0
  %3164 = vmatpush2.bf16.msra.mxu0 0
  %3165 = vmatprep.subr.bf16.mxu0 0
  %3166 = vmatpush2.bf16.msra.mxu0 0
  %3167 = vmatprep.mubr.bf16.mxu0 0
  %3168 = vmatmul.mubr.bf16.gmra.mxu0 %v3124
  %v3169 = vpop.f32.mrf.mxu0
  %v3170 = vadd.f32 %v3060, %v3169
  %v3171 = vpop.f32.mrf.mxu0
  %v3172 = vpop.f32.mrf.mxu0
  %v3173 = vadd.f32 %v3063, %v3172
  %v3174 = vpop.f32.mrf.mxu0
  %3175 = vmatprep.mubr.bf16.mxu0 0
  %3176 = vmatmul.mubr.bf16.gmra.mxu0 %v3127
  %v3177 = vpop.f32.mrf.mxu0
  %v3178 = vadd.f32 %v3068, %v3177
  %v3179 = vpop.f32.mrf.mxu0
  %v3180 = vpop.f32.mrf.mxu0
  %v3181 = vadd.f32 %v3071, %v3180
  %v3182 = vpop.f32.mrf.mxu0
  %3183 = vmatprep.mubr.bf16.mxu0 0
  %3184 = vmatmul.mubr.bf16.gmra.mxu0 %v3130
  %v3185 = vpop.f32.mrf.mxu0
  %v3186 = vadd.f32 %v3076, %v3185
  %v3187 = vpop.f32.mrf.mxu0
  %v3188 = vpop.f32.mrf.mxu0
  %v3189 = vadd.f32 %v3079, %v3188
  %v3190 = vpop.f32.mrf.mxu0
  %3191 = vmatprep.mubr.bf16.mxu0 0
  %3192 = vmatmul.mubr.bf16.gmra.mxu0 %v3133
  %v3193 = vpop.f32.mrf.mxu0
  %v3194 = vadd.f32 %v3084, %v3193
  %v3195 = vpop.f32.mrf.mxu0
  %v3196 = vpop.f32.mrf.mxu0
  %v3197 = vadd.f32 %v3087, %v3196
  %v3198 = vpop.f32.mrf.mxu0
  %3199 = vdwg.mxu0
  %v3200 = vld [vmem:[%s9] sm:$0x1]
  %v3202 = vlaneseq
  %v3203 = vshrl.u32 %v3202, 7
  %v3204 = vsub.s32 0, %v3203
  %v3205 = vrot.slane %v3200, %v3204
  %v3207 = vadd.f32 %v3170, %v3205
  %v3208 = vadd.f32 %v3173, %v3205
  %v3209 = vadd.f32 %v3178, %v3205
  %v3210 = vadd.f32 %v3181, %v3205
  %v3211 = vadd.f32 %v3186, %v3205
  %v3212 = vadd.f32 %v3189, %v3205
  %v3213 = vadd.f32 %v3194, %v3205
  %v3214 = vadd.f32 %v3197, %v3205
  %v3215 = vpack.c.bf16 %v3207, %v3207
  %v3216 = vpack.c.bf16 %v3208, %v3208
  %v3217 = vpack.c.bf16 %v3209, %v3209
  %v3218 = vpack.c.bf16 %v3210, %v3210
  %v3219 = vpack.c.bf16 %v3211, %v3211
  %v3220 = vpack.c.bf16 %v3212, %v3212
  %v3221 = vpack.c.bf16 %v3213, %v3213
  %v3222 = vpack.c.bf16 %v3214, %v3214
  %3223 = vst [vmem:[#allocation3] sm:$0xf] %v3215
  %3224 = vst [vmem:[#allocation3 + $0x4] sm:$0xf] %v3216
  %3225 = vst [vmem:[#allocation3 + $0x8] sm:$0xf] %v3217
  %3226 = vst [vmem:[#allocation3 + $0xc] sm:$0xf] %v3218
  %3227 = vst [vmem:[#allocation3 + $0x10] sm:$0xf] %v3219
  %3228 = vst [vmem:[#allocation3 + $0x14] sm:$0xf] %v3220
  %3229 = vst [vmem:[#allocation3 + $0x18] sm:$0xf] %v3221
  %3230 = vst [vmem:[#allocation3 + $0x1c] sm:$0xf] %v3222
  %v3231 = vld [vmem:[%s8] sm:$0xf]
  %v3232 = vld [vmem:[%s8 + $0x4] sm:$0xf]
  %v3233 = vld [vmem:[%s8 + $0x8] sm:$0xf]
  %v3234 = vld [vmem:[%s8 + $0xc] sm:$0xf]
  %v3235 = vld [vmem:[%s10] sm:$0x1]
  %v3236 = vld [vmem:[%s11] sm:$0xf]
  %v3237 = vld [vmem:[%s11 + $0x4] sm:$0xf]
  %v3238 = vld [vmem:[%s11 + $0x8] sm:$0xf]
  %v3239 = vld [vmem:[%s11 + $0xc] sm:$0xf]
  %v3240 = vld [vmem:[%s12] sm:$0x1]
  %3241 = vst.msk [vmem:[#allocation4] sm:$0xff] %vm3122, 0.0
  %v3242 = vld [vmem:[#allocation3] sm:$0xf]
  %v3243 = vunpack.c.l.bf16 %v3242
  %v3244 = vld [vmem:[#allocation4] sm:$0xff]
  %v3245 = vpack.c.bf16 %v3244, %v3244
  %v3250 = vunpack.c.l.b16 %v3231
  %v3251 = vunpack.c.l.b16 %v3232
  %v3252 = vunpack.c.l.b16 %v3233
  %v3253 = vunpack.c.l.b16 %v3234
  %v3254 = vpack.c.b16 %v3251, %v3250
  %v3255 = vpack.c.b16 %v3253, %v3252
  %v3259 = vsel %vm3122, %v3245, 0
  %3261 = vmatprep.subr.bf16.mxu0 0
  %3262 = vmatpush1.bf16.msra.mxu0 0
  %3263 = vmatprep.subr.bf16.mxu0 0
  %3264 = vmatpush1.bf16.msra.mxu0 0
  %3265 = vmatprep.subr.bf16.mxu0 0
  %3266 = vmatpush1.bf16.msra.mxu0 0
  %3267 = vmatprep.subr.bf16.mxu0 0
  %3268 = vmatpush1.bf16.msra.mxu0 0
  %3269 = vmatprep.subr.bf16.mxu0 0
  %3270 = vmatpush1.bf16.msra.mxu0 0
  %3271 = vmatprep.subr.bf16.mxu0 0
  %3272 = vmatpush1.bf16.msra.mxu0 0
  %3273 = vmatprep.subr.bf16.mxu0 0
  %3274 = vmatpush1.bf16.msra.mxu0 %v3255
  %3275 = vmatprep.subr.bf16.mxu0 0
  %3276 = vmatpush1.bf16.msra.mxu0 %v3254
  %3277 = vmatprep.subr.bf16.mxu0 0
  %3278 = vmatpush2.bf16.msra.mxu0 0
  %3279 = vmatprep.subr.bf16.mxu0 0
  %3280 = vmatpush2.bf16.msra.mxu0 0
  %3281 = vmatprep.subr.bf16.mxu0 0
  %3282 = vmatpush2.bf16.msra.mxu0 0
  %3283 = vmatprep.subr.bf16.mxu0 0
  %3284 = vmatpush2.bf16.msra.mxu0 0
  %3285 = vmatprep.subr.bf16.mxu0 0
  %3286 = vmatpush2.bf16.msra.mxu0 0
  %3287 = vmatprep.subr.bf16.mxu0 0
  %3288 = vmatpush2.bf16.msra.mxu0 0
  %3289 = vmatprep.subr.bf16.mxu0 0
  %3290 = vmatpush2.bf16.msra.mxu0 0
  %3291 = vmatprep.subr.bf16.mxu0 0
  %3292 = vmatpush2.bf16.msra.mxu0 0
  %3293 = vmatprep.mubr.bf16.mxu0 0
  %3294 = vmatmul.mubr.bf16.gmra.mxu0 %v3259
  %v3295 = vpop.f32.mrf.mxu0
  %v3296 = vadd.f32 0.0, %v3295
  %v3297 = vpop.f32.mrf.mxu0
  %v3298 = vpop.f32.mrf.mxu0
  %v3299 = vpop.f32.mrf.mxu0
  %3300 = vdwg.mxu0
  %v3301 = vadd.f32 %v3243, %v3296
  %v3302 = vxor.u32 %v3301, 2147483648
  %v3303 = vmul.f32 %v3302, 1.442695
  %v3304 = vpow.pop %v3303
  %v3305 = vadd.f32 %v3304, 1.0
  %v3306 = vrcp.pop %v3305
  %v3307 = vmul.f32 1.0, %v3306
  %v3309 = vlaneseq
  %v3310 = vshrl.u32 %v3309, 7
  %v3311 = vsub.s32 0, %v3310
  %v3312 = vrot.slane %v3235, %v3311
  %3313 = vrot.lane.b32.xlu0 %v3312, 64
  %v3314 = vpop.permute.xlu0 %3313
  %v3316 = vadd.f32 %v3296, %v3314
  %3318 = vrot.lane.b32.xlu0 %v3316, 64
  %v3319 = vpop.permute.xlu0 %3318
  %v3321 = vmul.f32 %v3307, %v3319
  %3323 = vrot.lane.b32.xlu0 %v3321, 64
  %v3324 = vpop.permute.xlu0 %3323
  %v3326 = vadd.f32 %v3243, %v3324
  %v3327 = vtanh.pop %v3326
  %v3328 = vsub.f32 1.0, %v3307
  %3330 = vrot.lane.b32.xlu0 %v3327, 96
  %v3331 = vpop.permute.xlu0 %3330
  %v3333 = vmul.f32 %v3328, %v3331
  %3335 = vrot.lane.b32.xlu0 %v3244, 32
  %v3336 = vpop.permute.xlu0 %3335
  %v3338 = vmul.f32 %v3307, %v3336
  %v3339 = vadd.f32 %v3333, %v3338
  %3341 = vrot.lane.b32.xlu0 %v3339, 96
  %v3342 = vpop.permute.xlu0 %3341
  %3344 = vst.msk [vmem:[#allocation4] sm:$0xff] %vm3122, %v3342
  %v3345 = vpack.c.bf16 %v3339, %v3339
  %v3347 = vlaneseq
  %v3348 = vshrl.u32 %v3347, 7
  %v3349 = vsub.s32 0, %v3348
  %v3350 = vrot.slane %v3240, %v3349
  %3353 = vrot.lane.b32.xlu0 %v3345, 96
  %v3354 = vpop.permute.xlu0 %3353
  %v3359 = vunpack.c.l.b16 %v3236
  %v3360 = vunpack.c.l.b16 %v3237
  %v3361 = vunpack.c.l.b16 %v3238
  %v3362 = vunpack.c.l.b16 %v3239
  %v3363 = vpack.c.b16 %v3360, %v3359
  %v3364 = vpack.c.b16 %v3362, %v3361
  %v3368 = vsel %vm3122, %v3354, 0
  %3370 = vmatprep.subr.bf16.mxu0 0
  %3371 = vmatpush1.bf16.msra.mxu0 0
  %3372 = vmatprep.subr.bf16.mxu0 0
  %3373 = vmatpush1.bf16.msra.mxu0 0
  %3374 = vmatprep.subr.bf16.mxu0 0
  %3375 = vmatpush1.bf16.msra.mxu0 0
  %3376 = vmatprep.subr.bf16.mxu0 0
  %3377 = vmatpush1.bf16.msra.mxu0 0
  %3378 = vmatprep.subr.bf16.mxu0 0
  %3379 = vmatpush1.bf16.msra.mxu0 0
  %3380 = vmatprep.subr.bf16.mxu0 0
  %3381 = vmatpush1.bf16.msra.mxu0 0
  %3382 = vmatprep.subr.bf16.mxu0 0
  %3383 = vmatpush1.bf16.msra.mxu0 %v3364
  %3384 = vmatprep.subr.bf16.mxu0 0
  %3385 = vmatpush1.bf16.msra.mxu0 %v3363
  %3386 = vmatprep.subr.bf16.mxu0 0
  %3387 = vmatpush2.bf16.msra.mxu0 0
  %3388 = vmatprep.subr.bf16.mxu0 0
  %3389 = vmatpush2.bf16.msra.mxu0 0
  %3390 = vmatprep.subr.bf16.mxu0 0
  %3391 = vmatpush2.bf16.msra.mxu0 0
  %3392 = vmatprep.subr.bf16.mxu0 0
  %3393 = vmatpush2.bf16.msra.mxu0 0
  %3394 = vmatprep.subr.bf16.mxu0 0
  %3395 = vmatpush2.bf16.msra.mxu0 0
  %3396 = vmatprep.subr.bf16.mxu0 0
  %3397 = vmatpush2.bf16.msra.mxu0 0
  %3398 = vmatprep.subr.bf16.mxu0 0
  %3399 = vmatpush2.bf16.msra.mxu0 0
  %3400 = vmatprep.subr.bf16.mxu0 0
  %3401 = vmatpush2.bf16.msra.mxu0 0
  %3402 = vmatprep.mubr.bf16.mxu0 0
  %3403 = vmatmul.mubr.bf16.gmra.mxu0 %v3368
  %v3404 = vpop.f32.mrf.mxu0
  %v3405 = vadd.f32 %v3350, %v3404
  %v3406 = vpop.f32.mrf.mxu0
  %v3407 = vpop.f32.mrf.mxu0
  %v3408 = vpop.f32.mrf.mxu0
  %3409 = vdwg.mxu0
  %3410 = vst [vmem:[%s13] sm:$0xff] %v3405
  %s3411 = scalar_lea.vmem [#allocation3], 4
  %v3412 = vld [vmem:[%s3411] sm:$0xf]
  %v3413 = vunpack.c.l.bf16 %v3412
  %v3414 = vld [vmem:[#allocation4] sm:$0xff]
  %v3415 = vpack.c.bf16 %v3414, %v3414
  %v3417 = vsel %vm3122, %v3415, 0
  %3419 = vmatprep.subr.bf16.mxu0 0
  %3420 = vmatpush1.bf16.msra.mxu0 0
  %3421 = vmatprep.subr.bf16.mxu0 0
  %3422 = vmatpush1.bf16.msra.mxu0 0
  %3423 = vmatprep.subr.bf16.mxu0 0
  %3424 = vmatpush1.bf16.msra.mxu0 0
  %3425 = vmatprep.subr.bf16.mxu0 0
  %3426 = vmatpush1.bf16.msra.mxu0 0
  %3427 = vmatprep.subr.bf16.mxu0 0
  %3428 = vmatpush1.bf16.msra.mxu0 0
  %3429 = vmatprep.subr.bf16.mxu0 0
  %3430 = vmatpush1.bf16.msra.mxu0 0
  %3431 = vmatprep.subr.bf16.mxu0 0
  %3432 = vmatpush1.bf16.msra.mxu0 %v3255
  %3433 = vmatprep.subr.bf16.mxu0 0
  %3434 = vmatpush1.bf16.msra.mxu0 %v3254
  %3435 = vmatprep.subr.bf16.mxu0 0
  %3436 = vmatpush2.bf16.msra.mxu0 0
  %3437 = vmatprep.subr.bf16.mxu0 0
  %3438 = vmatpush2.bf16.msra.mxu0 0
  %3439 = vmatprep.subr.bf16.mxu0 0
  %3440 = vmatpush2.bf16.msra.mxu0 0
  %3441 = vmatprep.subr.bf16.mxu0 0
  %3442 = vmatpush2.bf16.msra.mxu0 0
  %3443 = vmatprep.subr.bf16.mxu0 0
  %3444 = vmatpush2.bf16.msra.mxu0 0
  %3445 = vmatprep.subr.bf16.mxu0 0
  %3446 = vmatpush2.bf16.msra.mxu0 0
  %3447 = vmatprep.subr.bf16.mxu0 0
  %3448 = vmatpush2.bf16.msra.mxu0 0
  %3449 = vmatprep.subr.bf16.mxu0 0
  %3450 = vmatpush2.bf16.msra.mxu0 0
  %3451 = vmatprep.mubr.bf16.mxu0 0
  %3452 = vmatmul.mubr.bf16.gmra.mxu0 %v3417
  %v3453 = vpop.f32.mrf.mxu0
  %v3454 = vadd.f32 0.0, %v3453
  %v3455 = vpop.f32.mrf.mxu0
  %v3456 = vpop.f32.mrf.mxu0
  %v3457 = vpop.f32.mrf.mxu0
  %3458 = vdwg.mxu0
  %v3459 = vadd.f32 %v3413, %v3454
  %v3460 = vxor.u32 %v3459, 2147483648
  %v3461 = vmul.f32 %v3460, 1.442695
  %v3462 = vpow.pop %v3461
  %v3463 = vadd.f32 %v3462, 1.0
  %v3464 = vrcp.pop %v3463
  %v3465 = vmul.f32 1.0, %v3464
  %v3466 = vadd.f32 %v3454, %v3314
  %3468 = vrot.lane.b32.xlu0 %v3466, 64
  %v3469 = vpop.permute.xlu0 %3468
  %v3471 = vmul.f32 %v3465, %v3469
  %3473 = vrot.lane.b32.xlu0 %v3471, 64
  %v3474 = vpop.permute.xlu0 %3473
  %v3476 = vadd.f32 %v3413, %v3474
  %v3477 = vtanh.pop %v3476
  %v3478 = vsub.f32 1.0, %v3465
  %3480 = vrot.lane.b32.xlu0 %v3477, 96
  %v3481 = vpop.permute.xlu0 %3480
  %v3483 = vmul.f32 %v3478, %v3481
  %3485 = vrot.lane.b32.xlu0 %v3414, 32
  %v3486 = vpop.permute.xlu0 %3485
  %v3488 = vmul.f32 %v3465, %v3486
  %v3489 = vadd.f32 %v3483, %v3488
  %3491 = vrot.lane.b32.xlu0 %v3489, 96
  %v3492 = vpop.permute.xlu0 %3491
  %3494 = vst.msk [vmem:[#allocation4] sm:$0xff] %vm3122, %v3492
  %v3495 = vpack.c.bf16 %v3489, %v3489
  %3497 = vrot.lane.b32.xlu0 %v3495, 96
  %v3498 = vpop.permute.xlu0 %3497
  %v3500 = vsel %vm3122, %v3498, 0
  %3502 = vmatprep.subr.bf16.mxu0 0
  %3503 = vmatpush1.bf16.msra.mxu0 0
  %3504 = vmatprep.subr.bf16.mxu0 0
  %3505 = vmatpush1.bf16.msra.mxu0 0
  %3506 = vmatprep.subr.bf16.mxu0 0
  %3507 = vmatpush1.bf16.msra.mxu0 0
  %3508 = vmatprep.subr.bf16.mxu0 0
  %3509 = vmatpush1.bf16.msra.mxu0 0
  %3510 = vmatprep.subr.bf16.mxu0 0
  %3511 = vmatpush1.bf16.msra.mxu0 0
  %3512 = vmatprep.subr.bf16.mxu0 0
  %3513 = vmatpush1.bf16.msra.mxu0 0
  %3514 = vmatprep.subr.bf16.mxu0 0
  %3515 = vmatpush1.bf16.msra.mxu0 %v3364
  %3516 = vmatprep.subr.bf16.mxu0 0
  %3517 = vmatpush1.bf16.msra.mxu0 %v3363
  %3518 = vmatprep.subr.bf16.mxu0 0
  %3519 = vmatpush2.bf16.msra.mxu0 0
  %3520 = vmatprep.subr.bf16.mxu0 0
  %3521 = vmatpush2.bf16.msra.mxu0 0
  %3522 = vmatprep.subr.bf16.mxu0 0
  %3523 = vmatpush2.bf16.msra.mxu0 0
  %3524 = vmatprep.subr.bf16.mxu0 0
  %3525 = vmatpush2.bf16.msra.mxu0 0
  %3526 = vmatprep.subr.bf16.mxu0 0
  %3527 = vmatpush2.bf16.msra.mxu0 0
  %3528 = vmatprep.subr.bf16.mxu0 0
  %3529 = vmatpush2.bf16.msra.mxu0 0
  %3530 = vmatprep.subr.bf16.mxu0 0
  %3531 = vmatpush2.bf16.msra.mxu0 0
  %3532 = vmatprep.subr.bf16.mxu0 0
  %3533 = vmatpush2.bf16.msra.mxu0 0
  %3534 = vmatprep.mubr.bf16.mxu0 0
  %3535 = vmatmul.mubr.bf16.gmra.mxu0 %v3500
  %v3536 = vpop.f32.mrf.mxu0
  %v3537 = vadd.f32 %v3350, %v3536
  %v3538 = vpop.f32.mrf.mxu0
  %v3539 = vpop.f32.mrf.mxu0
  %v3540 = vpop.f32.mrf.mxu0
  %3541 = vdwg.mxu0
  %s3542 = scalar_lea.vmem %s13, 8
  %3543 = vst [vmem:[%s3542] sm:$0xff] %v3537
  %s3544 = scalar_lea.vmem [#allocation3], 8
  %v3545 = vld [vmem:[%s3544] sm:$0xf]
  %v3546 = vunpack.c.l.bf16 %v3545
  %v3547 = vld [vmem:[#allocation4] sm:$0xff]
  %v3548 = vpack.c.bf16 %v3547, %v3547
  %v3550 = vsel %vm3122, %v3548, 0
  %3552 = vmatprep.subr.bf16.mxu0 0
  %3553 = vmatpush1.bf16.msra.mxu0 0
  %3554 = vmatprep.subr.bf16.mxu0 0
  %3555 = vmatpush1.bf16.msra.mxu0 0
  %3556 = vmatprep.subr.bf16.mxu0 0
  %3557 = vmatpush1.bf16.msra.mxu0 0
  %3558 = vmatprep.subr.bf16.mxu0 0
  %3559 = vmatpush1.bf16.msra.mxu0 0
  %3560 = vmatprep.subr.bf16.mxu0 0
  %3561 = vmatpush1.bf16.msra.mxu0 0
  %3562 = vmatprep.subr.bf16.mxu0 0
  %3563 = vmatpush1.bf16.msra.mxu0 0
  %3564 = vmatprep.subr.bf16.mxu0 0
  %3565 = vmatpush1.bf16.msra.mxu0 %v3255
  %3566 = vmatprep.subr.bf16.mxu0 0
  %3567 = vmatpush1.bf16.msra.mxu0 %v3254
  %3568 = vmatprep.subr.bf16.mxu0 0
  %3569 = vmatpush2.bf16.msra.mxu0 0
  %3570 = vmatprep.subr.bf16.mxu0 0
  %3571 = vmatpush2.bf16.msra.mxu0 0
  %3572 = vmatprep.subr.bf16.mxu0 0
  %3573 = vmatpush2.bf16.msra.mxu0 0
  %3574 = vmatprep.subr.bf16.mxu0 0
  %3575 = vmatpush2.bf16.msra.mxu0 0
  %3576 = vmatprep.subr.bf16.mxu0 0
  %3577 = vmatpush2.bf16.msra.mxu0 0
  %3578 = vmatprep.subr.bf16.mxu0 0
  %3579 = vmatpush2.bf16.msra.mxu0 0
  %3580 = vmatprep.subr.bf16.mxu0 0
  %3581 = vmatpush2.bf16.msra.mxu0 0
  %3582 = vmatprep.subr.bf16.mxu0 0
  %3583 = vmatpush2.bf16.msra.mxu0 0
  %3584 = vmatprep.mubr.bf16.mxu0 0
  %3585 = vmatmul.mubr.bf16.gmra.mxu0 %v3550
  %v3586 = vpop.f32.mrf.mxu0
  %v3587 = vadd.f32 0.0, %v3586
  %v3588 = vpop.f32.mrf.mxu0
  %v3589 = vpop.f32.mrf.mxu0
  %v3590 = vpop.f32.mrf.mxu0
  %3591 = vdwg.mxu0
  %v3592 = vadd.f32 %v3546, %v3587
  %v3593 = vxor.u32 %v3592, 2147483648
  %v3594 = vmul.f32 %v3593, 1.442695
  %v3595 = vpow.pop %v3594
  %v3596 = vadd.f32 %v3595, 1.0
  %v3597 = vrcp.pop %v3596
  %v3598 = vmul.f32 1.0, %v3597
  %v3599 = vadd.f32 %v3587, %v3314
  %3601 = vrot.lane.b32.xlu0 %v3599, 64
  %v3602 = vpop.permute.xlu0 %3601
  %v3604 = vmul.f32 %v3598, %v3602
  %3606 = vrot.lane.b32.xlu0 %v3604, 64
  %v3607 = vpop.permute.xlu0 %3606
  %v3609 = vadd.f32 %v3546, %v3607
  %v3610 = vtanh.pop %v3609
  %v3611 = vsub.f32 1.0, %v3598
  %3613 = vrot.lane.b32.xlu0 %v3610, 96
  %v3614 = vpop.permute.xlu0 %3613
  %v3616 = vmul.f32 %v3611, %v3614
  %3618 = vrot.lane.b32.xlu0 %v3547, 32
  %v3619 = vpop.permute.xlu0 %3618
  %v3621 = vmul.f32 %v3598, %v3619
  %v3622 = vadd.f32 %v3616, %v3621
  %3624 = vrot.lane.b32.xlu0 %v3622, 96
  %v3625 = vpop.permute.xlu0 %3624
  %3627 = vst.msk [vmem:[#allocation4] sm:$0xff] %vm3122, %v3625
  %v3628 = vpack.c.bf16 %v3622, %v3622
  %3630 = vrot.lane.b32.xlu0 %v3628, 96
  %v3631 = vpop.permute.xlu0 %3630
  %v3633 = vsel %vm3122, %v3631, 0
  %3635 = vmatprep.subr.bf16.mxu0 0
  %3636 = vmatpush1.bf16.msra.mxu0 0
  %3637 = vmatprep.subr.bf16.mxu0 0
  %3638 = vmatpush1.bf16.msra.mxu0 0
  %3639 = vmatprep.subr.bf16.mxu0 0
  %3640 = vmatpush1.bf16.msra.mxu0 0
  %3641 = vmatprep.subr.bf16.mxu0 0
  %3642 = vmatpush1.bf16.msra.mxu0 0
  %3643 = vmatprep.subr.bf16.mxu0 0
  %3644 = vmatpush1.bf16.msra.mxu0 0
  %3645 = vmatprep.subr.bf16.mxu0 0
  %3646 = vmatpush1.bf16.msra.mxu0 0
  %3647 = vmatprep.subr.bf16.mxu0 0
  %3648 = vmatpush1.bf16.msra.mxu0 %v3364
  %3649 = vmatprep.subr.bf16.mxu0 0
  %3650 = vmatpush1.bf16.msra.mxu0 %v3363
  %3651 = vmatprep.subr.bf16.mxu0 0
  %3652 = vmatpush2.bf16.msra.mxu0 0
  %3653 = vmatprep.subr.bf16.mxu0 0
  %3654 = vmatpush2.bf16.msra.mxu0 0
  %3655 = vmatprep.subr.bf16.mxu0 0
  %3656 = vmatpush2.bf16.msra.mxu0 0
  %3657 = vmatprep.subr.bf16.mxu0 0
  %3658 = vmatpush2.bf16.msra.mxu0 0
  %3659 = vmatprep.subr.bf16.mxu0 0
  %3660 = vmatpush2.bf16.msra.mxu0 0
  %3661 = vmatprep.subr.bf16.mxu0 0
  %3662 = vmatpush2.bf16.msra.mxu0 0
  %3663 = vmatprep.subr.bf16.mxu0 0
  %3664 = vmatpush2.bf16.msra.mxu0 0
  %3665 = vmatprep.subr.bf16.mxu0 0
  %3666 = vmatpush2.bf16.msra.mxu0 0
  %3667 = vmatprep.mubr.bf16.mxu0 0
  %3668 = vmatmul.mubr.bf16.gmra.mxu0 %v3633
  %v3669 = vpop.f32.mrf.mxu0
  %v3670 = vadd.f32 %v3350, %v3669
  %v3671 = vpop.f32.mrf.mxu0
  %v3672 = vpop.f32.mrf.mxu0
  %v3673 = vpop.f32.mrf.mxu0
  %3674 = vdwg.mxu0
  %s3675 = scalar_lea.vmem %s13, 16
  %3676 = vst [vmem:[%s3675] sm:$0xff] %v3670
  %s3677 = scalar_lea.vmem [#allocation3], 12
  %v3678 = vld [vmem:[%s3677] sm:$0xf]
  %v3679 = vunpack.c.l.bf16 %v3678
  %v3680 = vld [vmem:[#allocation4] sm:$0xff]
  %v3681 = vpack.c.bf16 %v3680, %v3680
  %v3683 = vsel %vm3122, %v3681, 0
  %3685 = vmatprep.subr.bf16.mxu0 0
  %3686 = vmatpush1.bf16.msra.mxu0 0
  %3687 = vmatprep.subr.bf16.mxu0 0
  %3688 = vmatpush1.bf16.msra.mxu0 0
  %3689 = vmatprep.subr.bf16.mxu0 0
  %3690 = vmatpush1.bf16.msra.mxu0 0
  %3691 = vmatprep.subr.bf16.mxu0 0
  %3692 = vmatpush1.bf16.msra.mxu0 0
  %3693 = vmatprep.subr.bf16.mxu0 0
  %3694 = vmatpush1.bf16.msra.mxu0 0
  %3695 = vmatprep.subr.bf16.mxu0 0
  %3696 = vmatpush1.bf16.msra.mxu0 0
  %3697 = vmatprep.subr.bf16.mxu0 0
  %3698 = vmatpush1.bf16.msra.mxu0 %v3255
  %3699 = vmatprep.subr.bf16.mxu0 0
  %3700 = vmatpush1.bf16.msra.mxu0 %v3254
  %3701 = vmatprep.subr.bf16.mxu0 0
  %3702 = vmatpush2.bf16.msra.mxu0 0
  %3703 = vmatprep.subr.bf16.mxu0 0
  %3704 = vmatpush2.bf16.msra.mxu0 0
  %3705 = vmatprep.subr.bf16.mxu0 0
  %3706 = vmatpush2.bf16.msra.mxu0 0
  %3707 = vmatprep.subr.bf16.mxu0 0
  %3708 = vmatpush2.bf16.msra.mxu0 0
  %3709 = vmatprep.subr.bf16.mxu0 0
  %3710 = vmatpush2.bf16.msra.mxu0 0
  %3711 = vmatprep.subr.bf16.mxu0 0
  %3712 = vmatpush2.bf16.msra.mxu0 0
  %3713 = vmatprep.subr.bf16.mxu0 0
  %3714 = vmatpush2.bf16.msra.mxu0 0
  %3715 = vmatprep.subr.bf16.mxu0 0
  %3716 = vmatpush2.bf16.msra.mxu0 0
  %3717 = vmatprep.mubr.bf16.mxu0 0
  %3718 = vmatmul.mubr.bf16.gmra.mxu0 %v3683
  %v3719 = vpop.f32.mrf.mxu0
  %v3720 = vadd.f32 0.0, %v3719
  %v3721 = vpop.f32.mrf.mxu0
  %v3722 = vpop.f32.mrf.mxu0
  %v3723 = vpop.f32.mrf.mxu0
  %3724 = vdwg.mxu0
  %v3725 = vadd.f32 %v3679, %v3720
  %v3726 = vxor.u32 %v3725, 2147483648
  %v3727 = vmul.f32 %v3726, 1.442695
  %v3728 = vpow.pop %v3727
  %v3729 = vadd.f32 %v3728, 1.0
  %v3730 = vrcp.pop %v3729
  %v3731 = vmul.f32 1.0, %v3730
  %v3732 = vadd.f32 %v3720, %v3314
  %3734 = vrot.lane.b32.xlu0 %v3732, 64
  %v3735 = vpop.permute.xlu0 %3734
  %v3737 = vmul.f32 %v3731, %v3735
  %3739 = vrot.lane.b32.xlu0 %v3737, 64
  %v3740 = vpop.permute.xlu0 %3739
  %v3742 = vadd.f32 %v3679, %v3740
  %v3743 = vtanh.pop %v3742
  %v3744 = vsub.f32 1.0, %v3731
  %3746 = vrot.lane.b32.xlu0 %v3743, 96
  %v3747 = vpop.permute.xlu0 %3746
  %v3749 = vmul.f32 %v3744, %v3747
  %3751 = vrot.lane.b32.xlu0 %v3680, 32
  %v3752 = vpop.permute.xlu0 %3751
  %v3754 = vmul.f32 %v3731, %v3752
  %v3755 = vadd.f32 %v3749, %v3754
  %3757 = vrot.lane.b32.xlu0 %v3755, 96
  %v3758 = vpop.permute.xlu0 %3757
  %3760 = vst.msk [vmem:[#allocation4] sm:$0xff] %vm3122, %v3758
  %v3761 = vpack.c.bf16 %v3755, %v3755
  %3763 = vrot.lane.b32.xlu0 %v3761, 96
  %v3764 = vpop.permute.xlu0 %3763
  %v3766 = vsel %vm3122, %v3764, 0
  %3768 = vmatprep.subr.bf16.mxu0 0
  %3769 = vmatpush1.bf16.msra.mxu0 0
  %3770 = vmatprep.subr.bf16.mxu0 0
  %3771 = vmatpush1.bf16.msra.mxu0 0
  %3772 = vmatprep.subr.bf16.mxu0 0
  %3773 = vmatpush1.bf16.msra.mxu0 0
  %3774 = vmatprep.subr.bf16.mxu0 0
  %3775 = vmatpush1.bf16.msra.mxu0 0
  %3776 = vmatprep.subr.bf16.mxu0 0
  %3777 = vmatpush1.bf16.msra.mxu0 0
  %3778 = vmatprep.subr.bf16.mxu0 0
  %3779 = vmatpush1.bf16.msra.mxu0 0
  %3780 = vmatprep.subr.bf16.mxu0 0
  %3781 = vmatpush1.bf16.msra.mxu0 %v3364
  %3782 = vmatprep.subr.bf16.mxu0 0
  %3783 = vmatpush1.bf16.msra.mxu0 %v3363
  %3784 = vmatprep.subr.bf16.mxu0 0
  %3785 = vmatpush2.bf16.msra.mxu0 0
  %3786 = vmatprep.subr.bf16.mxu0 0
  %3787 = vmatpush2.bf16.msra.mxu0 0
  %3788 = vmatprep.subr.bf16.mxu0 0
  %3789 = vmatpush2.bf16.msra.mxu0 0
  %3790 = vmatprep.subr.bf16.mxu0 0
  %3791 = vmatpush2.bf16.msra.mxu0 0
  %3792 = vmatprep.subr.bf16.mxu0 0
  %3793 = vmatpush2.bf16.msra.mxu0 0
  %3794 = vmatprep.subr.bf16.mxu0 0
  %3795 = vmatpush2.bf16.msra.mxu0 0
  %3796 = vmatprep.subr.bf16.mxu0 0
  %3797 = vmatpush2.bf16.msra.mxu0 0
  %3798 = vmatprep.subr.bf16.mxu0 0
  %3799 = vmatpush2.bf16.msra.mxu0 0
  %3800 = vmatprep.mubr.bf16.mxu0 0
  %3801 = vmatmul.mubr.bf16.gmra.mxu0 %v3766
  %v3802 = vpop.f32.mrf.mxu0
  %v3803 = vadd.f32 %v3350, %v3802
  %v3804 = vpop.f32.mrf.mxu0
  %v3805 = vpop.f32.mrf.mxu0
  %v3806 = vpop.f32.mrf.mxu0
  %3807 = vdwg.mxu0
  %s3808 = scalar_lea.vmem %s13, 24
  %3809 = vst [vmem:[%s3808] sm:$0xff] %v3803
  %s3810 = scalar_lea.vmem [#allocation3], 16
  %v3811 = vld [vmem:[%s3810] sm:$0xf]
  %v3812 = vunpack.c.l.bf16 %v3811
  %v3813 = vld [vmem:[#allocation4] sm:$0xff]
  %v3814 = vpack.c.bf16 %v3813, %v3813
  %v3816 = vsel %vm3122, %v3814, 0
  %3818 = vmatprep.subr.bf16.mxu0 0
  %3819 = vmatpush1.bf16.msra.mxu0 0
  %3820 = vmatprep.subr.bf16.mxu0 0
  %3821 = vmatpush1.bf16.msra.mxu0 0
  %3822 = vmatprep.subr.bf16.mxu0 0
  %3823 = vmatpush1.bf16.msra.mxu0 0
  %3824 = vmatprep.subr.bf16.mxu0 0
  %3825 = vmatpush1.bf16.msra.mxu0 0
  %3826 = vmatprep.subr.bf16.mxu0 0
  %3827 = vmatpush1.bf16.msra.mxu0 0
  %3828 = vmatprep.subr.bf16.mxu0 0
  %3829 = vmatpush1.bf16.msra.mxu0 0
  %3830 = vmatprep.subr.bf16.mxu0 0
  %3831 = vmatpush1.bf16.msra.mxu0 %v3255
  %3832 = vmatprep.subr.bf16.mxu0 0
  %3833 = vmatpush1.bf16.msra.mxu0 %v3254
  %3834 = vmatprep.subr.bf16.mxu0 0
  %3835 = vmatpush2.bf16.msra.mxu0 0
  %3836 = vmatprep.subr.bf16.mxu0 0
  %3837 = vmatpush2.bf16.msra.mxu0 0
  %3838 = vmatprep.subr.bf16.mxu0 0
  %3839 = vmatpush2.bf16.msra.mxu0 0
  %3840 = vmatprep.subr.bf16.mxu0 0
  %3841 = vmatpush2.bf16.msra.mxu0 0
  %3842 = vmatprep.subr.bf16.mxu0 0
  %3843 = vmatpush2.bf16.msra.mxu0 0
  %3844 = vmatprep.subr.bf16.mxu0 0
  %3845 = vmatpush2.bf16.msra.mxu0 0
  %3846 = vmatprep.subr.bf16.mxu0 0
  %3847 = vmatpush2.bf16.msra.mxu0 0
  %3848 = vmatprep.subr.bf16.mxu0 0
  %3849 = vmatpush2.bf16.msra.mxu0 0
  %3850 = vmatprep.mubr.bf16.mxu0 0
  %3851 = vmatmul.mubr.bf16.gmra.mxu0 %v3816
  %v3852 = vpop.f32.mrf.mxu0
  %v3853 = vadd.f32 0.0, %v3852
  %v3854 = vpop.f32.mrf.mxu0
  %v3855 = vpop.f32.mrf.mxu0
  %v3856 = vpop.f32.mrf.mxu0
  %3857 = vdwg.mxu0
  %v3858 = vadd.f32 %v3812, %v3853
  %v3859 = vxor.u32 %v3858, 2147483648
  %v3860 = vmul.f32 %v3859, 1.442695
  %v3861 = vpow.pop %v3860
  %v3862 = vadd.f32 %v3861, 1.0
  %v3863 = vrcp.pop %v3862
  %v3864 = vmul.f32 1.0, %v3863
  %v3865 = vadd.f32 %v3853, %v3314
  %3867 = vrot.lane.b32.xlu0 %v3865, 64
  %v3868 = vpop.permute.xlu0 %3867
  %v3870 = vmul.f32 %v3864, %v3868
  %3872 = vrot.lane.b32.xlu0 %v3870, 64
  %v3873 = vpop.permute.xlu0 %3872
  %v3875 = vadd.f32 %v3812, %v3873
  %v3876 = vtanh.pop %v3875
  %v3877 = vsub.f32 1.0, %v3864
  %3879 = vrot.lane.b32.xlu0 %v3876, 96
  %v3880 = vpop.permute.xlu0 %3879
  %v3882 = vmul.f32 %v3877, %v3880
  %3884 = vrot.lane.b32.xlu0 %v3813, 32
  %v3885 = vpop.permute.xlu0 %3884
  %v3887 = vmul.f32 %v3864, %v3885
  %v3888 = vadd.f32 %v3882, %v3887
  %3890 = vrot.lane.b32.xlu0 %v3888, 96
  %v3891 = vpop.permute.xlu0 %3890
  %3893 = vst.msk [vmem:[#allocation4] sm:$0xff] %vm3122, %v3891
  %v3894 = vpack.c.bf16 %v3888, %v3888
  %3896 = vrot.lane.b32.xlu0 %v3894, 96
  %v3897 = vpop.permute.xlu0 %3896
  %v3899 = vsel %vm3122, %v3897, 0
  %3901 = vmatprep.subr.bf16.mxu0 0
  %3902 = vmatpush1.bf16.msra.mxu0 0
  %3903 = vmatprep.subr.bf16.mxu0 0
  %3904 = vmatpush1.bf16.msra.mxu0 0
  %3905 = vmatprep.subr.bf16.mxu0 0
  %3906 = vmatpush1.bf16.msra.mxu0 0
  %3907 = vmatprep.subr.bf16.mxu0 0
  %3908 = vmatpush1.bf16.msra.mxu0 0
  %3909 = vmatprep.subr.bf16.mxu0 0
  %3910 = vmatpush1.bf16.msra.mxu0 0
  %3911 = vmatprep.subr.bf16.mxu0 0
  %3912 = vmatpush1.bf16.msra.mxu0 0
  %3913 = vmatprep.subr.bf16.mxu0 0
  %3914 = vmatpush1.bf16.msra.mxu0 %v3364
  %3915 = vmatprep.subr.bf16.mxu0 0
  %3916 = vmatpush1.bf16.msra.mxu0 %v3363
  %3917 = vmatprep.subr.bf16.mxu0 0
  %3918 = vmatpush2.bf16.msra.mxu0 0
  %3919 = vmatprep.subr.bf16.mxu0 0
  %3920 = vmatpush2.bf16.msra.mxu0 0
  %3921 = vmatprep.subr.bf16.mxu0 0
  %3922 = vmatpush2.bf16.msra.mxu0 0
  %3923 = vmatprep.subr.bf16.mxu0 0
  %3924 = vmatpush2.bf16.msra.mxu0 0
  %3925 = vmatprep.subr.bf16.mxu0 0
  %3926 = vmatpush2.bf16.msra.mxu0 0
  %3927 = vmatprep.subr.bf16.mxu0 0
  %3928 = vmatpush2.bf16.msra.mxu0 0
  %3929 = vmatprep.subr.bf16.mxu0 0
  %3930 = vmatpush2.bf16.msra.mxu0 0
  %3931 = vmatprep.subr.bf16.mxu0 0
  %3932 = vmatpush2.bf16.msra.mxu0 0
  %3933 = vmatprep.mubr.bf16.mxu0 0
  %3934 = vmatmul.mubr.bf16.gmra.mxu0 %v3899
  %v3935 = vpop.f32.mrf.mxu0
  %v3936 = vadd.f32 %v3350, %v3935
  %v3937 = vpop.f32.mrf.mxu0
  %v3938 = vpop.f32.mrf.mxu0
  %v3939 = vpop.f32.mrf.mxu0
  %3940 = vdwg.mxu0
  %s3941 = scalar_lea.vmem %s13, 32
  %3942 = vst [vmem:[%s3941] sm:$0xff] %v3936
  %s3943 = scalar_lea.vmem [#allocation3], 20
  %v3944 = vld [vmem:[%s3943] sm:$0xf]
  %v3945 = vunpack.c.l.bf16 %v3944
  %v3946 = vld [vmem:[#allocation4] sm:$0xff]
  %v3947 = vpack.c.bf16 %v3946, %v3946
  %v3949 = vsel %vm3122, %v3947, 0
  %3951 = vmatprep.subr.bf16.mxu0 0
  %3952 = vmatpush1.bf16.msra.mxu0 0
  %3953 = vmatprep.subr.bf16.mxu0 0
  %3954 = vmatpush1.bf16.msra.mxu0 0
  %3955 = vmatprep.subr.bf16.mxu0 0
  %3956 = vmatpush1.bf16.msra.mxu0 0
  %3957 = vmatprep.subr.bf16.mxu0 0
  %3958 = vmatpush1.bf16.msra.mxu0 0
  %3959 = vmatprep.subr.bf16.mxu0 0
  %3960 = vmatpush1.bf16.msra.mxu0 0
  %3961 = vmatprep.subr.bf16.mxu0 0
  %3962 = vmatpush1.bf16.msra.mxu0 0
  %3963 = vmatprep.subr.bf16.mxu0 0
  %3964 = vmatpush1.bf16.msra.mxu0 %v3255
  %3965 = vmatprep.subr.bf16.mxu0 0
  %3966 = vmatpush1.bf16.msra.mxu0 %v3254
  %3967 = vmatprep.subr.bf16.mxu0 0
  %3968 = vmatpush2.bf16.msra.mxu0 0
  %3969 = vmatprep.subr.bf16.mxu0 0
  %3970 = vmatpush2.bf16.msra.mxu0 0
  %3971 = vmatprep.subr.bf16.mxu0 0
  %3972 = vmatpush2.bf16.msra.mxu0 0
  %3973 = vmatprep.subr.bf16.mxu0 0
  %3974 = vmatpush2.bf16.msra.mxu0 0
  %3975 = vmatprep.subr.bf16.mxu0 0
  %3976 = vmatpush2.bf16.msra.mxu0 0
  %3977 = vmatprep.subr.bf16.mxu0 0
  %3978 = vmatpush2.bf16.msra.mxu0 0
  %3979 = vmatprep.subr.bf16.mxu0 0
  %3980 = vmatpush2.bf16.msra.mxu0 0
  %3981 = vmatprep.subr.bf16.mxu0 0
  %3982 = vmatpush2.bf16.msra.mxu0 0
  %3983 = vmatprep.mubr.bf16.mxu0 0
  %3984 = vmatmul.mubr.bf16.gmra.mxu0 %v3949
  %v3985 = vpop.f32.mrf.mxu0
  %v3986 = vadd.f32 0.0, %v3985
  %v3987 = vpop.f32.mrf.mxu0
  %v3988 = vpop.f32.mrf.mxu0
  %v3989 = vpop.f32.mrf.mxu0
  %3990 = vdwg.mxu0
  %v3991 = vadd.f32 %v3945, %v3986
  %v3992 = vxor.u32 %v3991, 2147483648
  %v3993 = vmul.f32 %v3992, 1.442695
  %v3994 = vpow.pop %v3993
  %v3995 = vadd.f32 %v3994, 1.0
  %v3996 = vrcp.pop %v3995
  %v3997 = vmul.f32 1.0, %v3996
  %v3998 = vadd.f32 %v3986, %v3314
  %4000 = vrot.lane.b32.xlu0 %v3998, 64
  %v4001 = vpop.permute.xlu0 %4000
  %v4003 = vmul.f32 %v3997, %v4001
  %4005 = vrot.lane.b32.xlu0 %v4003, 64
  %v4006 = vpop.permute.xlu0 %4005
  %v4008 = vadd.f32 %v3945, %v4006
  %v4009 = vtanh.pop %v4008
  %v4010 = vsub.f32 1.0, %v3997
  %4012 = vrot.lane.b32.xlu0 %v4009, 96
  %v4013 = vpop.permute.xlu0 %4012
  %v4015 = vmul.f32 %v4010, %v4013
  %4017 = vrot.lane.b32.xlu0 %v3946, 32
  %v4018 = vpop.permute.xlu0 %4017
  %v4020 = vmul.f32 %v3997, %v4018
  %v4021 = vadd.f32 %v4015, %v4020
  %4023 = vrot.lane.b32.xlu0 %v4021, 96
  %v4024 = vpop.permute.xlu0 %4023
  %4026 = vst.msk [vmem:[#allocation4] sm:$0xff] %vm3122, %v4024
  %v4027 = vpack.c.bf16 %v4021, %v4021
  %4029 = vrot.lane.b32.xlu0 %v4027, 96
  %v4030 = vpop.permute.xlu0 %4029
  %v4032 = vsel %vm3122, %v4030, 0
  %4034 = vmatprep.subr.bf16.mxu0 0
  %4035 = vmatpush1.bf16.msra.mxu0 0
  %4036 = vmatprep.subr.bf16.mxu0 0
  %4037 = vmatpush1.bf16.msra.mxu0 0
  %4038 = vmatprep.subr.bf16.mxu0 0
  %4039 = vmatpush1.bf16.msra.mxu0 0
  %4040 = vmatprep.subr.bf16.mxu0 0
  %4041 = vmatpush1.bf16.msra.mxu0 0
  %4042 = vmatprep.subr.bf16.mxu0 0
  %4043 = vmatpush1.bf16.msra.mxu0 0
  %4044 = vmatprep.subr.bf16.mxu0 0
  %4045 = vmatpush1.bf16.msra.mxu0 0
  %4046 = vmatprep.subr.bf16.mxu0 0
  %4047 = vmatpush1.bf16.msra.mxu0 %v3364
  %4048 = vmatprep.subr.bf16.mxu0 0
  %4049 = vmatpush1.bf16.msra.mxu0 %v3363
  %4050 = vmatprep.subr.bf16.mxu0 0
  %4051 = vmatpush2.bf16.msra.mxu0 0
  %4052 = vmatprep.subr.bf16.mxu0 0
  %4053 = vmatpush2.bf16.msra.mxu0 0
  %4054 = vmatprep.subr.bf16.mxu0 0
  %4055 = vmatpush2.bf16.msra.mxu0 0
  %4056 = vmatprep.subr.bf16.mxu0 0
  %4057 = vmatpush2.bf16.msra.mxu0 0
  %4058 = vmatprep.subr.bf16.mxu0 0
  %4059 = vmatpush2.bf16.msra.mxu0 0
  %4060 = vmatprep.subr.bf16.mxu0 0
  %4061 = vmatpush2.bf16.msra.mxu0 0
  %4062 = vmatprep.subr.bf16.mxu0 0
  %4063 = vmatpush2.bf16.msra.mxu0 0
  %4064 = vmatprep.subr.bf16.mxu0 0
  %4065 = vmatpush2.bf16.msra.mxu0 0
  %4066 = vmatprep.mubr.bf16.mxu0 0
  %4067 = vmatmul.mubr.bf16.gmra.mxu0 %v4032
  %v4068 = vpop.f32.mrf.mxu0
  %v4069 = vadd.f32 %v3350, %v4068
  %v4070 = vpop.f32.mrf.mxu0
  %v4071 = vpop.f32.mrf.mxu0
  %v4072 = vpop.f32.mrf.mxu0
  %4073 = vdwg.mxu0
  %s4074 = scalar_lea.vmem %s13, 40
  %4075 = vst [vmem:[%s4074] sm:$0xff] %v4069
  %s4076 = scalar_lea.vmem [#allocation3], 24
  %v4077 = vld [vmem:[%s4076] sm:$0xf]
  %v4078 = vunpack.c.l.bf16 %v4077
  %v4079 = vld [vmem:[#allocation4] sm:$0xff]
  %v4080 = vpack.c.bf16 %v4079, %v4079
  %v4082 = vsel %vm3122, %v4080, 0
  %4084 = vmatprep.subr.bf16.mxu0 0
  %4085 = vmatpush1.bf16.msra.mxu0 0
  %4086 = vmatprep.subr.bf16.mxu0 0
  %4087 = vmatpush1.bf16.msra.mxu0 0
  %4088 = vmatprep.subr.bf16.mxu0 0
  %4089 = vmatpush1.bf16.msra.mxu0 0
  %4090 = vmatprep.subr.bf16.mxu0 0
  %4091 = vmatpush1.bf16.msra.mxu0 0
  %4092 = vmatprep.subr.bf16.mxu0 0
  %4093 = vmatpush1.bf16.msra.mxu0 0
  %4094 = vmatprep.subr.bf16.mxu0 0
  %4095 = vmatpush1.bf16.msra.mxu0 0
  %4096 = vmatprep.subr.bf16.mxu0 0
  %4097 = vmatpush1.bf16.msra.mxu0 %v3255
  %4098 = vmatprep.subr.bf16.mxu0 0
  %4099 = vmatpush1.bf16.msra.mxu0 %v3254
  %4100 = vmatprep.subr.bf16.mxu0 0
  %4101 = vmatpush2.bf16.msra.mxu0 0
  %4102 = vmatprep.subr.bf16.mxu0 0
  %4103 = vmatpush2.bf16.msra.mxu0 0
  %4104 = vmatprep.subr.bf16.mxu0 0
  %4105 = vmatpush2.bf16.msra.mxu0 0
  %4106 = vmatprep.subr.bf16.mxu0 0
  %4107 = vmatpush2.bf16.msra.mxu0 0
  %4108 = vmatprep.subr.bf16.mxu0 0
  %4109 = vmatpush2.bf16.msra.mxu0 0
  %4110 = vmatprep.subr.bf16.mxu0 0
  %4111 = vmatpush2.bf16.msra.mxu0 0
  %4112 = vmatprep.subr.bf16.mxu0 0
  %4113 = vmatpush2.bf16.msra.mxu0 0
  %4114 = vmatprep.subr.bf16.mxu0 0
  %4115 = vmatpush2.bf16.msra.mxu0 0
  %4116 = vmatprep.mubr.bf16.mxu0 0
  %4117 = vmatmul.mubr.bf16.gmra.mxu0 %v4082
  %v4118 = vpop.f32.mrf.mxu0
  %v4119 = vadd.f32 0.0, %v4118
  %v4120 = vpop.f32.mrf.mxu0
  %v4121 = vpop.f32.mrf.mxu0
  %v4122 = vpop.f32.mrf.mxu0
  %4123 = vdwg.mxu0
  %v4124 = vadd.f32 %v4078, %v4119
  %v4125 = vxor.u32 %v4124, 2147483648
  %v4126 = vmul.f32 %v4125, 1.442695
  %v4127 = vpow.pop %v4126
  %v4128 = vadd.f32 %v4127, 1.0
  %v4129 = vrcp.pop %v4128
  %v4130 = vmul.f32 1.0, %v4129
  %v4131 = vadd.f32 %v4119, %v3314
  %4133 = vrot.lane.b32.xlu0 %v4131, 64
  %v4134 = vpop.permute.xlu0 %4133
  %v4136 = vmul.f32 %v4130, %v4134
  %4138 = vrot.lane.b32.xlu0 %v4136, 64
  %v4139 = vpop.permute.xlu0 %4138
  %v4141 = vadd.f32 %v4078, %v4139
  %v4142 = vtanh.pop %v4141
  %v4143 = vsub.f32 1.0, %v4130
  %4145 = vrot.lane.b32.xlu0 %v4142, 96
  %v4146 = vpop.permute.xlu0 %4145
  %v4148 = vmul.f32 %v4143, %v4146
  %4150 = vrot.lane.b32.xlu0 %v4079, 32
  %v4151 = vpop.permute.xlu0 %4150
  %v4153 = vmul.f32 %v4130, %v4151
  %v4154 = vadd.f32 %v4148, %v4153
  %4156 = vrot.lane.b32.xlu0 %v4154, 96
  %v4157 = vpop.permute.xlu0 %4156
  %4159 = vst.msk [vmem:[#allocation4] sm:$0xff] %vm3122, %v4157
  %v4160 = vpack.c.bf16 %v4154, %v4154
  %4162 = vrot.lane.b32.xlu0 %v4160, 96
  %v4163 = vpop.permute.xlu0 %4162
  %v4165 = vsel %vm3122, %v4163, 0
  %4167 = vmatprep.subr.bf16.mxu0 0
  %4168 = vmatpush1.bf16.msra.mxu0 0
  %4169 = vmatprep.subr.bf16.mxu0 0
  %4170 = vmatpush1.bf16.msra.mxu0 0
  %4171 = vmatprep.subr.bf16.mxu0 0
  %4172 = vmatpush1.bf16.msra.mxu0 0
  %4173 = vmatprep.subr.bf16.mxu0 0
  %4174 = vmatpush1.bf16.msra.mxu0 0
  %4175 = vmatprep.subr.bf16.mxu0 0
  %4176 = vmatpush1.bf16.msra.mxu0 0
  %4177 = vmatprep.subr.bf16.mxu0 0
  %4178 = vmatpush1.bf16.msra.mxu0 0
  %4179 = vmatprep.subr.bf16.mxu0 0
  %4180 = vmatpush1.bf16.msra.mxu0 %v3364
  %4181 = vmatprep.subr.bf16.mxu0 0
  %4182 = vmatpush1.bf16.msra.mxu0 %v3363
  %4183 = vmatprep.subr.bf16.mxu0 0
  %4184 = vmatpush2.bf16.msra.mxu0 0
  %4185 = vmatprep.subr.bf16.mxu0 0
  %4186 = vmatpush2.bf16.msra.mxu0 0
  %4187 = vmatprep.subr.bf16.mxu0 0
  %4188 = vmatpush2.bf16.msra.mxu0 0
  %4189 = vmatprep.subr.bf16.mxu0 0
  %4190 = vmatpush2.bf16.msra.mxu0 0
  %4191 = vmatprep.subr.bf16.mxu0 0
  %4192 = vmatpush2.bf16.msra.mxu0 0
  %4193 = vmatprep.subr.bf16.mxu0 0
  %4194 = vmatpush2.bf16.msra.mxu0 0
  %4195 = vmatprep.subr.bf16.mxu0 0
  %4196 = vmatpush2.bf16.msra.mxu0 0
  %4197 = vmatprep.subr.bf16.mxu0 0
  %4198 = vmatpush2.bf16.msra.mxu0 0
  %4199 = vmatprep.mubr.bf16.mxu0 0
  %4200 = vmatmul.mubr.bf16.gmra.mxu0 %v4165
  %v4201 = vpop.f32.mrf.mxu0
  %v4202 = vadd.f32 %v3350, %v4201
  %v4203 = vpop.f32.mrf.mxu0
  %v4204 = vpop.f32.mrf.mxu0
  %v4205 = vpop.f32.mrf.mxu0
  %4206 = vdwg.mxu0
  %s4207 = scalar_lea.vmem %s13, 48
  %4208 = vst [vmem:[%s4207] sm:$0xff] %v4202
  %s4209 = scalar_lea.vmem [#allocation3], 28
  %v4210 = vld [vmem:[%s4209] sm:$0xf]
  %v4211 = vunpack.c.l.bf16 %v4210
  %v4212 = vld [vmem:[#allocation4] sm:$0xff]
  %v4213 = vpack.c.bf16 %v4212, %v4212
  %v4215 = vsel %vm3122, %v4213, 0
  %4217 = vmatprep.subr.bf16.mxu0 0
  %4218 = vmatpush1.bf16.msra.mxu0 0
  %4219 = vmatprep.subr.bf16.mxu0 0
  %4220 = vmatpush1.bf16.msra.mxu0 0
  %4221 = vmatprep.subr.bf16.mxu0 0
  %4222 = vmatpush1.bf16.msra.mxu0 0
  %4223 = vmatprep.subr.bf16.mxu0 0
  %4224 = vmatpush1.bf16.msra.mxu0 0
  %4225 = vmatprep.subr.bf16.mxu0 0
  %4226 = vmatpush1.bf16.msra.mxu0 0
  %4227 = vmatprep.subr.bf16.mxu0 0
  %4228 = vmatpush1.bf16.msra.mxu0 0
  %4229 = vmatprep.subr.bf16.mxu0 0
  %4230 = vmatpush1.bf16.msra.mxu0 %v3255
  %4231 = vmatprep.subr.bf16.mxu0 0
  %4232 = vmatpush1.bf16.msra.mxu0 %v3254
  %4233 = vmatprep.subr.bf16.mxu0 0
  %4234 = vmatpush2.bf16.msra.mxu0 0
  %4235 = vmatprep.subr.bf16.mxu0 0
  %4236 = vmatpush2.bf16.msra.mxu0 0
  %4237 = vmatprep.subr.bf16.mxu0 0
  %4238 = vmatpush2.bf16.msra.mxu0 0
  %4239 = vmatprep.subr.bf16.mxu0 0
  %4240 = vmatpush2.bf16.msra.mxu0 0
  %4241 = vmatprep.subr.bf16.mxu0 0
  %4242 = vmatpush2.bf16.msra.mxu0 0
  %4243 = vmatprep.subr.bf16.mxu0 0
  %4244 = vmatpush2.bf16.msra.mxu0 0
  %4245 = vmatprep.subr.bf16.mxu0 0
  %4246 = vmatpush2.bf16.msra.mxu0 0
  %4247 = vmatprep.subr.bf16.mxu0 0
  %4248 = vmatpush2.bf16.msra.mxu0 0
  %4249 = vmatprep.mubr.bf16.mxu0 0
  %4250 = vmatmul.mubr.bf16.gmra.mxu0 %v4215
  %v4251 = vpop.f32.mrf.mxu0
  %v4252 = vadd.f32 0.0, %v4251
  %v4253 = vpop.f32.mrf.mxu0
  %v4254 = vpop.f32.mrf.mxu0
  %v4255 = vpop.f32.mrf.mxu0
  %4256 = vdwg.mxu0
  %v4257 = vadd.f32 %v4211, %v4252
  %v4258 = vxor.u32 %v4257, 2147483648
  %v4259 = vmul.f32 %v4258, 1.442695
  %v4260 = vpow.pop %v4259
  %v4261 = vadd.f32 %v4260, 1.0
  %v4262 = vrcp.pop %v4261
  %v4263 = vmul.f32 1.0, %v4262
  %v4264 = vadd.f32 %v4252, %v3314
  %4266 = vrot.lane.b32.xlu0 %v4264, 64
  %v4267 = vpop.permute.xlu0 %4266
  %v4269 = vmul.f32 %v4263, %v4267
  %4271 = vrot.lane.b32.xlu0 %v4269, 64
  %v4272 = vpop.permute.xlu0 %4271
  %v4274 = vadd.f32 %v4211, %v4272
  %v4275 = vtanh.pop %v4274
  %v4276 = vsub.f32 1.0, %v4263
  %4278 = vrot.lane.b32.xlu0 %v4275, 96
  %v4279 = vpop.permute.xlu0 %4278
  %v4281 = vmul.f32 %v4276, %v4279
  %4283 = vrot.lane.b32.xlu0 %v4212, 32
  %v4284 = vpop.permute.xlu0 %4283
  %v4286 = vmul.f32 %v4263, %v4284
  %v4287 = vadd.f32 %v4281, %v4286
  %4289 = vrot.lane.b32.xlu0 %v4287, 96
  %v4290 = vpop.permute.xlu0 %4289
  %4292 = vst.msk [vmem:[#allocation4] sm:$0xff] %vm3122, %v4290
  %v4293 = vpack.c.bf16 %v4287, %v4287
  %4295 = vrot.lane.b32.xlu0 %v4293, 96
  %v4296 = vpop.permute.xlu0 %4295
  %v4298 = vsel %vm3122, %v4296, 0
  %4300 = vmatprep.subr.bf16.mxu0 0
  %4301 = vmatpush1.bf16.msra.mxu0 0
  %4302 = vmatprep.subr.bf16.mxu0 0
  %4303 = vmatpush1.bf16.msra.mxu0 0
  %4304 = vmatprep.subr.bf16.mxu0 0
  %4305 = vmatpush1.bf16.msra.mxu0 0
  %4306 = vmatprep.subr.bf16.mxu0 0
  %4307 = vmatpush1.bf16.msra.mxu0 0
  %4308 = vmatprep.subr.bf16.mxu0 0
  %4309 = vmatpush1.bf16.msra.mxu0 0
  %4310 = vmatprep.subr.bf16.mxu0 0
  %4311 = vmatpush1.bf16.msra.mxu0 0
  %4312 = vmatprep.subr.bf16.mxu0 0
  %4313 = vmatpush1.bf16.msra.mxu0 %v3364
  %4314 = vmatprep.subr.bf16.mxu0 0
  %4315 = vmatpush1.bf16.msra.mxu0 %v3363
  %4316 = vmatprep.subr.bf16.mxu0 0
  %4317 = vmatpush2.bf16.msra.mxu0 0
  %4318 = vmatprep.subr.bf16.mxu0 0
  %4319 = vmatpush2.bf16.msra.mxu0 0
  %4320 = vmatprep.subr.bf16.mxu0 0
  %4321 = vmatpush2.bf16.msra.mxu0 0
  %4322 = vmatprep.subr.bf16.mxu0 0
  %4323 = vmatpush2.bf16.msra.mxu0 0
  %4324 = vmatprep.subr.bf16.mxu0 0
  %4325 = vmatpush2.bf16.msra.mxu0 0
  %4326 = vmatprep.subr.bf16.mxu0 0
  %4327 = vmatpush2.bf16.msra.mxu0 0
  %4328 = vmatprep.subr.bf16.mxu0 0
  %4329 = vmatpush2.bf16.msra.mxu0 0
  %4330 = vmatprep.subr.bf16.mxu0 0
  %4331 = vmatpush2.bf16.msra.mxu0 0
  %4332 = vmatprep.mubr.bf16.mxu0 0
  %4333 = vmatmul.mubr.bf16.gmra.mxu0 %v4298
  %v4334 = vpop.f32.mrf.mxu0
  %v4335 = vadd.f32 %v3350, %v4334
  %v4336 = vpop.f32.mrf.mxu0
  %v4337 = vpop.f32.mrf.mxu0
  %v4338 = vpop.f32.mrf.mxu0
  %4339 = vdwg.mxu0
  %s4340 = scalar_lea.vmem %s13, 56
  %4341 = vst [vmem:[%s4340] sm:$0xff] %v4335
  // Predicated region
  $region54: #{pos_predictor_v2_chars.1} parent=0 // pred_check
    _
  $region55: #{pos_predictor_v2_chars.1} parent=0 // pred_check_branch
    %4343 = sbr.rel (0) target = $region57
  $region56: #{pos_predictor_v2_chars.1} parent=0 // pred_region
    _
  $region57: #{pos_predictor_v2_chars.1} parent=0 // pred_fallthru
    _
  // Predicated region
  $region58: #{pos_predictor_v2_chars.1} parent=0 // pred_check
    _
  $region59: #{pos_predictor_v2_chars.1} parent=0 // pred_check_branch
    %4345 = sbr.rel (0) target = $region61
  $region60: #{pos_predictor_v2_chars.1} parent=0 // pred_region
    _
  $region61: #{pos_predictor_v2_chars.1} parent=0 // pred_fallthru
    _

</llo_original>
